<compile_context>
chip_gen: v7x
topology: tpu7x:2x2x1
jax: 0.10.0
libtpu: 0.0.40
codegen_flags: <defaults>
</compile_context>

<pallas_src>
import functools

import jax
import jax.numpy as jnp
import numpy as np
from jax import lax
from jax.experimental import pallas as pl
from jax.experimental.pallas import tpu as pltpu


# ----------------------------------------------------------------------------------
# The fused kernel: embedding + mp_iter NNConv blocks + Set2Set (LSTM) + MLP head.
# ----------------------------------------------------------------------------------
def _mpnn_kernel(mp_iter, s2s_iter,
                 nf_ref, acat_ref, mask_ref, wtyp_ref,
                 wemb_ref, bemb_ref, rootw_ref, rootb_ref,
                 wihq_ref, wihr_ref, whh_ref, blstm_ref,
                 wo1q_ref, wo1r_ref, bo1_ref, wo2_ref, bo2_ref,
                 out_ref):
    f32 = jnp.float32
    bf16 = jnp.bfloat16
    H = wemb_ref.shape[1]
    T = wtyp_ref.shape[0]
    B = mask_ref.shape[0]

    # --- node embedding: bf16 MXU operands (K = node_dim), f32 accumulation ----------
    h = jnp.dot(nf_ref[...], wemb_ref[...], preferred_element_type=f32) + bemb_ref[...]

    acat = acat_ref[...]                      # [N, T*N] bf16 flattened adjacency (0/1)

    # --- message passing: h <- sum_t A_t @ (h @ W_t) + h @ R_it + b_it --------------
    for it in range(mp_iter):                 # static unroll (tiny trip count)
        h_b = h.astype(bf16)
        # T independent per-type matmuls (K=H), stacked along sublanes -> [T*N, H]
        g = jnp.concatenate(
            [jnp.dot(h_b, wtyp_ref[t], preferred_element_type=f32) for t in range(T)],
            axis=0)
        # single fused contraction over (edge type, source node): K = T*N
        agg = jnp.dot(acat, g.astype(bf16), preferred_element_type=f32)       # [N, H]
        h = (agg
             + jnp.dot(h_b, rootw_ref[it], preferred_element_type=f32)
             + rootb_ref[it])

    # --- Set2Set readout (dense-masked per-graph softmax attention) -----------------
    mask = mask_ref[...]                       # [B, N]
    neg_bias = (1.0 - mask) * (-1e30)          # hoisted out of the loop
    q = jnp.zeros((B, H), f32)
    r = jnp.zeros((B, H), f32)
    h_lstm = jnp.zeros((B, H), f32)
    c_lstm = jnp.zeros((B, H), f32)
    for _ in range(s2s_iter):                  # static unroll
        # q_star = [q, r] is never materialized: the LSTM input weight is pre-split.
        gates = (jnp.dot(q, wihq_ref[...], preferred_element_type=f32)
                 + jnp.dot(r, wihr_ref[...], preferred_element_type=f32)
                 + jnp.dot(h_lstm, whh_ref[...], preferred_element_type=f32)
                 + blstm_ref[...])                              # [B, 4H]
        sig = jax.nn.sigmoid(gates)            # full-width EUP ops, slice afterwards
        tnh = jnp.tanh(gates)
        i_g = sig[:, 0:H]
        f_g = sig[:, H:2 * H]
        g_g = tnh[:, 2 * H:3 * H]
        o_g = sig[:, 3 * H:4 * H]
        c_lstm = f_g * c_lstm + i_g * g_g
        h_lstm = o_g * jnp.tanh(c_lstm)
        q = h_lstm                                              # [B, H]

        # per-graph attention over nodes (masked softmax), all f32
        scores = lax.dot_general(q, h, (((1,), (1,)), ((), ())),
                                 preferred_element_type=f32)    # [B, N]
        s = scores + neg_bias
        s_max = jnp.max(s, axis=-1, keepdims=True)
        e = jnp.exp(s - s_max) * mask
        denom = jnp.maximum(jnp.sum(e, axis=-1, keepdims=True), 1e-30)
        attn = e * pl.reciprocal(denom, approx=True)
        r = jnp.dot(attn, h, preferred_element_type=f32)        # [B, H]

    # --- output MLP (head weight pre-split so q_star is never built) ----------------
    z = jnp.maximum(jnp.dot(q, wo1q_ref[...], preferred_element_type=f32)
                    + jnp.dot(r, wo1r_ref[...], preferred_element_type=f32)
                    + bo1_ref[...], 0.0)
    out_ref[...] = jnp.dot(z, wo2_ref[...], preferred_element_type=f32) + bo2_ref[...]


# ----------------------------------------------------------------------------------
# Wrapper: parameter-only glue (edge net, weight layout prep) + single pallas_call.
# ----------------------------------------------------------------------------------
@functools.partial(jax.jit, static_argnames=("mp_iter", "s2s_iter"))
def mpnn_prop_pred_pallas(node_feat_full, A, mask, params, *, mp_iter, s2s_iter):
    f32 = jnp.float32
    bf16 = jnp.bfloat16
    P = lax.Precision.HIGHEST

    T, N, _ = A.shape
    B = mask.shape[0]
    H = params["emb_w"].shape[0]
    OUT = params["out2_w"].shape[0]
    NODE_DIM = node_feat_full.shape[1]

    # ---- edge network (parameter-only, loop-invariant) folded into glue -------------
    # edge_attr = one_hot(edge_type), so the edge nn only ever sees the T one-hot rows;
    # its first layer reduces to edge_w1.T + b1.  Identical to PyG NNConv's per-edge
    # edge-nn output grouped by type (weight.view(-1, in_ch, out_ch)).
    relu1 = jnp.maximum(params["edge_w1"].T + params["edge_b1"][None, :], 0.0)   # [T, H]
    wflat = jnp.dot(relu1, params["edge_w2"].T, precision=P) + params["edge_b2"][None, :]
    wtyp = wflat.reshape(T, H, H)                                                # [in, out]

    # ---- flattened adjacency for the fused K = T*N message matmul -------------------
    #   A_cat[dst, t*N + src] = A[t, dst, src]   (0/1 counts -> exact in bf16)
    acat = jnp.transpose(A, (1, 0, 2)).reshape(N, T * N).astype(bf16)

    # ---- weight prep: pre-transposed so every kernel matmul is row-major x @ W ------
    nf_b    = node_feat_full.astype(bf16)                              # [N, NODE_DIM]
    wemb_b  = params["emb_w"].T.astype(bf16)                           # [NODE_DIM, H]
    bemb    = params["emb_b"][None, :].astype(f32)                     # [1, H]
    wtyp_b  = wtyp.astype(bf16)                                        # [T, H, H]
    rootw_b = jnp.transpose(params["root_w"], (0, 2, 1)).astype(bf16)  # [mp, H, H]
    rootb   = params["root_b"][:, None, :].astype(f32)                 # [mp, 1, H]
    wih     = params["lstm_wih"]                                       # [4H, 2H]
    wihq    = wih[:, :H].T.astype(f32)                                 # [H, 4H]
    wihr    = wih[:, H:].T.astype(f32)                                 # [H, 4H]
    whh     = params["lstm_whh"].T.astype(f32)                         # [H, 4H]
    blstm   = (params["lstm_bih"] + params["lstm_bhh"])[None, :].astype(f32)
    wo1     = params["out1_w"]                                         # [H, 2H]
    wo1q    = wo1[:, :H].T.astype(f32)                                 # [H, H]
    wo1r    = wo1[:, H:].T.astype(f32)                                 # [H, H]
    bo1     = params["out1_b"][None, :].astype(f32)
    wo2     = params["out2_w"].T.astype(f32)                           # [H, OUT]
    bo2     = params["out2_b"][None, :].astype(f32)

    operands = (nf_b, acat, mask.astype(f32), wtyp_b,
                wemb_b, bemb, rootw_b, rootb,
                wihq, wihr, whh, blstm,
                wo1q, wo1r, bo1, wo2, bo2)

    # advisory cost estimate so XLA can overlap surrounding ops with this call
    flops = int(2 * N * NODE_DIM * H
                + mp_iter * (2 * T * N * H * H + 2 * N * (T * N) * H + 2 * N * H * H)
                + s2s_iter * (3 * 2 * B * H * 4 * H + 4 * B * N * H)
                + 2 * B * (2 * H * H + H * OUT))
    transcendentals = int(s2s_iter * (2 * B * 4 * H + B * H + B * N))
    bytes_accessed = int(sum(int(np.prod(x.shape)) * x.dtype.itemsize for x in operands)
                         + B * OUT * 4)

    kernel = functools.partial(_mpnn_kernel, mp_iter, s2s_iter)
    out = pl.pallas_call(
        kernel,
        out_shape=jax.ShapeDtypeStruct((B, OUT), f32),
        in_specs=[pl.BlockSpec(memory_space=pltpu.MemorySpace.VMEM)] * len(operands),
        out_specs=pl.BlockSpec(memory_space=pltpu.MemorySpace.VMEM),
        cost_estimate=pl.CostEstimate(flops=flops,
                                      transcendentals=transcendentals,
                                      bytes_accessed=bytes_accessed),
    )(*operands)
    # self.mean / self.std are None -> no rescale
    return out


# ----------------------------------------------------------------------------------
# Pure-JAX f32 reference (module semantics) to sanity-check the Pallas lowering.
# ----------------------------------------------------------------------------------
def reference_forward(node_feat_full, A, mask, params, mp_iter, s2s_iter):
    P = jax.lax.Precision.HIGHEST
    H = params["emb_w"].shape[0]
    EDGE_DIM = params["edge_w1"].shape[1]
    B = mask.shape[0]

    eye_t = jnp.eye(EDGE_DIM, dtype=jnp.float32)
    e1 = jnp.maximum(jnp.dot(eye_t, params["edge_w1"].T, precision=P) + params["edge_b1"], 0.0)
    wtyp = (jnp.dot(e1, params["edge_w2"].T, precision=P) + params["edge_b2"]).reshape(EDGE_DIM, H, H)

    h = jnp.dot(node_feat_full, params["emb_w"].T, precision=P) + params["emb_b"]
    for it in range(mp_iter):
        agg = jnp.zeros_like(h)
        for t in range(EDGE_DIM):
            agg = agg + jnp.dot(jnp.dot(A[t], h, precision=P), wtyp[t], precision=P)
        h = agg + jnp.dot(h, params["root_w"][it].T, precision=P) + params["root_b"][it]

    q_star = jnp.zeros((B, 2 * H), jnp.float32)
    hl = jnp.zeros((B, H), jnp.float32)
    cl = jnp.zeros((B, H), jnp.float32)
    blstm = params["lstm_bih"] + params["lstm_bhh"]
    for _ in range(s2s_iter):
        gates = (jnp.dot(q_star, params["lstm_wih"].T, precision=P)
                 + jnp.dot(hl, params["lstm_whh"].T, precision=P) + blstm)
        i_g = jax.nn.sigmoid(gates[:, 0:H])
        f_g = jax.nn.sigmoid(gates[:, H:2 * H])
        g_g = jnp.tanh(gates[:, 2 * H:3 * H])
        o_g = jax.nn.sigmoid(gates[:, 3 * H:4 * H])
        cl = f_g * cl + i_g * g_g
        hl = o_g * jnp.tanh(cl)
        q = hl
        scores = jnp.einsum("bh,nh->bn", q, h, precision=P)
        s_m = jnp.where(mask > 0, scores, -1e30)
        e = jnp.exp(s_m - jnp.max(s_m, axis=-1, keepdims=True)) * mask
        attn = e / jnp.sum(e, axis=-1, keepdims=True)
        r = jnp.dot(attn, h, precision=P)
        q_star = jnp.concatenate([q, r], axis=-1)

    z = jnp.maximum(jnp.dot(q_star, params["out1_w"].T, precision=P) + params["out1_b"], 0.0)
    return jnp.dot(z, params["out2_w"].T, precision=P) + params["out2_b"]


# ----------------------------------------------------------------------------------
if __name__ == "__main__":
    # Small, deterministic synthetic problem.
    B = 2                 # graphs in batch
    N_PER = 8             # nodes per graph
    N = B * N_PER         # 16 nodes total
    H = 32                # hidden_dim
    NODE_TYPES = 100
    FEAT = 28
    NODE_DIM = NODE_TYPES + FEAT   # 128 (node_dim of the Linear embedding)
    EDGE_DIM = 8
    OUT = 8               # output_dim
    MP_ITER = 3
    S2S_ITER = 4

    key = jax.random.PRNGKey(0)
    ks = jax.random.split(key, 24)

    node_type = jax.random.randint(ks[0], (N,), 0, NODE_TYPES)
    node_feat_raw = jax.random.normal(ks[1], (N, FEAT), jnp.float32)
    batch = jnp.repeat(jnp.arange(B, dtype=jnp.int32), N_PER)

    # Deterministic ring graph per molecule, both directions (DGL edges() -> (src, dst)).
    src_list, dst_list = [], []
    for g in range(B):
        off = g * N_PER
        for i in range(N_PER):
            s, d = off + i, off + (i + 1) % N_PER
            src_list += [s, d]
            dst_list += [d, s]
    src = jnp.array(src_list, jnp.int32)
    dst = jnp.array(dst_list, jnp.int32)
    E = src.shape[0]
    edge_type = jax.random.randint(ks[2], (E,), 0, EDGE_DIM)

    # Deterministic parameter init (PyTorch weight layouts: Linear.weight is [out, in]).
    def w(k, shape, scale=0.1):
        return scale * jax.random.normal(k, shape, jnp.float32)

    params = {
        "emb_w":   w(ks[3], (H, NODE_DIM)),
        "emb_b":   w(ks[4], (H,), 0.01),
        "edge_w1": w(ks[5], (H, EDGE_DIM)),
        "edge_b1": w(ks[6], (H,), 0.01),
        "edge_w2": w(ks[7], (H * H, H)),
        "edge_b2": w(ks[8], (H * H,), 0.01),
        "root_w":  w(ks[9], (MP_ITER, H, H)),
        "root_b":  w(ks[10], (MP_ITER, H), 0.01),
        "lstm_wih": w(ks[11], (4 * H, 2 * H)),
        "lstm_whh": w(ks[12], (4 * H, H)),
        "lstm_bih": w(ks[13], (4 * H,), 0.01),
        "lstm_bhh": w(ks[14], (4 * H,), 0.01),
        "out1_w":  w(ks[15], (H, 2 * H)),
        "out1_b":  w(ks[16], (H,), 0.01),
        "out2_w":  w(ks[17], (OUT, H)),
        "out2_b":  w(ks[18], (OUT,), 0.01),
    }

    # ---- glue (plain JAX): one-hot features, dense per-type adjacency, graph mask ----
    node_onehot = jax.nn.one_hot(node_type, NODE_TYPES, dtype=jnp.float32)
    node_feat_full = jnp.concatenate([node_onehot, node_feat_raw], axis=-1)        # [N, 128]
    A = jnp.zeros((EDGE_DIM, N, N), jnp.float32).at[edge_type, dst, src].add(1.0)  # A[t,dst,src]
    mask = (batch[None, :] == jnp.arange(B)[:, None]).astype(jnp.float32)          # [B, N]

    out = mpnn_prop_pred_pallas(node_feat_full, A, mask, params,
                                mp_iter=MP_ITER, s2s_iter=S2S_ITER)
    out = jax.block_until_ready(out)

    ref = reference_forward(node_feat_full, A, mask, params, MP_ITER, S2S_ITER)
    np.testing.assert_allclose(np.asarray(out), np.asarray(ref), rtol=2e-2, atol=2e-2)

    print("KERNEL_OK")
</pallas_src>

<mosaic_0001>
module attributes {stable_mosaic.version = 11 : i64} {
  func.func @_mpnn_kernel(%arg0: memref<16x128xbf16, #tpu.memory_space<vmem>>, %arg1: memref<16x128xbf16, #tpu.memory_space<vmem>>, %arg2: memref<2x16xf32, #tpu.memory_space<vmem>>, %arg3: memref<8x32x32xbf16, #tpu.memory_space<vmem>>, %arg4: memref<128x32xbf16, #tpu.memory_space<vmem>>, %arg5: memref<1x32xf32, #tpu.memory_space<vmem>>, %arg6: memref<3x32x32xbf16, #tpu.memory_space<vmem>>, %arg7: memref<3x1x32xf32, #tpu.memory_space<vmem>>, %arg8: memref<32x128xf32, #tpu.memory_space<vmem>>, %arg9: memref<32x128xf32, #tpu.memory_space<vmem>>, %arg10: memref<32x128xf32, #tpu.memory_space<vmem>>, %arg11: memref<1x128xf32, #tpu.memory_space<vmem>>, %arg12: memref<32x32xf32, #tpu.memory_space<vmem>>, %arg13: memref<32x32xf32, #tpu.memory_space<vmem>>, %arg14: memref<1x32xf32, #tpu.memory_space<vmem>>, %arg15: memref<32x8xf32, #tpu.memory_space<vmem>>, %arg16: memref<1x8xf32, #tpu.memory_space<vmem>>, %arg17: memref<2x8xf32, #tpu.memory_space<vmem>>) attributes {dimension_semantics = [], scalar_prefetch = 0 : i64, scratch_operands = 0 : i64, tpu.core_type = #tpu.core_type<tc>} {
    %c0 = arith.constant 0 : index
    %c0_0 = arith.constant 0 : index
    %0 = vector.load %arg0[%c0, %c0_0] : memref<16x128xbf16, #tpu.memory_space<vmem>>, vector<16x128xbf16>
    %c0_1 = arith.constant 0 : index
    %c0_2 = arith.constant 0 : index
    %1 = vector.load %arg4[%c0_1, %c0_2] : memref<128x32xbf16, #tpu.memory_space<vmem>>, vector<128x32xbf16>
    %cst = arith.constant dense<0.000000e+00> : vector<16x32xf32>
    %2 = tpu.matmul %0, %1, %cst {dimension_numbers = #tpu.dot_dimension_numbers<[1], [0], [0], [1], [0, 0, 1, 1], [], []>} : vector<16x128xbf16>, vector<128x32xbf16>, vector<16x32xf32> -> vector<16x32xf32>
    %c0_3 = arith.constant 0 : index
    %c0_4 = arith.constant 0 : index
    %3 = vector.load %arg5[%c0_3, %c0_4] : memref<1x32xf32, #tpu.memory_space<vmem>>, vector<1x32xf32>
    %4 = vector.broadcast %3 : vector<1x32xf32> to vector<16x32xf32>
    %5 = arith.addf %2, %4 : vector<16x32xf32>
    %c0_5 = arith.constant 0 : index
    %c0_6 = arith.constant 0 : index
    %6 = vector.load %arg1[%c0_5, %c0_6] : memref<16x128xbf16, #tpu.memory_space<vmem>>, vector<16x128xbf16>
    %7 = arith.truncf %5 : vector<16x32xf32> to vector<16x32xbf16>
    %c0_7 = arith.constant 0 : index
    %c0_8 = arith.constant 0 : index
    %c0_9 = arith.constant 0 : index
    %8 = vector.load %arg3[%c0_7, %c0_8, %c0_9] : memref<8x32x32xbf16, #tpu.memory_space<vmem>>, vector<1x32x32xbf16>
    %9 = vector.shape_cast %8 : vector<1x32x32xbf16> to vector<32x32xbf16>
    %cst_10 = arith.constant dense<0.000000e+00> : vector<16x32xf32>
    %10 = tpu.matmul %7, %9, %cst_10 {dimension_numbers = #tpu.dot_dimension_numbers<[1], [0], [0], [1], [0, 0, 1, 1], [], []>} : vector<16x32xbf16>, vector<32x32xbf16>, vector<16x32xf32> -> vector<16x32xf32>
    %c1 = arith.constant 1 : index
    %c0_11 = arith.constant 0 : index
    %c0_12 = arith.constant 0 : index
    %11 = vector.load %arg3[%c1, %c0_11, %c0_12] : memref<8x32x32xbf16, #tpu.memory_space<vmem>>, vector<1x32x32xbf16>
    %12 = vector.shape_cast %11 : vector<1x32x32xbf16> to vector<32x32xbf16>
    %cst_13 = arith.constant dense<0.000000e+00> : vector<16x32xf32>
    %13 = tpu.matmul %7, %12, %cst_13 {dimension_numbers = #tpu.dot_dimension_numbers<[1], [0], [0], [1], [0, 0, 1, 1], [], []>} : vector<16x32xbf16>, vector<32x32xbf16>, vector<16x32xf32> -> vector<16x32xf32>
    %c2 = arith.constant 2 : index
    %c0_14 = arith.constant 0 : index
    %c0_15 = arith.constant 0 : index
    %14 = vector.load %arg3[%c2, %c0_14, %c0_15] : memref<8x32x32xbf16, #tpu.memory_space<vmem>>, vector<1x32x32xbf16>
    %15 = vector.shape_cast %14 : vector<1x32x32xbf16> to vector<32x32xbf16>
    %cst_16 = arith.constant dense<0.000000e+00> : vector<16x32xf32>
    %16 = tpu.matmul %7, %15, %cst_16 {dimension_numbers = #tpu.dot_dimension_numbers<[1], [0], [0], [1], [0, 0, 1, 1], [], []>} : vector<16x32xbf16>, vector<32x32xbf16>, vector<16x32xf32> -> vector<16x32xf32>
    %c3 = arith.constant 3 : index
    %c0_17 = arith.constant 0 : index
    %c0_18 = arith.constant 0 : index
    %17 = vector.load %arg3[%c3, %c0_17, %c0_18] : memref<8x32x32xbf16, #tpu.memory_space<vmem>>, vector<1x32x32xbf16>
    %18 = vector.shape_cast %17 : vector<1x32x32xbf16> to vector<32x32xbf16>
    %cst_19 = arith.constant dense<0.000000e+00> : vector<16x32xf32>
    %19 = tpu.matmul %7, %18, %cst_19 {dimension_numbers = #tpu.dot_dimension_numbers<[1], [0], [0], [1], [0, 0, 1, 1], [], []>} : vector<16x32xbf16>, vector<32x32xbf16>, vector<16x32xf32> -> vector<16x32xf32>
    %c4 = arith.constant 4 : index
    %c0_20 = arith.constant 0 : index
    %c0_21 = arith.constant 0 : index
    %20 = vector.load %arg3[%c4, %c0_20, %c0_21] : memref<8x32x32xbf16, #tpu.memory_space<vmem>>, vector<1x32x32xbf16>
    %21 = vector.shape_cast %20 : vector<1x32x32xbf16> to vector<32x32xbf16>
    %cst_22 = arith.constant dense<0.000000e+00> : vector<16x32xf32>
    %22 = tpu.matmul %7, %21, %cst_22 {dimension_numbers = #tpu.dot_dimension_numbers<[1], [0], [0], [1], [0, 0, 1, 1], [], []>} : vector<16x32xbf16>, vector<32x32xbf16>, vector<16x32xf32> -> vector<16x32xf32>
    %c5 = arith.constant 5 : index
    %c0_23 = arith.constant 0 : index
    %c0_24 = arith.constant 0 : index
    %23 = vector.load %arg3[%c5, %c0_23, %c0_24] : memref<8x32x32xbf16, #tpu.memory_space<vmem>>, vector<1x32x32xbf16>
    %24 = vector.shape_cast %23 : vector<1x32x32xbf16> to vector<32x32xbf16>
    %cst_25 = arith.constant dense<0.000000e+00> : vector<16x32xf32>
    %25 = tpu.matmul %7, %24, %cst_25 {dimension_numbers = #tpu.dot_dimension_numbers<[1], [0], [0], [1], [0, 0, 1, 1], [], []>} : vector<16x32xbf16>, vector<32x32xbf16>, vector<16x32xf32> -> vector<16x32xf32>
    %c6 = arith.constant 6 : index
    %c0_26 = arith.constant 0 : index
    %c0_27 = arith.constant 0 : index
    %26 = vector.load %arg3[%c6, %c0_26, %c0_27] : memref<8x32x32xbf16, #tpu.memory_space<vmem>>, vector<1x32x32xbf16>
    %27 = vector.shape_cast %26 : vector<1x32x32xbf16> to vector<32x32xbf16>
    %cst_28 = arith.constant dense<0.000000e+00> : vector<16x32xf32>
    %28 = tpu.matmul %7, %27, %cst_28 {dimension_numbers = #tpu.dot_dimension_numbers<[1], [0], [0], [1], [0, 0, 1, 1], [], []>} : vector<16x32xbf16>, vector<32x32xbf16>, vector<16x32xf32> -> vector<16x32xf32>
    %c7 = arith.constant 7 : index
    %c0_29 = arith.constant 0 : index
    %c0_30 = arith.constant 0 : index
    %29 = vector.load %arg3[%c7, %c0_29, %c0_30] : memref<8x32x32xbf16, #tpu.memory_space<vmem>>, vector<1x32x32xbf16>
    %30 = vector.shape_cast %29 : vector<1x32x32xbf16> to vector<32x32xbf16>
    %cst_31 = arith.constant dense<0.000000e+00> : vector<16x32xf32>
    %31 = tpu.matmul %7, %30, %cst_31 {dimension_numbers = #tpu.dot_dimension_numbers<[1], [0], [0], [1], [0, 0, 1, 1], [], []>} : vector<16x32xbf16>, vector<32x32xbf16>, vector<16x32xf32> -> vector<16x32xf32>
    %32 = tpu.concatenate %10, %13, %16, %19, %22, %25, %28, %31 in 0 : vector<16x32xf32>, vector<16x32xf32>, vector<16x32xf32>, vector<16x32xf32>, vector<16x32xf32>, vector<16x32xf32>, vector<16x32xf32>, vector<16x32xf32> -> vector<128x32xf32>
    %33 = arith.truncf %32 : vector<128x32xf32> to vector<128x32xbf16>
    %cst_32 = arith.constant dense<0.000000e+00> : vector<16x32xf32>
    %34 = tpu.matmul %6, %33, %cst_32 {dimension_numbers = #tpu.dot_dimension_numbers<[1], [0], [0], [1], [0, 0, 1, 1], [], []>} : vector<16x128xbf16>, vector<128x32xbf16>, vector<16x32xf32> -> vector<16x32xf32>
    %c0_33 = arith.constant 0 : index
    %c0_34 = arith.constant 0 : index
    %c0_35 = arith.constant 0 : index
    %35 = vector.load %arg6[%c0_33, %c0_34, %c0_35] : memref<3x32x32xbf16, #tpu.memory_space<vmem>>, vector<1x32x32xbf16>
    %36 = vector.shape_cast %35 : vector<1x32x32xbf16> to vector<32x32xbf16>
    %cst_36 = arith.constant dense<0.000000e+00> : vector<16x32xf32>
    %37 = tpu.matmul %7, %36, %cst_36 {dimension_numbers = #tpu.dot_dimension_numbers<[1], [0], [0], [1], [0, 0, 1, 1], [], []>} : vector<16x32xbf16>, vector<32x32xbf16>, vector<16x32xf32> -> vector<16x32xf32>
    %38 = arith.addf %34, %37 : vector<16x32xf32>
    %c0_37 = arith.constant 0 : index
    %c0_38 = arith.constant 0 : index
    %c0_39 = arith.constant 0 : index
    %39 = vector.load %arg7[%c0_37, %c0_38, %c0_39] : memref<3x1x32xf32, #tpu.memory_space<vmem>>, vector<1x1x32xf32>
    %40 = vector.shape_cast %39 : vector<1x1x32xf32> to vector<1x32xf32>
    %41 = vector.broadcast %40 : vector<1x32xf32> to vector<16x32xf32>
    %42 = arith.addf %38, %41 : vector<16x32xf32>
    %43 = arith.truncf %42 : vector<16x32xf32> to vector<16x32xbf16>
    %c0_40 = arith.constant 0 : index
    %c0_41 = arith.constant 0 : index
    %c0_42 = arith.constant 0 : index
    %44 = vector.load %arg3[%c0_40, %c0_41, %c0_42] : memref<8x32x32xbf16, #tpu.memory_space<vmem>>, vector<1x32x32xbf16>
    %45 = vector.shape_cast %44 : vector<1x32x32xbf16> to vector<32x32xbf16>
    %cst_43 = arith.constant dense<0.000000e+00> : vector<16x32xf32>
    %46 = tpu.matmul %43, %45, %cst_43 {dimension_numbers = #tpu.dot_dimension_numbers<[1], [0], [0], [1], [0, 0, 1, 1], [], []>} : vector<16x32xbf16>, vector<32x32xbf16>, vector<16x32xf32> -> vector<16x32xf32>
    %c1_44 = arith.constant 1 : index
    %c0_45 = arith.constant 0 : index
    %c0_46 = arith.constant 0 : index
    %47 = vector.load %arg3[%c1_44, %c0_45, %c0_46] : memref<8x32x32xbf16, #tpu.memory_space<vmem>>, vector<1x32x32xbf16>
    %48 = vector.shape_cast %47 : vector<1x32x32xbf16> to vector<32x32xbf16>
    %cst_47 = arith.constant dense<0.000000e+00> : vector<16x32xf32>
    %49 = tpu.matmul %43, %48, %cst_47 {dimension_numbers = #tpu.dot_dimension_numbers<[1], [0], [0], [1], [0, 0, 1, 1], [], []>} : vector<16x32xbf16>, vector<32x32xbf16>, vector<16x32xf32> -> vector<16x32xf32>
    %c2_48 = arith.constant 2 : index
    %c0_49 = arith.constant 0 : index
    %c0_50 = arith.constant 0 : index
    %50 = vector.load %arg3[%c2_48, %c0_49, %c0_50] : memref<8x32x32xbf16, #tpu.memory_space<vmem>>, vector<1x32x32xbf16>
    %51 = vector.shape_cast %50 : vector<1x32x32xbf16> to vector<32x32xbf16>
    %cst_51 = arith.constant dense<0.000000e+00> : vector<16x32xf32>
    %52 = tpu.matmul %43, %51, %cst_51 {dimension_numbers = #tpu.dot_dimension_numbers<[1], [0], [0], [1], [0, 0, 1, 1], [], []>} : vector<16x32xbf16>, vector<32x32xbf16>, vector<16x32xf32> -> vector<16x32xf32>
    %c3_52 = arith.constant 3 : index
    %c0_53 = arith.constant 0 : index
    %c0_54 = arith.constant 0 : index
    %53 = vector.load %arg3[%c3_52, %c0_53, %c0_54] : memref<8x32x32xbf16, #tpu.memory_space<vmem>>, vector<1x32x32xbf16>
    %54 = vector.shape_cast %53 : vector<1x32x32xbf16> to vector<32x32xbf16>
    %cst_55 = arith.constant dense<0.000000e+00> : vector<16x32xf32>
    %55 = tpu.matmul %43, %54, %cst_55 {dimension_numbers = #tpu.dot_dimension_numbers<[1], [0], [0], [1], [0, 0, 1, 1], [], []>} : vector<16x32xbf16>, vector<32x32xbf16>, vector<16x32xf32> -> vector<16x32xf32>
    %c4_56 = arith.constant 4 : index
    %c0_57 = arith.constant 0 : index
    %c0_58 = arith.constant 0 : index
    %56 = vector.load %arg3[%c4_56, %c0_57, %c0_58] : memref<8x32x32xbf16, #tpu.memory_space<vmem>>, vector<1x32x32xbf16>
    %57 = vector.shape_cast %56 : vector<1x32x32xbf16> to vector<32x32xbf16>
    %cst_59 = arith.constant dense<0.000000e+00> : vector<16x32xf32>
    %58 = tpu.matmul %43, %57, %cst_59 {dimension_numbers = #tpu.dot_dimension_numbers<[1], [0], [0], [1], [0, 0, 1, 1], [], []>} : vector<16x32xbf16>, vector<32x32xbf16>, vector<16x32xf32> -> vector<16x32xf32>
    %c5_60 = arith.constant 5 : index
    %c0_61 = arith.constant 0 : index
    %c0_62 = arith.constant 0 : index
    %59 = vector.load %arg3[%c5_60, %c0_61, %c0_62] : memref<8x32x32xbf16, #tpu.memory_space<vmem>>, vector<1x32x32xbf16>
    %60 = vector.shape_cast %59 : vector<1x32x32xbf16> to vector<32x32xbf16>
    %cst_63 = arith.constant dense<0.000000e+00> : vector<16x32xf32>
    %61 = tpu.matmul %43, %60, %cst_63 {dimension_numbers = #tpu.dot_dimension_numbers<[1], [0], [0], [1], [0, 0, 1, 1], [], []>} : vector<16x32xbf16>, vector<32x32xbf16>, vector<16x32xf32> -> vector<16x32xf32>
    %c6_64 = arith.constant 6 : index
    %c0_65 = arith.constant 0 : index
    %c0_66 = arith.constant 0 : index
    %62 = vector.load %arg3[%c6_64, %c0_65, %c0_66] : memref<8x32x32xbf16, #tpu.memory_space<vmem>>, vector<1x32x32xbf16>
    %63 = vector.shape_cast %62 : vector<1x32x32xbf16> to vector<32x32xbf16>
    %cst_67 = arith.constant dense<0.000000e+00> : vector<16x32xf32>
    %64 = tpu.matmul %43, %63, %cst_67 {dimension_numbers = #tpu.dot_dimension_numbers<[1], [0], [0], [1], [0, 0, 1, 1], [], []>} : vector<16x32xbf16>, vector<32x32xbf16>, vector<16x32xf32> -> vector<16x32xf32>
    %c7_68 = arith.constant 7 : index
    %c0_69 = arith.constant 0 : index
    %c0_70 = arith.constant 0 : index
    %65 = vector.load %arg3[%c7_68, %c0_69, %c0_70] : memref<8x32x32xbf16, #tpu.memory_space<vmem>>, vector<1x32x32xbf16>
    %66 = vector.shape_cast %65 : vector<1x32x32xbf16> to vector<32x32xbf16>
    %cst_71 = arith.constant dense<0.000000e+00> : vector<16x32xf32>
    %67 = tpu.matmul %43, %66, %cst_71 {dimension_numbers = #tpu.dot_dimension_numbers<[1], [0], [0], [1], [0, 0, 1, 1], [], []>} : vector<16x32xbf16>, vector<32x32xbf16>, vector<16x32xf32> -> vector<16x32xf32>
    %68 = tpu.concatenate %46, %49, %52, %55, %58, %61, %64, %67 in 0 : vector<16x32xf32>, vector<16x32xf32>, vector<16x32xf32>, vector<16x32xf32>, vector<16x32xf32>, vector<16x32xf32>, vector<16x32xf32>, vector<16x32xf32> -> vector<128x32xf32>
    %69 = arith.truncf %68 : vector<128x32xf32> to vector<128x32xbf16>
    %cst_72 = arith.constant dense<0.000000e+00> : vector<16x32xf32>
    %70 = tpu.matmul %6, %69, %cst_72 {dimension_numbers = #tpu.dot_dimension_numbers<[1], [0], [0], [1], [0, 0, 1, 1], [], []>} : vector<16x128xbf16>, vector<128x32xbf16>, vector<16x32xf32> -> vector<16x32xf32>
    %c1_73 = arith.constant 1 : index
    %c0_74 = arith.constant 0 : index
    %c0_75 = arith.constant 0 : index
    %71 = vector.load %arg6[%c1_73, %c0_74, %c0_75] : memref<3x32x32xbf16, #tpu.memory_space<vmem>>, vector<1x32x32xbf16>
    %72 = vector.shape_cast %71 : vector<1x32x32xbf16> to vector<32x32xbf16>
    %cst_76 = arith.constant dense<0.000000e+00> : vector<16x32xf32>
    %73 = tpu.matmul %43, %72, %cst_76 {dimension_numbers = #tpu.dot_dimension_numbers<[1], [0], [0], [1], [0, 0, 1, 1], [], []>} : vector<16x32xbf16>, vector<32x32xbf16>, vector<16x32xf32> -> vector<16x32xf32>
    %74 = arith.addf %70, %73 : vector<16x32xf32>
    %c1_77 = arith.constant 1 : index
    %c0_78 = arith.constant 0 : index
    %c0_79 = arith.constant 0 : index
    %75 = vector.load %arg7[%c1_77, %c0_78, %c0_79] : memref<3x1x32xf32, #tpu.memory_space<vmem>>, vector<1x1x32xf32>
    %76 = vector.shape_cast %75 : vector<1x1x32xf32> to vector<1x32xf32>
    %77 = vector.broadcast %76 : vector<1x32xf32> to vector<16x32xf32>
    %78 = arith.addf %74, %77 : vector<16x32xf32>
    %79 = arith.truncf %78 : vector<16x32xf32> to vector<16x32xbf16>
    %c0_80 = arith.constant 0 : index
    %c0_81 = arith.constant 0 : index
    %c0_82 = arith.constant 0 : index
    %80 = vector.load %arg3[%c0_80, %c0_81, %c0_82] : memref<8x32x32xbf16, #tpu.memory_space<vmem>>, vector<1x32x32xbf16>
    %81 = vector.shape_cast %80 : vector<1x32x32xbf16> to vector<32x32xbf16>
    %cst_83 = arith.constant dense<0.000000e+00> : vector<16x32xf32>
    %82 = tpu.matmul %79, %81, %cst_83 {dimension_numbers = #tpu.dot_dimension_numbers<[1], [0], [0], [1], [0, 0, 1, 1], [], []>} : vector<16x32xbf16>, vector<32x32xbf16>, vector<16x32xf32> -> vector<16x32xf32>
    %c1_84 = arith.constant 1 : index
    %c0_85 = arith.constant 0 : index
    %c0_86 = arith.constant 0 : index
    %83 = vector.load %arg3[%c1_84, %c0_85, %c0_86] : memref<8x32x32xbf16, #tpu.memory_space<vmem>>, vector<1x32x32xbf16>
    %84 = vector.shape_cast %83 : vector<1x32x32xbf16> to vector<32x32xbf16>
    %cst_87 = arith.constant dense<0.000000e+00> : vector<16x32xf32>
    %85 = tpu.matmul %79, %84, %cst_87 {dimension_numbers = #tpu.dot_dimension_numbers<[1], [0], [0], [1], [0, 0, 1, 1], [], []>} : vector<16x32xbf16>, vector<32x32xbf16>, vector<16x32xf32> -> vector<16x32xf32>
    %c2_88 = arith.constant 2 : index
    %c0_89 = arith.constant 0 : index
    %c0_90 = arith.constant 0 : index
    %86 = vector.load %arg3[%c2_88, %c0_89, %c0_90] : memref<8x32x32xbf16, #tpu.memory_space<vmem>>, vector<1x32x32xbf16>
    %87 = vector.shape_cast %86 : vector<1x32x32xbf16> to vector<32x32xbf16>
    %cst_91 = arith.constant dense<0.000000e+00> : vector<16x32xf32>
    %88 = tpu.matmul %79, %87, %cst_91 {dimension_numbers = #tpu.dot_dimension_numbers<[1], [0], [0], [1], [0, 0, 1, 1], [], []>} : vector<16x32xbf16>, vector<32x32xbf16>, vector<16x32xf32> -> vector<16x32xf32>
    %c3_92 = arith.constant 3 : index
    %c0_93 = arith.constant 0 : index
    %c0_94 = arith.constant 0 : index
    %89 = vector.load %arg3[%c3_92, %c0_93, %c0_94] : memref<8x32x32xbf16, #tpu.memory_space<vmem>>, vector<1x32x32xbf16>
    %90 = vector.shape_cast %89 : vector<1x32x32xbf16> to vector<32x32xbf16>
    %cst_95 = arith.constant dense<0.000000e+00> : vector<16x32xf32>
    %91 = tpu.matmul %79, %90, %cst_95 {dimension_numbers = #tpu.dot_dimension_numbers<[1], [0], [0], [1], [0, 0, 1, 1], [], []>} : vector<16x32xbf16>, vector<32x32xbf16>, vector<16x32xf32> -> vector<16x32xf32>
    %c4_96 = arith.constant 4 : index
    %c0_97 = arith.constant 0 : index
    %c0_98 = arith.constant 0 : index
    %92 = vector.load %arg3[%c4_96, %c0_97, %c0_98] : memref<8x32x32xbf16, #tpu.memory_space<vmem>>, vector<1x32x32xbf16>
    %93 = vector.shape_cast %92 : vector<1x32x32xbf16> to vector<32x32xbf16>
    %cst_99 = arith.constant dense<0.000000e+00> : vector<16x32xf32>
    %94 = tpu.matmul %79, %93, %cst_99 {dimension_numbers = #tpu.dot_dimension_numbers<[1], [0], [0], [1], [0, 0, 1, 1], [], []>} : vector<16x32xbf16>, vector<32x32xbf16>, vector<16x32xf32> -> vector<16x32xf32>
    %c5_100 = arith.constant 5 : index
    %c0_101 = arith.constant 0 : index
    %c0_102 = arith.constant 0 : index
    %95 = vector.load %arg3[%c5_100, %c0_101, %c0_102] : memref<8x32x32xbf16, #tpu.memory_space<vmem>>, vector<1x32x32xbf16>
    %96 = vector.shape_cast %95 : vector<1x32x32xbf16> to vector<32x32xbf16>
    %cst_103 = arith.constant dense<0.000000e+00> : vector<16x32xf32>
    %97 = tpu.matmul %79, %96, %cst_103 {dimension_numbers = #tpu.dot_dimension_numbers<[1], [0], [0], [1], [0, 0, 1, 1], [], []>} : vector<16x32xbf16>, vector<32x32xbf16>, vector<16x32xf32> -> vector<16x32xf32>
    %c6_104 = arith.constant 6 : index
    %c0_105 = arith.constant 0 : index
    %c0_106 = arith.constant 0 : index
    %98 = vector.load %arg3[%c6_104, %c0_105, %c0_106] : memref<8x32x32xbf16, #tpu.memory_space<vmem>>, vector<1x32x32xbf16>
    %99 = vector.shape_cast %98 : vector<1x32x32xbf16> to vector<32x32xbf16>
    %cst_107 = arith.constant dense<0.000000e+00> : vector<16x32xf32>
    %100 = tpu.matmul %79, %99, %cst_107 {dimension_numbers = #tpu.dot_dimension_numbers<[1], [0], [0], [1], [0, 0, 1, 1], [], []>} : vector<16x32xbf16>, vector<32x32xbf16>, vector<16x32xf32> -> vector<16x32xf32>
    %c7_108 = arith.constant 7 : index
    %c0_109 = arith.constant 0 : index
    %c0_110 = arith.constant 0 : index
    %101 = vector.load %arg3[%c7_108, %c0_109, %c0_110] : memref<8x32x32xbf16, #tpu.memory_space<vmem>>, vector<1x32x32xbf16>
    %102 = vector.shape_cast %101 : vector<1x32x32xbf16> to vector<32x32xbf16>
    %cst_111 = arith.constant dense<0.000000e+00> : vector<16x32xf32>
    %103 = tpu.matmul %79, %102, %cst_111 {dimension_numbers = #tpu.dot_dimension_numbers<[1], [0], [0], [1], [0, 0, 1, 1], [], []>} : vector<16x32xbf16>, vector<32x32xbf16>, vector<16x32xf32> -> vector<16x32xf32>
    %104 = tpu.concatenate %82, %85, %88, %91, %94, %97, %100, %103 in 0 : vector<16x32xf32>, vector<16x32xf32>, vector<16x32xf32>, vector<16x32xf32>, vector<16x32xf32>, vector<16x32xf32>, vector<16x32xf32>, vector<16x32xf32> -> vector<128x32xf32>
    %105 = arith.truncf %104 : vector<128x32xf32> to vector<128x32xbf16>
    %cst_112 = arith.constant dense<0.000000e+00> : vector<16x32xf32>
    %106 = tpu.matmul %6, %105, %cst_112 {dimension_numbers = #tpu.dot_dimension_numbers<[1], [0], [0], [1], [0, 0, 1, 1], [], []>} : vector<16x128xbf16>, vector<128x32xbf16>, vector<16x32xf32> -> vector<16x32xf32>
    %c2_113 = arith.constant 2 : index
    %c0_114 = arith.constant 0 : index
    %c0_115 = arith.constant 0 : index
    %107 = vector.load %arg6[%c2_113, %c0_114, %c0_115] : memref<3x32x32xbf16, #tpu.memory_space<vmem>>, vector<1x32x32xbf16>
    %108 = vector.shape_cast %107 : vector<1x32x32xbf16> to vector<32x32xbf16>
    %cst_116 = arith.constant dense<0.000000e+00> : vector<16x32xf32>
    %109 = tpu.matmul %79, %108, %cst_116 {dimension_numbers = #tpu.dot_dimension_numbers<[1], [0], [0], [1], [0, 0, 1, 1], [], []>} : vector<16x32xbf16>, vector<32x32xbf16>, vector<16x32xf32> -> vector<16x32xf32>
    %110 = arith.addf %106, %109 : vector<16x32xf32>
    %c2_117 = arith.constant 2 : index
    %c0_118 = arith.constant 0 : index
    %c0_119 = arith.constant 0 : index
    %111 = vector.load %arg7[%c2_117, %c0_118, %c0_119] : memref<3x1x32xf32, #tpu.memory_space<vmem>>, vector<1x1x32xf32>
    %112 = vector.shape_cast %111 : vector<1x1x32xf32> to vector<1x32xf32>
    %113 = vector.broadcast %112 : vector<1x32xf32> to vector<16x32xf32>
    %114 = arith.addf %110, %113 : vector<16x32xf32>
    %c0_120 = arith.constant 0 : index
    %c0_121 = arith.constant 0 : index
    %115 = vector.load %arg2[%c0_120, %c0_121] : memref<2x16xf32, #tpu.memory_space<vmem>>, vector<2x16xf32>
    %cst_122 = arith.constant 1.000000e+00 : f32
    %116 = vector.broadcast %cst_122 : f32 to vector<2x16xf32>
    %117 = arith.subf %116, %115 : vector<2x16xf32>
    %cst_123 = arith.constant -1.000000e+30 : f32
    %118 = vector.broadcast %cst_123 : f32 to vector<2x16xf32>
    %119 = arith.mulf %117, %118 : vector<2x16xf32>
    %cst_124 = arith.constant 0.000000e+00 : f32
    %120 = vector.broadcast %cst_124 : f32 to vector<2x32xf32>
    %cst_125 = arith.constant 0.000000e+00 : f32
    %121 = vector.broadcast %cst_125 : f32 to vector<2x32xf32>
    %cst_126 = arith.constant 0.000000e+00 : f32
    %122 = vector.broadcast %cst_126 : f32 to vector<2x32xf32>
    %cst_127 = arith.constant 0.000000e+00 : f32
    %123 = vector.broadcast %cst_127 : f32 to vector<2x32xf32>
    %c0_128 = arith.constant 0 : index
    %c0_129 = arith.constant 0 : index
    %124 = vector.load %arg8[%c0_128, %c0_129] : memref<32x128xf32, #tpu.memory_space<vmem>>, vector<32x128xf32>
    %cst_130 = arith.constant dense<0.000000e+00> : vector<2x128xf32>
    %125 = tpu.matmul %120, %124, %cst_130 {dimension_numbers = #tpu.dot_dimension_numbers<[1], [0], [0], [1], [0, 0, 1, 1], [], []>} : vector<2x32xf32>, vector<32x128xf32>, vector<2x128xf32> -> vector<2x128xf32>
    %c0_131 = arith.constant 0 : index
    %c0_132 = arith.constant 0 : index
    %126 = vector.load %arg9[%c0_131, %c0_132] : memref<32x128xf32, #tpu.memory_space<vmem>>, vector<32x128xf32>
    %cst_133 = arith.constant dense<0.000000e+00> : vector<2x128xf32>
    %127 = tpu.matmul %121, %126, %cst_133 {dimension_numbers = #tpu.dot_dimension_numbers<[1], [0], [0], [1], [0, 0, 1, 1], [], []>} : vector<2x32xf32>, vector<32x128xf32>, vector<2x128xf32> -> vector<2x128xf32>
    %128 = arith.addf %125, %127 : vector<2x128xf32>
    %c0_134 = arith.constant 0 : index
    %c0_135 = arith.constant 0 : index
    %129 = vector.load %arg10[%c0_134, %c0_135] : memref<32x128xf32, #tpu.memory_space<vmem>>, vector<32x128xf32>
    %cst_136 = arith.constant dense<0.000000e+00> : vector<2x128xf32>
    %130 = tpu.matmul %122, %129, %cst_136 {dimension_numbers = #tpu.dot_dimension_numbers<[1], [0], [0], [1], [0, 0, 1, 1], [], []>} : vector<2x32xf32>, vector<32x128xf32>, vector<2x128xf32> -> vector<2x128xf32>
    %131 = arith.addf %128, %130 : vector<2x128xf32>
    %c0_137 = arith.constant 0 : index
    %c0_138 = arith.constant 0 : index
    %132 = vector.load %arg11[%c0_137, %c0_138] : memref<1x128xf32, #tpu.memory_space<vmem>>, vector<1x128xf32>
    %133 = vector.broadcast %132 : vector<1x128xf32> to vector<2x128xf32>
    %134 = arith.addf %131, %133 : vector<2x128xf32>
    %135 = arith.negf %134 : vector<2x128xf32>
    %136 = math.exp %135 : vector<2x128xf32>
    %cst_139 = arith.constant 1.000000e+00 : f32
    %137 = vector.broadcast %cst_139 : f32 to vector<2x128xf32>
    %138 = arith.addf %137, %136 : vector<2x128xf32>
    %139 = arith.divf %137, %138 : vector<2x128xf32>
    %140 = math.tanh %134 : vector<2x128xf32>
    %141 = vector.extract_strided_slice %139 {offsets = [0, 0], sizes = [2, 32], strides = [1, 1]} : vector<2x128xf32> to vector<2x32xf32>
    %142 = vector.extract_strided_slice %139 {offsets = [0, 32], sizes = [2, 32], strides = [1, 1]} : vector<2x128xf32> to vector<2x32xf32>
    %143 = vector.extract_strided_slice %140 {offsets = [0, 64], sizes = [2, 32], strides = [1, 1]} : vector<2x128xf32> to vector<2x32xf32>
    %144 = vector.extract_strided_slice %139 {offsets = [0, 96], sizes = [2, 32], strides = [1, 1]} : vector<2x128xf32> to vector<2x32xf32>
    %145 = arith.mulf %142, %123 : vector<2x32xf32>
    %146 = arith.mulf %141, %143 : vector<2x32xf32>
    %147 = arith.addf %145, %146 : vector<2x32xf32>
    %148 = math.tanh %147 : vector<2x32xf32>
    %149 = arith.mulf %144, %148 : vector<2x32xf32>
    %cst_140 = arith.constant dense<0.000000e+00> : vector<2x16xf32>
    %150 = tpu.matmul %149, %114, %cst_140 {dimension_numbers = #tpu.dot_dimension_numbers<[1], [1], [0], [0], [0, 0, 1, 0], [], []>} : vector<2x32xf32>, vector<16x32xf32>, vector<2x16xf32> -> vector<2x16xf32>
    %151 = arith.addf %150, %119 : vector<2x16xf32>
    %cst_141 = arith.constant dense<0xFF800000> : vector<2xf32>
    %152 = vector.multi_reduction <maximumf>, %151, %cst_141 [1] : vector<2x16xf32> to vector<2xf32>
    %153 = vector.shape_cast %152 : vector<2xf32> to vector<2x1xf32>
    %154 = vector.broadcast %153 : vector<2x1xf32> to vector<2x16xf32>
    %155 = arith.subf %151, %154 : vector<2x16xf32>
    %156 = math.exp %155 : vector<2x16xf32>
    %157 = arith.mulf %156, %115 : vector<2x16xf32>
    %cst_142 = arith.constant dense<0.000000e+00> : vector<2xf32>
    %158 = vector.multi_reduction <add>, %157, %cst_142 [1] : vector<2x16xf32> to vector<2xf32>
    %159 = vector.shape_cast %158 : vector<2xf32> to vector<2x1xf32>
    %cst_143 = arith.constant 1.000000e-30 : f32
    %160 = vector.broadcast %cst_143 : f32 to vector<2x1xf32>
    %161 = arith.maximumf %159, %160 : vector<2x1xf32>
    %162 = tpu.reciprocal %161 {approx = true} : vector<2x1xf32> -> vector<2x1xf32>
    %163 = vector.broadcast %162 : vector<2x1xf32> to vector<2x16xf32>
    %164 = arith.mulf %157, %163 : vector<2x16xf32>
    %cst_144 = arith.constant dense<0.000000e+00> : vector<2x32xf32>
    %165 = tpu.matmul %164, %114, %cst_144 {dimension_numbers = #tpu.dot_dimension_numbers<[1], [0], [0], [1], [0, 0, 1, 1], [], []>} : vector<2x16xf32>, vector<16x32xf32>, vector<2x32xf32> -> vector<2x32xf32>
    %c0_145 = arith.constant 0 : index
    %c0_146 = arith.constant 0 : index
    %166 = vector.load %arg8[%c0_145, %c0_146] : memref<32x128xf32, #tpu.memory_space<vmem>>, vector<32x128xf32>
    %cst_147 = arith.constant dense<0.000000e+00> : vector<2x128xf32>
    %167 = tpu.matmul %149, %166, %cst_147 {dimension_numbers = #tpu.dot_dimension_numbers<[1], [0], [0], [1], [0, 0, 1, 1], [], []>} : vector<2x32xf32>, vector<32x128xf32>, vector<2x128xf32> -> vector<2x128xf32>
    %c0_148 = arith.constant 0 : index
    %c0_149 = arith.constant 0 : index
    %168 = vector.load %arg9[%c0_148, %c0_149] : memref<32x128xf32, #tpu.memory_space<vmem>>, vector<32x128xf32>
    %cst_150 = arith.constant dense<0.000000e+00> : vector<2x128xf32>
    %169 = tpu.matmul %165, %168, %cst_150 {dimension_numbers = #tpu.dot_dimension_numbers<[1], [0], [0], [1], [0, 0, 1, 1], [], []>} : vector<2x32xf32>, vector<32x128xf32>, vector<2x128xf32> -> vector<2x128xf32>
    %170 = arith.addf %167, %169 : vector<2x128xf32>
    %c0_151 = arith.constant 0 : index
    %c0_152 = arith.constant 0 : index
    %171 = vector.load %arg10[%c0_151, %c0_152] : memref<32x128xf32, #tpu.memory_space<vmem>>, vector<32x128xf32>
    %cst_153 = arith.constant dense<0.000000e+00> : vector<2x128xf32>
    %172 = tpu.matmul %149, %171, %cst_153 {dimension_numbers = #tpu.dot_dimension_numbers<[1], [0], [0], [1], [0, 0, 1, 1], [], []>} : vector<2x32xf32>, vector<32x128xf32>, vector<2x128xf32> -> vector<2x128xf32>
    %173 = arith.addf %170, %172 : vector<2x128xf32>
    %c0_154 = arith.constant 0 : index
    %c0_155 = arith.constant 0 : index
    %174 = vector.load %arg11[%c0_154, %c0_155] : memref<1x128xf32, #tpu.memory_space<vmem>>, vector<1x128xf32>
    %175 = vector.broadcast %174 : vector<1x128xf32> to vector<2x128xf32>
    %176 = arith.addf %173, %175 : vector<2x128xf32>
    %177 = arith.negf %176 : vector<2x128xf32>
    %178 = math.exp %177 : vector<2x128xf32>
    %cst_156 = arith.constant 1.000000e+00 : f32
    %179 = vector.broadcast %cst_156 : f32 to vector<2x128xf32>
    %180 = arith.addf %179, %178 : vector<2x128xf32>
    %181 = arith.divf %179, %180 : vector<2x128xf32>
    %182 = math.tanh %176 : vector<2x128xf32>
    %183 = vector.extract_strided_slice %181 {offsets = [0, 0], sizes = [2, 32], strides = [1, 1]} : vector<2x128xf32> to vector<2x32xf32>
    %184 = vector.extract_strided_slice %181 {offsets = [0, 32], sizes = [2, 32], strides = [1, 1]} : vector<2x128xf32> to vector<2x32xf32>
    %185 = vector.extract_strided_slice %182 {offsets = [0, 64], sizes = [2, 32], strides = [1, 1]} : vector<2x128xf32> to vector<2x32xf32>
    %186 = vector.extract_strided_slice %181 {offsets = [0, 96], sizes = [2, 32], strides = [1, 1]} : vector<2x128xf32> to vector<2x32xf32>
    %187 = arith.mulf %184, %147 : vector<2x32xf32>
    %188 = arith.mulf %183, %185 : vector<2x32xf32>
    %189 = arith.addf %187, %188 : vector<2x32xf32>
    %190 = math.tanh %189 : vector<2x32xf32>
    %191 = arith.mulf %186, %190 : vector<2x32xf32>
    %cst_157 = arith.constant dense<0.000000e+00> : vector<2x16xf32>
    %192 = tpu.matmul %191, %114, %cst_157 {dimension_numbers = #tpu.dot_dimension_numbers<[1], [1], [0], [0], [0, 0, 1, 0], [], []>} : vector<2x32xf32>, vector<16x32xf32>, vector<2x16xf32> -> vector<2x16xf32>
    %193 = arith.addf %192, %119 : vector<2x16xf32>
    %cst_158 = arith.constant dense<0xFF800000> : vector<2xf32>
    %194 = vector.multi_reduction <maximumf>, %193, %cst_158 [1] : vector<2x16xf32> to vector<2xf32>
    %195 = vector.shape_cast %194 : vector<2xf32> to vector<2x1xf32>
    %196 = vector.broadcast %195 : vector<2x1xf32> to vector<2x16xf32>
    %197 = arith.subf %193, %196 : vector<2x16xf32>
    %198 = math.exp %197 : vector<2x16xf32>
    %199 = arith.mulf %198, %115 : vector<2x16xf32>
    %cst_159 = arith.constant dense<0.000000e+00> : vector<2xf32>
    %200 = vector.multi_reduction <add>, %199, %cst_159 [1] : vector<2x16xf32> to vector<2xf32>
    %201 = vector.shape_cast %200 : vector<2xf32> to vector<2x1xf32>
    %cst_160 = arith.constant 1.000000e-30 : f32
    %202 = vector.broadcast %cst_160 : f32 to vector<2x1xf32>
    %203 = arith.maximumf %201, %202 : vector<2x1xf32>
    %204 = tpu.reciprocal %203 {approx = true} : vector<2x1xf32> -> vector<2x1xf32>
    %205 = vector.broadcast %204 : vector<2x1xf32> to vector<2x16xf32>
    %206 = arith.mulf %199, %205 : vector<2x16xf32>
    %cst_161 = arith.constant dense<0.000000e+00> : vector<2x32xf32>
    %207 = tpu.matmul %206, %114, %cst_161 {dimension_numbers = #tpu.dot_dimension_numbers<[1], [0], [0], [1], [0, 0, 1, 1], [], []>} : vector<2x16xf32>, vector<16x32xf32>, vector<2x32xf32> -> vector<2x32xf32>
    %c0_162 = arith.constant 0 : index
    %c0_163 = arith.constant 0 : index
    %208 = vector.load %arg8[%c0_162, %c0_163] : memref<32x128xf32, #tpu.memory_space<vmem>>, vector<32x128xf32>
    %cst_164 = arith.constant dense<0.000000e+00> : vector<2x128xf32>
    %209 = tpu.matmul %191, %208, %cst_164 {dimension_numbers = #tpu.dot_dimension_numbers<[1], [0], [0], [1], [0, 0, 1, 1], [], []>} : vector<2x32xf32>, vector<32x128xf32>, vector<2x128xf32> -> vector<2x128xf32>
    %c0_165 = arith.constant 0 : index
    %c0_166 = arith.constant 0 : index
    %210 = vector.load %arg9[%c0_165, %c0_166] : memref<32x128xf32, #tpu.memory_space<vmem>>, vector<32x128xf32>
    %cst_167 = arith.constant dense<0.000000e+00> : vector<2x128xf32>
    %211 = tpu.matmul %207, %210, %cst_167 {dimension_numbers = #tpu.dot_dimension_numbers<[1], [0], [0], [1], [0, 0, 1, 1], [], []>} : vector<2x32xf32>, vector<32x128xf32>, vector<2x128xf32> -> vector<2x128xf32>
    %212 = arith.addf %209, %211 : vector<2x128xf32>
    %c0_168 = arith.constant 0 : index
    %c0_169 = arith.constant 0 : index
    %213 = vector.load %arg10[%c0_168, %c0_169] : memref<32x128xf32, #tpu.memory_space<vmem>>, vector<32x128xf32>
    %cst_170 = arith.constant dense<0.000000e+00> : vector<2x128xf32>
    %214 = tpu.matmul %191, %213, %cst_170 {dimension_numbers = #tpu.dot_dimension_numbers<[1], [0], [0], [1], [0, 0, 1, 1], [], []>} : vector<2x32xf32>, vector<32x128xf32>, vector<2x128xf32> -> vector<2x128xf32>
    %215 = arith.addf %212, %214 : vector<2x128xf32>
    %c0_171 = arith.constant 0 : index
    %c0_172 = arith.constant 0 : index
    %216 = vector.load %arg11[%c0_171, %c0_172] : memref<1x128xf32, #tpu.memory_space<vmem>>, vector<1x128xf32>
    %217 = vector.broadcast %216 : vector<1x128xf32> to vector<2x128xf32>
    %218 = arith.addf %215, %217 : vector<2x128xf32>
    %219 = arith.negf %218 : vector<2x128xf32>
    %220 = math.exp %219 : vector<2x128xf32>
    %cst_173 = arith.constant 1.000000e+00 : f32
    %221 = vector.broadcast %cst_173 : f32 to vector<2x128xf32>
    %222 = arith.addf %221, %220 : vector<2x128xf32>
    %223 = arith.divf %221, %222 : vector<2x128xf32>
    %224 = math.tanh %218 : vector<2x128xf32>
    %225 = vector.extract_strided_slice %223 {offsets = [0, 0], sizes = [2, 32], strides = [1, 1]} : vector<2x128xf32> to vector<2x32xf32>
    %226 = vector.extract_strided_slice %223 {offsets = [0, 32], sizes = [2, 32], strides = [1, 1]} : vector<2x128xf32> to vector<2x32xf32>
    %227 = vector.extract_strided_slice %224 {offsets = [0, 64], sizes = [2, 32], strides = [1, 1]} : vector<2x128xf32> to vector<2x32xf32>
    %228 = vector.extract_strided_slice %223 {offsets = [0, 96], sizes = [2, 32], strides = [1, 1]} : vector<2x128xf32> to vector<2x32xf32>
    %229 = arith.mulf %226, %189 : vector<2x32xf32>
    %230 = arith.mulf %225, %227 : vector<2x32xf32>
    %231 = arith.addf %229, %230 : vector<2x32xf32>
    %232 = math.tanh %231 : vector<2x32xf32>
    %233 = arith.mulf %228, %232 : vector<2x32xf32>
    %cst_174 = arith.constant dense<0.000000e+00> : vector<2x16xf32>
    %234 = tpu.matmul %233, %114, %cst_174 {dimension_numbers = #tpu.dot_dimension_numbers<[1], [1], [0], [0], [0, 0, 1, 0], [], []>} : vector<2x32xf32>, vector<16x32xf32>, vector<2x16xf32> -> vector<2x16xf32>
    %235 = arith.addf %234, %119 : vector<2x16xf32>
    %cst_175 = arith.constant dense<0xFF800000> : vector<2xf32>
    %236 = vector.multi_reduction <maximumf>, %235, %cst_175 [1] : vector<2x16xf32> to vector<2xf32>
    %237 = vector.shape_cast %236 : vector<2xf32> to vector<2x1xf32>
    %238 = vector.broadcast %237 : vector<2x1xf32> to vector<2x16xf32>
    %239 = arith.subf %235, %238 : vector<2x16xf32>
    %240 = math.exp %239 : vector<2x16xf32>
    %241 = arith.mulf %240, %115 : vector<2x16xf32>
    %cst_176 = arith.constant dense<0.000000e+00> : vector<2xf32>
    %242 = vector.multi_reduction <add>, %241, %cst_176 [1] : vector<2x16xf32> to vector<2xf32>
    %243 = vector.shape_cast %242 : vector<2xf32> to vector<2x1xf32>
    %cst_177 = arith.constant 1.000000e-30 : f32
    %244 = vector.broadcast %cst_177 : f32 to vector<2x1xf32>
    %245 = arith.maximumf %243, %244 : vector<2x1xf32>
    %246 = tpu.reciprocal %245 {approx = true} : vector<2x1xf32> -> vector<2x1xf32>
    %247 = vector.broadcast %246 : vector<2x1xf32> to vector<2x16xf32>
    %248 = arith.mulf %241, %247 : vector<2x16xf32>
    %cst_178 = arith.constant dense<0.000000e+00> : vector<2x32xf32>
    %249 = tpu.matmul %248, %114, %cst_178 {dimension_numbers = #tpu.dot_dimension_numbers<[1], [0], [0], [1], [0, 0, 1, 1], [], []>} : vector<2x16xf32>, vector<16x32xf32>, vector<2x32xf32> -> vector<2x32xf32>
    %c0_179 = arith.constant 0 : index
    %c0_180 = arith.constant 0 : index
    %250 = vector.load %arg8[%c0_179, %c0_180] : memref<32x128xf32, #tpu.memory_space<vmem>>, vector<32x128xf32>
    %cst_181 = arith.constant dense<0.000000e+00> : vector<2x128xf32>
    %251 = tpu.matmul %233, %250, %cst_181 {dimension_numbers = #tpu.dot_dimension_numbers<[1], [0], [0], [1], [0, 0, 1, 1], [], []>} : vector<2x32xf32>, vector<32x128xf32>, vector<2x128xf32> -> vector<2x128xf32>
    %c0_182 = arith.constant 0 : index
    %c0_183 = arith.constant 0 : index
    %252 = vector.load %arg9[%c0_182, %c0_183] : memref<32x128xf32, #tpu.memory_space<vmem>>, vector<32x128xf32>
    %cst_184 = arith.constant dense<0.000000e+00> : vector<2x128xf32>
    %253 = tpu.matmul %249, %252, %cst_184 {dimension_numbers = #tpu.dot_dimension_numbers<[1], [0], [0], [1], [0, 0, 1, 1], [], []>} : vector<2x32xf32>, vector<32x128xf32>, vector<2x128xf32> -> vector<2x128xf32>
    %254 = arith.addf %251, %253 : vector<2x128xf32>
    %c0_185 = arith.constant 0 : index
    %c0_186 = arith.constant 0 : index
    %255 = vector.load %arg10[%c0_185, %c0_186] : memref<32x128xf32, #tpu.memory_space<vmem>>, vector<32x128xf32>
    %cst_187 = arith.constant dense<0.000000e+00> : vector<2x128xf32>
    %256 = tpu.matmul %233, %255, %cst_187 {dimension_numbers = #tpu.dot_dimension_numbers<[1], [0], [0], [1], [0, 0, 1, 1], [], []>} : vector<2x32xf32>, vector<32x128xf32>, vector<2x128xf32> -> vector<2x128xf32>
    %257 = arith.addf %254, %256 : vector<2x128xf32>
    %c0_188 = arith.constant 0 : index
    %c0_189 = arith.constant 0 : index
    %258 = vector.load %arg11[%c0_188, %c0_189] : memref<1x128xf32, #tpu.memory_space<vmem>>, vector<1x128xf32>
    %259 = vector.broadcast %258 : vector<1x128xf32> to vector<2x128xf32>
    %260 = arith.addf %257, %259 : vector<2x128xf32>
    %261 = arith.negf %260 : vector<2x128xf32>
    %262 = math.exp %261 : vector<2x128xf32>
    %cst_190 = arith.constant 1.000000e+00 : f32
    %263 = vector.broadcast %cst_190 : f32 to vector<2x128xf32>
    %264 = arith.addf %263, %262 : vector<2x128xf32>
    %265 = arith.divf %263, %264 : vector<2x128xf32>
    %266 = math.tanh %260 : vector<2x128xf32>
    %267 = vector.extract_strided_slice %265 {offsets = [0, 0], sizes = [2, 32], strides = [1, 1]} : vector<2x128xf32> to vector<2x32xf32>
    %268 = vector.extract_strided_slice %265 {offsets = [0, 32], sizes = [2, 32], strides = [1, 1]} : vector<2x128xf32> to vector<2x32xf32>
    %269 = vector.extract_strided_slice %266 {offsets = [0, 64], sizes = [2, 32], strides = [1, 1]} : vector<2x128xf32> to vector<2x32xf32>
    %270 = vector.extract_strided_slice %265 {offsets = [0, 96], sizes = [2, 32], strides = [1, 1]} : vector<2x128xf32> to vector<2x32xf32>
    %271 = arith.mulf %268, %231 : vector<2x32xf32>
    %272 = arith.mulf %267, %269 : vector<2x32xf32>
    %273 = arith.addf %271, %272 : vector<2x32xf32>
    %274 = math.tanh %273 : vector<2x32xf32>
    %275 = arith.mulf %270, %274 : vector<2x32xf32>
    %cst_191 = arith.constant dense<0.000000e+00> : vector<2x16xf32>
    %276 = tpu.matmul %275, %114, %cst_191 {dimension_numbers = #tpu.dot_dimension_numbers<[1], [1], [0], [0], [0, 0, 1, 0], [], []>} : vector<2x32xf32>, vector<16x32xf32>, vector<2x16xf32> -> vector<2x16xf32>
    %277 = arith.addf %276, %119 : vector<2x16xf32>
    %cst_192 = arith.constant dense<0xFF800000> : vector<2xf32>
    %278 = vector.multi_reduction <maximumf>, %277, %cst_192 [1] : vector<2x16xf32> to vector<2xf32>
    %279 = vector.shape_cast %278 : vector<2xf32> to vector<2x1xf32>
    %280 = vector.broadcast %279 : vector<2x1xf32> to vector<2x16xf32>
    %281 = arith.subf %277, %280 : vector<2x16xf32>
    %282 = math.exp %281 : vector<2x16xf32>
    %283 = arith.mulf %282, %115 : vector<2x16xf32>
    %cst_193 = arith.constant dense<0.000000e+00> : vector<2xf32>
    %284 = vector.multi_reduction <add>, %283, %cst_193 [1] : vector<2x16xf32> to vector<2xf32>
    %285 = vector.shape_cast %284 : vector<2xf32> to vector<2x1xf32>
    %cst_194 = arith.constant 1.000000e-30 : f32
    %286 = vector.broadcast %cst_194 : f32 to vector<2x1xf32>
    %287 = arith.maximumf %285, %286 : vector<2x1xf32>
    %288 = tpu.reciprocal %287 {approx = true} : vector<2x1xf32> -> vector<2x1xf32>
    %289 = vector.broadcast %288 : vector<2x1xf32> to vector<2x16xf32>
    %290 = arith.mulf %283, %289 : vector<2x16xf32>
    %cst_195 = arith.constant dense<0.000000e+00> : vector<2x32xf32>
    %291 = tpu.matmul %290, %114, %cst_195 {dimension_numbers = #tpu.dot_dimension_numbers<[1], [0], [0], [1], [0, 0, 1, 1], [], []>} : vector<2x16xf32>, vector<16x32xf32>, vector<2x32xf32> -> vector<2x32xf32>
    %c0_196 = arith.constant 0 : index
    %c0_197 = arith.constant 0 : index
    %292 = vector.load %arg12[%c0_196, %c0_197] : memref<32x32xf32, #tpu.memory_space<vmem>>, vector<32x32xf32>
    %cst_198 = arith.constant dense<0.000000e+00> : vector<2x32xf32>
    %293 = tpu.matmul %275, %292, %cst_198 {dimension_numbers = #tpu.dot_dimension_numbers<[1], [0], [0], [1], [0, 0, 1, 1], [], []>} : vector<2x32xf32>, vector<32x32xf32>, vector<2x32xf32> -> vector<2x32xf32>
    %c0_199 = arith.constant 0 : index
    %c0_200 = arith.constant 0 : index
    %294 = vector.load %arg13[%c0_199, %c0_200] : memref<32x32xf32, #tpu.memory_space<vmem>>, vector<32x32xf32>
    %cst_201 = arith.constant dense<0.000000e+00> : vector<2x32xf32>
    %295 = tpu.matmul %291, %294, %cst_201 {dimension_numbers = #tpu.dot_dimension_numbers<[1], [0], [0], [1], [0, 0, 1, 1], [], []>} : vector<2x32xf32>, vector<32x32xf32>, vector<2x32xf32> -> vector<2x32xf32>
    %296 = arith.addf %293, %295 : vector<2x32xf32>
    %c0_202 = arith.constant 0 : index
    %c0_203 = arith.constant 0 : index
    %297 = vector.load %arg14[%c0_202, %c0_203] : memref<1x32xf32, #tpu.memory_space<vmem>>, vector<1x32xf32>
    %298 = vector.broadcast %297 : vector<1x32xf32> to vector<2x32xf32>
    %299 = arith.addf %296, %298 : vector<2x32xf32>
    %cst_204 = arith.constant 0.000000e+00 : f32
    %300 = vector.broadcast %cst_204 : f32 to vector<2x32xf32>
    %301 = arith.maximumf %299, %300 : vector<2x32xf32>
    %c0_205 = arith.constant 0 : index
    %c0_206 = arith.constant 0 : index
    %302 = vector.load %arg15[%c0_205, %c0_206] : memref<32x8xf32, #tpu.memory_space<vmem>>, vector<32x8xf32>
    %cst_207 = arith.constant dense<0.000000e+00> : vector<2x8xf32>
    %303 = tpu.matmul %301, %302, %cst_207 {dimension_numbers = #tpu.dot_dimension_numbers<[1], [0], [0], [1], [0, 0, 1, 1], [], []>} : vector<2x32xf32>, vector<32x8xf32>, vector<2x8xf32> -> vector<2x8xf32>
    %c0_208 = arith.constant 0 : index
    %c0_209 = arith.constant 0 : index
    %304 = vector.load %arg16[%c0_208, %c0_209] : memref<1x8xf32, #tpu.memory_space<vmem>>, vector<1x8xf32>
    %305 = vector.broadcast %304 : vector<1x8xf32> to vector<2x8xf32>
    %306 = arith.addf %303, %305 : vector<2x8xf32>
    %c0_210 = arith.constant 0 : index
    %c0_211 = arith.constant 0 : index
    %307 = vector.load %arg17[%c0_210, %c0_211] : memref<2x8xf32, #tpu.memory_space<vmem>>, vector<2x8xf32>
    tpu.vector_store %arg17[%c0_210, %c0_211], %306 {strides = array<i32>} : memref<2x8xf32, #tpu.memory_space<vmem>>, vector<2x8xf32>,
    return
  }
}

</mosaic_0001>

<llo_original>
// kernel: mpnn_prop_pred_pallas.1
$region0: #{mpnn_prop_pred_pallas.1}
  #allocation0 [shape = 'u32[]', space=smem, size = 0x4, offset = 0x4, fixed_abs, tag = 'smem constant byte address 0x4 - core index']
  #allocation1 [shape = 'u32[144,128]{1,0:T(1,128)}', space=vmem, size = 0x12000, scoped, tag = 'internal scratch']
  %s0 = inlined_call_operand.vmem [shape: bf16[16,128], index: 0, kind: input, shape index: {}]
  %s1 = inlined_call_operand.vmem [shape: bf16[16,128], index: 1, kind: input, shape index: {}]
  %s2 = inlined_call_operand.vmem [shape: f32[2,16], index: 2, kind: input, shape index: {}]
  %s3 = inlined_call_operand.vmem [shape: bf16[8,32,32], index: 3, kind: input, shape index: {}]
  %s4 = inlined_call_operand.vmem [shape: bf16[128,32], index: 4, kind: input, shape index: {}]
  %s5 = inlined_call_operand.vmem [shape: f32[1,32], index: 5, kind: input, shape index: {}]
  %s6 = inlined_call_operand.vmem [shape: bf16[3,32,32], index: 6, kind: input, shape index: {}]
  %s7 = inlined_call_operand.vmem [shape: f32[3,1,32], index: 7, kind: input, shape index: {}]
  %s8 = inlined_call_operand.vmem [shape: f32[32,128], index: 8, kind: input, shape index: {}]
  %s9 = inlined_call_operand.vmem [shape: f32[32,128], index: 9, kind: input, shape index: {}]
  %s10 = inlined_call_operand.vmem [shape: f32[32,128], index: 10, kind: input, shape index: {}]
  %s11 = inlined_call_operand.vmem [shape: f32[1,128], index: 11, kind: input, shape index: {}]
  %s12 = inlined_call_operand.vmem [shape: f32[32,32], index: 12, kind: input, shape index: {}]
  %s13 = inlined_call_operand.vmem [shape: f32[32,32], index: 13, kind: input, shape index: {}]
  %s14 = inlined_call_operand.vmem [shape: f32[1,32], index: 14, kind: input, shape index: {}]
  %s15 = inlined_call_operand.vmem [shape: f32[32,8], index: 15, kind: input, shape index: {}]
  %s16 = inlined_call_operand.vmem [shape: f32[1,8], index: 16, kind: input, shape index: {}]
  %s17 = inlined_call_operand.hbm [shape: f32[2,8], index: 17, kind: output, shape index: {}]
  %s18 = sld [smem:[#allocation0]]
  $region78: #{mpnn_prop_pred_pallas.1} parent=0
    _
  %s20 = ssub.s32 1, %s18
  %s21 = scalar_select 0, %s20, %s18
  $region1: #{mpnn_prop_pred_pallas.1} parent=0
    #allocation2 [shape = 'u8[1024]{0}', space=vmem, size = 0x400, scoped, tag = 'output window, operand 0, single buffered']
    #allocation3 [shape = 's32[1]{0}', space=sflag, size = 0x4, scoped, tag = 'scoped memory for mpnn_prop_pred_pallas.1']
    %22 = vsyncpa [#allocation3], 0
    // Predicated region
    $region2: #{mpnn_prop_pred_pallas.1} parent=1 // pred_check
      _
    $region3: #{mpnn_prop_pred_pallas.1} parent=1 // pred_check_branch
      %24 = sbr.rel (0) target = $region5
    $region4: #{mpnn_prop_pred_pallas.1} parent=1 // pred_region
      _
    $region5: #{mpnn_prop_pred_pallas.1} parent=1 // pred_fallthru
      _
    // Predicated region
    $region6: #{mpnn_prop_pred_pallas.1} parent=1 // pred_check
      _
    $region7: #{mpnn_prop_pred_pallas.1} parent=1 // pred_check_branch
      %26 = sbr.rel (0) target = $region9
    $region8: #{mpnn_prop_pred_pallas.1} parent=1 // pred_region
      _
    $region9: #{mpnn_prop_pred_pallas.1} parent=1 // pred_fallthru
      _
    // Predicated region
    $region10: #{mpnn_prop_pred_pallas.1} parent=1 // pred_check
      _
    $region11: #{mpnn_prop_pred_pallas.1} parent=1 // pred_check_branch
      %28 = sbr.rel (0) target = $region13
    $region12: #{mpnn_prop_pred_pallas.1} parent=1 // pred_region
      _
    $region13: #{mpnn_prop_pred_pallas.1} parent=1 // pred_fallthru
      _
    // Predicated region
    $region14: #{mpnn_prop_pred_pallas.1} parent=1 // pred_check
      _
    $region15: #{mpnn_prop_pred_pallas.1} parent=1 // pred_check_branch
      %30 = sbr.rel (0) target = $region17
    $region16: #{mpnn_prop_pred_pallas.1} parent=1 // pred_region
      _
    $region17: #{mpnn_prop_pred_pallas.1} parent=1 // pred_fallthru
      _
    // Predicated region
    $region18: #{mpnn_prop_pred_pallas.1} parent=1 // pred_check
      _
    $region19: #{mpnn_prop_pred_pallas.1} parent=1 // pred_check_branch
      %32 = sbr.rel (0) target = $region21
    $region20: #{mpnn_prop_pred_pallas.1} parent=1 // pred_region
      _
    $region21: #{mpnn_prop_pred_pallas.1} parent=1 // pred_fallthru
      _
    // Predicated region
    $region22: #{mpnn_prop_pred_pallas.1} parent=1 // pred_check
      _
    $region23: #{mpnn_prop_pred_pallas.1} parent=1 // pred_check_branch
      %34 = sbr.rel (0) target = $region25
    $region24: #{mpnn_prop_pred_pallas.1} parent=1 // pred_region
      _
    $region25: #{mpnn_prop_pred_pallas.1} parent=1 // pred_fallthru
      _
    // Predicated region
    $region26: #{mpnn_prop_pred_pallas.1} parent=1 // pred_check
      _
    $region27: #{mpnn_prop_pred_pallas.1} parent=1 // pred_check_branch
      %36 = sbr.rel (0) target = $region29
    $region28: #{mpnn_prop_pred_pallas.1} parent=1 // pred_region
      _
    $region29: #{mpnn_prop_pred_pallas.1} parent=1 // pred_fallthru
      _
    // Predicated region
    $region30: #{mpnn_prop_pred_pallas.1} parent=1 // pred_check
      _
    $region31: #{mpnn_prop_pred_pallas.1} parent=1 // pred_check_branch
      %38 = sbr.rel (0) target = $region33
    $region32: #{mpnn_prop_pred_pallas.1} parent=1 // pred_region
      _
    $region33: #{mpnn_prop_pred_pallas.1} parent=1 // pred_fallthru
      _
    // Predicated region
    $region34: #{mpnn_prop_pred_pallas.1} parent=1 // pred_check
      _
    $region35: #{mpnn_prop_pred_pallas.1} parent=1 // pred_check_branch
      %40 = sbr.rel (0) target = $region37
    $region36: #{mpnn_prop_pred_pallas.1} parent=1 // pred_region
      _
    $region37: #{mpnn_prop_pred_pallas.1} parent=1 // pred_fallthru
      _
    // Predicated region
    $region38: #{mpnn_prop_pred_pallas.1} parent=1 // pred_check
      _
    $region39: #{mpnn_prop_pred_pallas.1} parent=1 // pred_check_branch
      %42 = sbr.rel (0) target = $region41
    $region40: #{mpnn_prop_pred_pallas.1} parent=1 // pred_region
      _
    $region41: #{mpnn_prop_pred_pallas.1} parent=1 // pred_fallthru
      _
    // Predicated region
    $region42: #{mpnn_prop_pred_pallas.1} parent=1 // pred_check
      _
    $region43: #{mpnn_prop_pred_pallas.1} parent=1 // pred_check_branch
      %44 = sbr.rel (0) target = $region45
    $region44: #{mpnn_prop_pred_pallas.1} parent=1 // pred_region
      _
    $region45: #{mpnn_prop_pred_pallas.1} parent=1 // pred_fallthru
      _
    // Predicated region
    $region46: #{mpnn_prop_pred_pallas.1} parent=1 // pred_check
      _
    $region47: #{mpnn_prop_pred_pallas.1} parent=1 // pred_check_branch
      %46 = sbr.rel (0) target = $region49
    $region48: #{mpnn_prop_pred_pallas.1} parent=1 // pred_region
      _
    $region49: #{mpnn_prop_pred_pallas.1} parent=1 // pred_fallthru
      _
    // Predicated region
    $region50: #{mpnn_prop_pred_pallas.1} parent=1 // pred_check
      _
    $region51: #{mpnn_prop_pred_pallas.1} parent=1 // pred_check_branch
      %48 = sbr.rel (0) target = $region53
    $region52: #{mpnn_prop_pred_pallas.1} parent=1 // pred_region
      _
    $region53: #{mpnn_prop_pred_pallas.1} parent=1 // pred_fallthru
      _
    // Predicated region
    $region54: #{mpnn_prop_pred_pallas.1} parent=1 // pred_check
      _
    $region55: #{mpnn_prop_pred_pallas.1} parent=1 // pred_check_branch
      %50 = sbr.rel (0) target = $region57
    $region56: #{mpnn_prop_pred_pallas.1} parent=1 // pred_region
      _
    $region57: #{mpnn_prop_pred_pallas.1} parent=1 // pred_fallthru
      _
    // Predicated region
    $region58: #{mpnn_prop_pred_pallas.1} parent=1 // pred_check
      _
    $region59: #{mpnn_prop_pred_pallas.1} parent=1 // pred_check_branch
      %52 = sbr.rel (0) target = $region61
    $region60: #{mpnn_prop_pred_pallas.1} parent=1 // pred_region
      _
    $region61: #{mpnn_prop_pred_pallas.1} parent=1 // pred_fallthru
      _
    // Predicated region
    $region62: #{mpnn_prop_pred_pallas.1} parent=1 // pred_check
      _
    $region63: #{mpnn_prop_pred_pallas.1} parent=1 // pred_check_branch
      %54 = sbr.rel (0) target = $region65
    $region64: #{mpnn_prop_pred_pallas.1} parent=1 // pred_region
      _
    $region65: #{mpnn_prop_pred_pallas.1} parent=1 // pred_fallthru
      _
    // Predicated region
    $region66: #{mpnn_prop_pred_pallas.1} parent=1 // pred_check
      _
    $region67: #{mpnn_prop_pred_pallas.1} parent=1 // pred_check_branch
      %56 = sbr.rel (0) target = $region69
    $region68: #{mpnn_prop_pred_pallas.1} parent=1 // pred_region
      _
    $region69: #{mpnn_prop_pred_pallas.1} parent=1 // pred_fallthru
      _
    %v58 = vld [vmem:[%s0] sm:$0xf]
    %v59 = vld [vmem:[%s0 + $0x4] sm:$0xf]
    %v60 = vld [vmem:[%s4] sm:$0xf]
    %v61 = vld [vmem:[%s4 + $0x4] sm:$0xf]
    %v62 = vld [vmem:[%s4 + $0x8] sm:$0xf]
    %v63 = vld [vmem:[%s4 + $0xc] sm:$0xf]
    %v64 = vld [vmem:[%s4 + $0x10] sm:$0xf]
    %v65 = vld [vmem:[%s4 + $0x14] sm:$0xf]
    %v66 = vld [vmem:[%s4 + $0x18] sm:$0xf]
    %v67 = vld [vmem:[%s4 + $0x1c] sm:$0xf]
    %v68 = vld [vmem:[%s4 + $0x20] sm:$0xf]
    %v69 = vld [vmem:[%s4 + $0x24] sm:$0xf]
    %v70 = vld [vmem:[%s4 + $0x28] sm:$0xf]
    %v71 = vld [vmem:[%s4 + $0x2c] sm:$0xf]
    %v72 = vld [vmem:[%s4 + $0x30] sm:$0xf]
    %v73 = vld [vmem:[%s4 + $0x34] sm:$0xf]
    %v74 = vld [vmem:[%s4 + $0x38] sm:$0xf]
    %v75 = vld [vmem:[%s4 + $0x3c] sm:$0xf]
    %v76 = vld [vmem:[%s5] sm:$0x1]
    %v78 = vlaneseq
    %v79 = vshrl.u32 %v78, 7
    %v80 = vsub.s32 0, %v79
    %v81 = vrot.slane %v76, %v80
    %v85 = vunpack.c.l.b16 %v58
    %v86 = vunpack.c.l.b16 %v59
    %v87 = vpack.c.b16 %v86, %v85
    %v105 = vunpack.c.l.b16 %v60
    %v106 = vunpack.c.l.b16 %v61
    %v107 = vunpack.c.l.b16 %v62
    %v108 = vunpack.c.l.b16 %v63
    %v109 = vunpack.c.l.b16 %v64
    %v110 = vunpack.c.l.b16 %v65
    %v111 = vunpack.c.l.b16 %v66
    %v112 = vunpack.c.l.b16 %v67
    %v113 = vunpack.c.l.b16 %v68
    %v114 = vunpack.c.l.b16 %v69
    %v115 = vunpack.c.l.b16 %v70
    %v116 = vunpack.c.l.b16 %v71
    %v117 = vunpack.c.l.b16 %v72
    %v118 = vunpack.c.l.b16 %v73
    %v119 = vunpack.c.l.b16 %v74
    %v120 = vunpack.c.l.b16 %v75
    %v121 = vpack.c.b16 %v106, %v105
    %v122 = vpack.c.b16 %v108, %v107
    %v123 = vpack.c.b16 %v110, %v109
    %v124 = vpack.c.b16 %v112, %v111
    %v125 = vpack.c.b16 %v114, %v113
    %v126 = vpack.c.b16 %v116, %v115
    %v127 = vpack.c.b16 %v118, %v117
    %v128 = vpack.c.b16 %v120, %v119
    %137 = vmatprep.subr.bf16.mxu0 0
    %138 = vmatpush1.bf16.msra.mxu0 %v121
    %139 = vmatprep.subr.bf16.mxu0 0
    %140 = vmatpush1.bf16.msra.mxu0 %v122
    %141 = vmatprep.subr.bf16.mxu0 0
    %142 = vmatpush1.bf16.msra.mxu0 %v123
    %143 = vmatprep.subr.bf16.mxu0 0
    %144 = vmatpush1.bf16.msra.mxu0 %v124
    %145 = vmatprep.subr.bf16.mxu0 0
    %146 = vmatpush1.bf16.msra.mxu0 %v125
    %147 = vmatprep.subr.bf16.mxu0 0
    %148 = vmatpush1.bf16.msra.mxu0 %v126
    %149 = vmatprep.subr.bf16.mxu0 0
    %150 = vmatpush1.bf16.msra.mxu0 %v127
    %151 = vmatprep.subr.bf16.mxu0 0
    %152 = vmatpush1.bf16.msra.mxu0 %v128
    %153 = vmatprep.subr.bf16.mxu0 0
    %154 = vmatpush1.bf16.msra.mxu0 0
    %155 = vmatprep.subr.bf16.mxu0 0
    %156 = vmatpush1.bf16.msra.mxu0 0
    %157 = vmatprep.subr.bf16.mxu0 0
    %158 = vmatpush1.bf16.msra.mxu0 0
    %159 = vmatprep.subr.bf16.mxu0 0
    %160 = vmatpush1.bf16.msra.mxu0 0
    %161 = vmatprep.subr.bf16.mxu0 0
    %162 = vmatpush1.bf16.msra.mxu0 0
    %163 = vmatprep.subr.bf16.mxu0 0
    %164 = vmatpush1.bf16.msra.mxu0 0
    %165 = vmatprep.subr.bf16.mxu0 0
    %166 = vmatpush1.bf16.msra.mxu0 0
    %167 = vmatprep.subr.bf16.mxu0 0
    %168 = vmatpush1.bf16.msra.mxu0 0
    %169 = vmatprep.mubr.bf16.mxu0 0
    %170 = vmatmul.mubr.bf16.gmra.mrb[0].mxu0 %v87
    %v171 = vpop.f32.mrb[0].mxu0
    %v172 = vadd.f32 %v81, %v171
    %v173 = vpop.f32.mrb[0].mxu0
    %v174 = vpop.f32.mrb[0].mxu0
    %v175 = vadd.f32 %v81, %v174
    %v176 = vpop.f32.mrb[0].mxu0
    %177 = vdwg.mxu0
    %v178 = vld [vmem:[%s1] sm:$0xf]
    %v179 = vld [vmem:[%s1 + $0x4] sm:$0xf]
    %v180 = vpack.c.bf16 %v175, %v172
    %v181 = vld [vmem:[%s3] sm:$0xf]
    %v182 = vld [vmem:[%s3 + $0x4] sm:$0xf]
    %v183 = vld [vmem:[%s3 + $0x8] sm:$0xf]
    %v184 = vld [vmem:[%s3 + $0xc] sm:$0xf]
    %v189 = vunpack.c.l.b16 %v181
    %v190 = vunpack.c.l.b16 %v182
    %v191 = vunpack.c.l.b16 %v183
    %v192 = vunpack.c.l.b16 %v184
    %v193 = vpack.c.b16 %v190, %v189
    %v194 = vpack.c.b16 %v192, %v191
    %vm197 = vcmask 261120
    %v199 = vsel %vm197, %v180, 0
    %201 = vmatprep.subr.bf16.mxu0 0
    %202 = vmatpush1.bf16.msra.mxu0 %v193
    %203 = vmatprep.subr.bf16.mxu0 0
    %204 = vmatpush1.bf16.msra.mxu0 %v194
    %205 = vmatprep.subr.bf16.mxu0 0
    %206 = vmatpush1.bf16.msra.mxu0 0
    %207 = vmatprep.subr.bf16.mxu0 0
    %208 = vmatpush1.bf16.msra.mxu0 0
    %209 = vmatprep.subr.bf16.mxu0 0
    %210 = vmatpush1.bf16.msra.mxu0 0
    %211 = vmatprep.subr.bf16.mxu0 0
    %212 = vmatpush1.bf16.msra.mxu0 0
    %213 = vmatprep.subr.bf16.mxu0 0
    %214 = vmatpush1.bf16.msra.mxu0 0
    %215 = vmatprep.subr.bf16.mxu0 0
    %216 = vmatpush1.bf16.msra.mxu0 0
    %217 = vmatprep.subr.bf16.mxu0 0
    %218 = vmatpush1.bf16.msra.mxu0 0
    %219 = vmatprep.subr.bf16.mxu0 0
    %220 = vmatpush1.bf16.msra.mxu0 0
    %221 = vmatprep.subr.bf16.mxu0 0
    %222 = vmatpush1.bf16.msra.mxu0 0
    %223 = vmatprep.subr.bf16.mxu0 0
    %224 = vmatpush1.bf16.msra.mxu0 0
    %225 = vmatprep.subr.bf16.mxu0 0
    %226 = vmatpush1.bf16.msra.mxu0 0
    %227 = vmatprep.subr.bf16.mxu0 0
    %228 = vmatpush1.bf16.msra.mxu0 0
    %229 = vmatprep.subr.bf16.mxu0 0
    %230 = vmatpush1.bf16.msra.mxu0 0
    %231 = vmatprep.subr.bf16.mxu0 0
    %232 = vmatpush1.bf16.msra.mxu0 0
    %233 = vmatprep.mubr.bf16.mxu0 0
    %234 = vmatmul.mubr.bf16.gmra.mrb[0].mxu0 %v199
    %v235 = vpop.f32.mrb[0].mxu0
    %v236 = vadd.f32 0.0, %v235
    %v237 = vpop.f32.mrb[0].mxu0
    %v238 = vpop.f32.mrb[0].mxu0
    %v239 = vadd.f32 0.0, %v238
    %v240 = vpop.f32.mrb[0].mxu0
    %241 = vdwg.mxu0
    %s242 = scalar_lea.vmem %s3, 16
    %v243 = vld [vmem:[%s242] sm:$0xf]
    %v244 = vld [vmem:[%s242 + $0x4] sm:$0xf]
    %v245 = vld [vmem:[%s242 + $0x8] sm:$0xf]
    %v246 = vld [vmem:[%s242 + $0xc] sm:$0xf]
    %v251 = vunpack.c.l.b16 %v243
    %v252 = vunpack.c.l.b16 %v244
    %v253 = vunpack.c.l.b16 %v245
    %v254 = vunpack.c.l.b16 %v246
    %v255 = vpack.c.b16 %v252, %v251
    %v256 = vpack.c.b16 %v254, %v253
    %259 = vmatprep.subr.bf16.mxu0 0
    %260 = vmatpush1.bf16.msra.mxu0 %v255
    %261 = vmatprep.subr.bf16.mxu0 0
    %262 = vmatpush1.bf16.msra.mxu0 %v256
    %263 = vmatprep.subr.bf16.mxu0 0
    %264 = vmatpush1.bf16.msra.mxu0 0
    %265 = vmatprep.subr.bf16.mxu0 0
    %266 = vmatpush1.bf16.msra.mxu0 0
    %267 = vmatprep.subr.bf16.mxu0 0
    %268 = vmatpush1.bf16.msra.mxu0 0
    %269 = vmatprep.subr.bf16.mxu0 0
    %270 = vmatpush1.bf16.msra.mxu0 0
    %271 = vmatprep.subr.bf16.mxu0 0
    %272 = vmatpush1.bf16.msra.mxu0 0
    %273 = vmatprep.subr.bf16.mxu0 0
    %274 = vmatpush1.bf16.msra.mxu0 0
    %275 = vmatprep.subr.bf16.mxu0 0
    %276 = vmatpush1.bf16.msra.mxu0 0
    %277 = vmatprep.subr.bf16.mxu0 0
    %278 = vmatpush1.bf16.msra.mxu0 0
    %279 = vmatprep.subr.bf16.mxu0 0
    %280 = vmatpush1.bf16.msra.mxu0 0
    %281 = vmatprep.subr.bf16.mxu0 0
    %282 = vmatpush1.bf16.msra.mxu0 0
    %283 = vmatprep.subr.bf16.mxu0 0
    %284 = vmatpush1.bf16.msra.mxu0 0
    %285 = vmatprep.subr.bf16.mxu0 0
    %286 = vmatpush1.bf16.msra.mxu0 0
    %287 = vmatprep.subr.bf16.mxu0 0
    %288 = vmatpush1.bf16.msra.mxu0 0
    %289 = vmatprep.subr.bf16.mxu0 0
    %290 = vmatpush1.bf16.msra.mxu0 0
    %291 = vmatprep.mubr.bf16.mxu0 0
    %292 = vmatmul.mubr.bf16.gmra.mrb[0].mxu0 %v199
    %v293 = vpop.f32.mrb[0].mxu0
    %v294 = vadd.f32 0.0, %v293
    %v295 = vpop.f32.mrb[0].mxu0
    %v296 = vpop.f32.mrb[0].mxu0
    %v297 = vadd.f32 0.0, %v296
    %v298 = vpop.f32.mrb[0].mxu0
    %299 = vdwg.mxu0
    %s300 = scalar_lea.vmem %s3, 32
    %v301 = vld [vmem:[%s300] sm:$0xf]
    %v302 = vld [vmem:[%s300 + $0x4] sm:$0xf]
    %v303 = vld [vmem:[%s300 + $0x8] sm:$0xf]
    %v304 = vld [vmem:[%s300 + $0xc] sm:$0xf]
    %v309 = vunpack.c.l.b16 %v301
    %v310 = vunpack.c.l.b16 %v302
    %v311 = vunpack.c.l.b16 %v303
    %v312 = vunpack.c.l.b16 %v304
    %v313 = vpack.c.b16 %v310, %v309
    %v314 = vpack.c.b16 %v312, %v311
    %317 = vmatprep.subr.bf16.mxu0 0
    %318 = vmatpush1.bf16.msra.mxu0 %v313
    %319 = vmatprep.subr.bf16.mxu0 0
    %320 = vmatpush1.bf16.msra.mxu0 %v314
    %321 = vmatprep.subr.bf16.mxu0 0
    %322 = vmatpush1.bf16.msra.mxu0 0
    %323 = vmatprep.subr.bf16.mxu0 0
    %324 = vmatpush1.bf16.msra.mxu0 0
    %325 = vmatprep.subr.bf16.mxu0 0
    %326 = vmatpush1.bf16.msra.mxu0 0
    %327 = vmatprep.subr.bf16.mxu0 0
    %328 = vmatpush1.bf16.msra.mxu0 0
    %329 = vmatprep.subr.bf16.mxu0 0
    %330 = vmatpush1.bf16.msra.mxu0 0
    %331 = vmatprep.subr.bf16.mxu0 0
    %332 = vmatpush1.bf16.msra.mxu0 0
    %333 = vmatprep.subr.bf16.mxu0 0
    %334 = vmatpush1.bf16.msra.mxu0 0
    %335 = vmatprep.subr.bf16.mxu0 0
    %336 = vmatpush1.bf16.msra.mxu0 0
    %337 = vmatprep.subr.bf16.mxu0 0
    %338 = vmatpush1.bf16.msra.mxu0 0
    %339 = vmatprep.subr.bf16.mxu0 0
    %340 = vmatpush1.bf16.msra.mxu0 0
    %341 = vmatprep.subr.bf16.mxu0 0
    %342 = vmatpush1.bf16.msra.mxu0 0
    %343 = vmatprep.subr.bf16.mxu0 0
    %344 = vmatpush1.bf16.msra.mxu0 0
    %345 = vmatprep.subr.bf16.mxu0 0
    %346 = vmatpush1.bf16.msra.mxu0 0
    %347 = vmatprep.subr.bf16.mxu0 0
    %348 = vmatpush1.bf16.msra.mxu0 0
    %349 = vmatprep.mubr.bf16.mxu0 0
    %350 = vmatmul.mubr.bf16.gmra.mrb[0].mxu0 %v199
    %v351 = vpop.f32.mrb[0].mxu0
    %v352 = vadd.f32 0.0, %v351
    %v353 = vpop.f32.mrb[0].mxu0
    %v354 = vpop.f32.mrb[0].mxu0
    %v355 = vadd.f32 0.0, %v354
    %v356 = vpop.f32.mrb[0].mxu0
    %357 = vdwg.mxu0
    %s358 = scalar_lea.vmem %s3, 48
    %v359 = vld [vmem:[%s358] sm:$0xf]
    %v360 = vld [vmem:[%s358 + $0x4] sm:$0xf]
    %v361 = vld [vmem:[%s358 + $0x8] sm:$0xf]
    %v362 = vld [vmem:[%s358 + $0xc] sm:$0xf]
    %v367 = vunpack.c.l.b16 %v359
    %v368 = vunpack.c.l.b16 %v360
    %v369 = vunpack.c.l.b16 %v361
    %v370 = vunpack.c.l.b16 %v362
    %v371 = vpack.c.b16 %v368, %v367
    %v372 = vpack.c.b16 %v370, %v369
    %375 = vmatprep.subr.bf16.mxu0 0
    %376 = vmatpush1.bf16.msra.mxu0 %v371
    %377 = vmatprep.subr.bf16.mxu0 0
    %378 = vmatpush1.bf16.msra.mxu0 %v372
    %379 = vmatprep.subr.bf16.mxu0 0
    %380 = vmatpush1.bf16.msra.mxu0 0
    %381 = vmatprep.subr.bf16.mxu0 0
    %382 = vmatpush1.bf16.msra.mxu0 0
    %383 = vmatprep.subr.bf16.mxu0 0
    %384 = vmatpush1.bf16.msra.mxu0 0
    %385 = vmatprep.subr.bf16.mxu0 0
    %386 = vmatpush1.bf16.msra.mxu0 0
    %387 = vmatprep.subr.bf16.mxu0 0
    %388 = vmatpush1.bf16.msra.mxu0 0
    %389 = vmatprep.subr.bf16.mxu0 0
    %390 = vmatpush1.bf16.msra.mxu0 0
    %391 = vmatprep.subr.bf16.mxu0 0
    %392 = vmatpush1.bf16.msra.mxu0 0
    %393 = vmatprep.subr.bf16.mxu0 0
    %394 = vmatpush1.bf16.msra.mxu0 0
    %395 = vmatprep.subr.bf16.mxu0 0
    %396 = vmatpush1.bf16.msra.mxu0 0
    %397 = vmatprep.subr.bf16.mxu0 0
    %398 = vmatpush1.bf16.msra.mxu0 0
    %399 = vmatprep.subr.bf16.mxu0 0
    %400 = vmatpush1.bf16.msra.mxu0 0
    %401 = vmatprep.subr.bf16.mxu0 0
    %402 = vmatpush1.bf16.msra.mxu0 0
    %403 = vmatprep.subr.bf16.mxu0 0
    %404 = vmatpush1.bf16.msra.mxu0 0
    %405 = vmatprep.subr.bf16.mxu0 0
    %406 = vmatpush1.bf16.msra.mxu0 0
    %407 = vmatprep.mubr.bf16.mxu0 0
    %408 = vmatmul.mubr.bf16.gmra.mrb[0].mxu0 %v199
    %v409 = vpop.f32.mrb[0].mxu0
    %v410 = vadd.f32 0.0, %v409
    %v411 = vpop.f32.mrb[0].mxu0
    %v412 = vpop.f32.mrb[0].mxu0
    %v413 = vadd.f32 0.0, %v412
    %v414 = vpop.f32.mrb[0].mxu0
    %415 = vdwg.mxu0
    %s416 = scalar_lea.vmem %s3, 64
    %v417 = vld [vmem:[%s416] sm:$0xf]
    %v418 = vld [vmem:[%s416 + $0x4] sm:$0xf]
    %v419 = vld [vmem:[%s416 + $0x8] sm:$0xf]
    %v420 = vld [vmem:[%s416 + $0xc] sm:$0xf]
    %v425 = vunpack.c.l.b16 %v417
    %v426 = vunpack.c.l.b16 %v418
    %v427 = vunpack.c.l.b16 %v419
    %v428 = vunpack.c.l.b16 %v420
    %v429 = vpack.c.b16 %v426, %v425
    %v430 = vpack.c.b16 %v428, %v427
    %433 = vmatprep.subr.bf16.mxu0 0
    %434 = vmatpush1.bf16.msra.mxu0 %v429
    %435 = vmatprep.subr.bf16.mxu0 0
    %436 = vmatpush1.bf16.msra.mxu0 %v430
    %437 = vmatprep.subr.bf16.mxu0 0
    %438 = vmatpush1.bf16.msra.mxu0 0
    %439 = vmatprep.subr.bf16.mxu0 0
    %440 = vmatpush1.bf16.msra.mxu0 0
    %441 = vmatprep.subr.bf16.mxu0 0
    %442 = vmatpush1.bf16.msra.mxu0 0
    %443 = vmatprep.subr.bf16.mxu0 0
    %444 = vmatpush1.bf16.msra.mxu0 0
    %445 = vmatprep.subr.bf16.mxu0 0
    %446 = vmatpush1.bf16.msra.mxu0 0
    %447 = vmatprep.subr.bf16.mxu0 0
    %448 = vmatpush1.bf16.msra.mxu0 0
    %449 = vmatprep.subr.bf16.mxu0 0
    %450 = vmatpush1.bf16.msra.mxu0 0
    %451 = vmatprep.subr.bf16.mxu0 0
    %452 = vmatpush1.bf16.msra.mxu0 0
    %453 = vmatprep.subr.bf16.mxu0 0
    %454 = vmatpush1.bf16.msra.mxu0 0
    %455 = vmatprep.subr.bf16.mxu0 0
    %456 = vmatpush1.bf16.msra.mxu0 0
    %457 = vmatprep.subr.bf16.mxu0 0
    %458 = vmatpush1.bf16.msra.mxu0 0
    %459 = vmatprep.subr.bf16.mxu0 0
    %460 = vmatpush1.bf16.msra.mxu0 0
    %461 = vmatprep.subr.bf16.mxu0 0
    %462 = vmatpush1.bf16.msra.mxu0 0
    %463 = vmatprep.subr.bf16.mxu0 0
    %464 = vmatpush1.bf16.msra.mxu0 0
    %465 = vmatprep.mubr.bf16.mxu0 0
    %466 = vmatmul.mubr.bf16.gmra.mrb[0].mxu0 %v199
    %v467 = vpop.f32.mrb[0].mxu0
    %v468 = vadd.f32 0.0, %v467
    %v469 = vpop.f32.mrb[0].mxu0
    %v470 = vpop.f32.mrb[0].mxu0
    %v471 = vadd.f32 0.0, %v470
    %v472 = vpop.f32.mrb[0].mxu0
    %473 = vdwg.mxu0
    %s474 = scalar_lea.vmem %s3, 80
    %v475 = vld [vmem:[%s474] sm:$0xf]
    %v476 = vld [vmem:[%s474 + $0x4] sm:$0xf]
    %v477 = vld [vmem:[%s474 + $0x8] sm:$0xf]
    %v478 = vld [vmem:[%s474 + $0xc] sm:$0xf]
    %v483 = vunpack.c.l.b16 %v475
    %v484 = vunpack.c.l.b16 %v476
    %v485 = vunpack.c.l.b16 %v477
    %v486 = vunpack.c.l.b16 %v478
    %v487 = vpack.c.b16 %v484, %v483
    %v488 = vpack.c.b16 %v486, %v485
    %491 = vmatprep.subr.bf16.mxu0 0
    %492 = vmatpush1.bf16.msra.mxu0 %v487
    %493 = vmatprep.subr.bf16.mxu0 0
    %494 = vmatpush1.bf16.msra.mxu0 %v488
    %495 = vmatprep.subr.bf16.mxu0 0
    %496 = vmatpush1.bf16.msra.mxu0 0
    %497 = vmatprep.subr.bf16.mxu0 0
    %498 = vmatpush1.bf16.msra.mxu0 0
    %499 = vmatprep.subr.bf16.mxu0 0
    %500 = vmatpush1.bf16.msra.mxu0 0
    %501 = vmatprep.subr.bf16.mxu0 0
    %502 = vmatpush1.bf16.msra.mxu0 0
    %503 = vmatprep.subr.bf16.mxu0 0
    %504 = vmatpush1.bf16.msra.mxu0 0
    %505 = vmatprep.subr.bf16.mxu0 0
    %506 = vmatpush1.bf16.msra.mxu0 0
    %507 = vmatprep.subr.bf16.mxu0 0
    %508 = vmatpush1.bf16.msra.mxu0 0
    %509 = vmatprep.subr.bf16.mxu0 0
    %510 = vmatpush1.bf16.msra.mxu0 0
    %511 = vmatprep.subr.bf16.mxu0 0
    %512 = vmatpush1.bf16.msra.mxu0 0
    %513 = vmatprep.subr.bf16.mxu0 0
    %514 = vmatpush1.bf16.msra.mxu0 0
    %515 = vmatprep.subr.bf16.mxu0 0
    %516 = vmatpush1.bf16.msra.mxu0 0
    %517 = vmatprep.subr.bf16.mxu0 0
    %518 = vmatpush1.bf16.msra.mxu0 0
    %519 = vmatprep.subr.bf16.mxu0 0
    %520 = vmatpush1.bf16.msra.mxu0 0
    %521 = vmatprep.subr.bf16.mxu0 0
    %522 = vmatpush1.bf16.msra.mxu0 0
    %523 = vmatprep.mubr.bf16.mxu0 0
    %524 = vmatmul.mubr.bf16.gmra.mrb[0].mxu0 %v199
    %v525 = vpop.f32.mrb[0].mxu0
    %v526 = vadd.f32 0.0, %v525
    %v527 = vpop.f32.mrb[0].mxu0
    %v528 = vpop.f32.mrb[0].mxu0
    %v529 = vadd.f32 0.0, %v528
    %v530 = vpop.f32.mrb[0].mxu0
    %531 = vdwg.mxu0
    %s532 = scalar_lea.vmem %s3, 96
    %v533 = vld [vmem:[%s532] sm:$0xf]
    %v534 = vld [vmem:[%s532 + $0x4] sm:$0xf]
    %v535 = vld [vmem:[%s532 + $0x8] sm:$0xf]
    %v536 = vld [vmem:[%s532 + $0xc] sm:$0xf]
    %v541 = vunpack.c.l.b16 %v533
    %v542 = vunpack.c.l.b16 %v534
    %v543 = vunpack.c.l.b16 %v535
    %v544 = vunpack.c.l.b16 %v536
    %v545 = vpack.c.b16 %v542, %v541
    %v546 = vpack.c.b16 %v544, %v543
    %549 = vmatprep.subr.bf16.mxu0 0
    %550 = vmatpush1.bf16.msra.mxu0 %v545
    %551 = vmatprep.subr.bf16.mxu0 0
    %552 = vmatpush1.bf16.msra.mxu0 %v546
    %553 = vmatprep.subr.bf16.mxu0 0
    %554 = vmatpush1.bf16.msra.mxu0 0
    %555 = vmatprep.subr.bf16.mxu0 0
    %556 = vmatpush1.bf16.msra.mxu0 0
    %557 = vmatprep.subr.bf16.mxu0 0
    %558 = vmatpush1.bf16.msra.mxu0 0
    %559 = vmatprep.subr.bf16.mxu0 0
    %560 = vmatpush1.bf16.msra.mxu0 0
    %561 = vmatprep.subr.bf16.mxu0 0
    %562 = vmatpush1.bf16.msra.mxu0 0
    %563 = vmatprep.subr.bf16.mxu0 0
    %564 = vmatpush1.bf16.msra.mxu0 0
    %565 = vmatprep.subr.bf16.mxu0 0
    %566 = vmatpush1.bf16.msra.mxu0 0
    %567 = vmatprep.subr.bf16.mxu0 0
    %568 = vmatpush1.bf16.msra.mxu0 0
    %569 = vmatprep.subr.bf16.mxu0 0
    %570 = vmatpush1.bf16.msra.mxu0 0
    %571 = vmatprep.subr.bf16.mxu0 0
    %572 = vmatpush1.bf16.msra.mxu0 0
    %573 = vmatprep.subr.bf16.mxu0 0
    %574 = vmatpush1.bf16.msra.mxu0 0
    %575 = vmatprep.subr.bf16.mxu0 0
    %576 = vmatpush1.bf16.msra.mxu0 0
    %577 = vmatprep.subr.bf16.mxu0 0
    %578 = vmatpush1.bf16.msra.mxu0 0
    %579 = vmatprep.subr.bf16.mxu0 0
    %580 = vmatpush1.bf16.msra.mxu0 0
    %581 = vmatprep.mubr.bf16.mxu0 0
    %582 = vmatmul.mubr.bf16.gmra.mrb[0].mxu0 %v199
    %v583 = vpop.f32.mrb[0].mxu0
    %v584 = vadd.f32 0.0, %v583
    %v585 = vpop.f32.mrb[0].mxu0
    %v586 = vpop.f32.mrb[0].mxu0
    %v587 = vadd.f32 0.0, %v586
    %v588 = vpop.f32.mrb[0].mxu0
    %589 = vdwg.mxu0
    %s590 = scalar_lea.vmem %s3, 112
    %v591 = vld [vmem:[%s590] sm:$0xf]
    %v592 = vld [vmem:[%s590 + $0x4] sm:$0xf]
    %v593 = vld [vmem:[%s590 + $0x8] sm:$0xf]
    %v594 = vld [vmem:[%s590 + $0xc] sm:$0xf]
    %v599 = vunpack.c.l.b16 %v591
    %v600 = vunpack.c.l.b16 %v592
    %v601 = vunpack.c.l.b16 %v593
    %v602 = vunpack.c.l.b16 %v594
    %v603 = vpack.c.b16 %v600, %v599
    %v604 = vpack.c.b16 %v602, %v601
    %607 = vmatprep.subr.bf16.mxu0 0
    %608 = vmatpush1.bf16.msra.mxu0 %v603
    %609 = vmatprep.subr.bf16.mxu0 0
    %610 = vmatpush1.bf16.msra.mxu0 %v604
    %611 = vmatprep.subr.bf16.mxu0 0
    %612 = vmatpush1.bf16.msra.mxu0 0
    %613 = vmatprep.subr.bf16.mxu0 0
    %614 = vmatpush1.bf16.msra.mxu0 0
    %615 = vmatprep.subr.bf16.mxu0 0
    %616 = vmatpush1.bf16.msra.mxu0 0
    %617 = vmatprep.subr.bf16.mxu0 0
    %618 = vmatpush1.bf16.msra.mxu0 0
    %619 = vmatprep.subr.bf16.mxu0 0
    %620 = vmatpush1.bf16.msra.mxu0 0
    %621 = vmatprep.subr.bf16.mxu0 0
    %622 = vmatpush1.bf16.msra.mxu0 0
    %623 = vmatprep.subr.bf16.mxu0 0
    %624 = vmatpush1.bf16.msra.mxu0 0
    %625 = vmatprep.subr.bf16.mxu0 0
    %626 = vmatpush1.bf16.msra.mxu0 0
    %627 = vmatprep.subr.bf16.mxu0 0
    %628 = vmatpush1.bf16.msra.mxu0 0
    %629 = vmatprep.subr.bf16.mxu0 0
    %630 = vmatpush1.bf16.msra.mxu0 0
    %631 = vmatprep.subr.bf16.mxu0 0
    %632 = vmatpush1.bf16.msra.mxu0 0
    %633 = vmatprep.subr.bf16.mxu0 0
    %634 = vmatpush1.bf16.msra.mxu0 0
    %635 = vmatprep.subr.bf16.mxu0 0
    %636 = vmatpush1.bf16.msra.mxu0 0
    %637 = vmatprep.subr.bf16.mxu0 0
    %638 = vmatpush1.bf16.msra.mxu0 0
    %639 = vmatprep.mubr.bf16.mxu0 0
    %640 = vmatmul.mubr.bf16.gmra.mrb[0].mxu0 %v199
    %v641 = vpop.f32.mrb[0].mxu0
    %v642 = vadd.f32 0.0, %v641
    %v643 = vpop.f32.mrb[0].mxu0
    %v644 = vpop.f32.mrb[0].mxu0
    %v645 = vadd.f32 0.0, %v644
    %v646 = vpop.f32.mrb[0].mxu0
    %647 = vdwg.mxu0
    %v648 = vpack.c.bf16 %v239, %v236
    %v649 = vpack.c.bf16 %v297, %v294
    %v650 = vpack.c.bf16 %v355, %v352
    %v651 = vpack.c.bf16 %v413, %v410
    %v652 = vpack.c.bf16 %v471, %v468
    %v653 = vpack.c.bf16 %v529, %v526
    %v654 = vpack.c.bf16 %v587, %v584
    %v655 = vpack.c.bf16 %v645, %v642
    %v656 = vld [vmem:[%s6] sm:$0xf]
    %v657 = vld [vmem:[%s6 + $0x4] sm:$0xf]
    %v658 = vld [vmem:[%s6 + $0x8] sm:$0xf]
    %v659 = vld [vmem:[%s6 + $0xc] sm:$0xf]
    %v664 = vunpack.c.l.b16 %v656
    %v665 = vunpack.c.l.b16 %v657
    %v666 = vunpack.c.l.b16 %v658
    %v667 = vunpack.c.l.b16 %v659
    %v668 = vpack.c.b16 %v665, %v664
    %v669 = vpack.c.b16 %v667, %v666
    %672 = vmatprep.subr.bf16.mxu0 0
    %673 = vmatpush1.bf16.msra.mxu0 %v668
    %674 = vmatprep.subr.bf16.mxu0 0
    %675 = vmatpush1.bf16.msra.mxu0 %v669
    %676 = vmatprep.subr.bf16.mxu0 0
    %677 = vmatpush1.bf16.msra.mxu0 0
    %678 = vmatprep.subr.bf16.mxu0 0
    %679 = vmatpush1.bf16.msra.mxu0 0
    %680 = vmatprep.subr.bf16.mxu0 0
    %681 = vmatpush1.bf16.msra.mxu0 0
    %682 = vmatprep.subr.bf16.mxu0 0
    %683 = vmatpush1.bf16.msra.mxu0 0
    %684 = vmatprep.subr.bf16.mxu0 0
    %685 = vmatpush1.bf16.msra.mxu0 0
    %686 = vmatprep.subr.bf16.mxu0 0
    %687 = vmatpush1.bf16.msra.mxu0 0
    %688 = vmatprep.subr.bf16.mxu0 0
    %689 = vmatpush1.bf16.msra.mxu0 0
    %690 = vmatprep.subr.bf16.mxu0 0
    %691 = vmatpush1.bf16.msra.mxu0 0
    %692 = vmatprep.subr.bf16.mxu0 0
    %693 = vmatpush1.bf16.msra.mxu0 0
    %694 = vmatprep.subr.bf16.mxu0 0
    %695 = vmatpush1.bf16.msra.mxu0 0
    %696 = vmatprep.subr.bf16.mxu0 0
    %697 = vmatpush1.bf16.msra.mxu0 0
    %698 = vmatprep.subr.bf16.mxu0 0
    %699 = vmatpush1.bf16.msra.mxu0 0
    %700 = vmatprep.subr.bf16.mxu0 0
    %701 = vmatpush1.bf16.msra.mxu0 0
    %702 = vmatprep.subr.bf16.mxu0 0
    %703 = vmatpush1.bf16.msra.mxu0 0
    %704 = vmatprep.mubr.bf16.mxu0 0
    %705 = vmatmul.mubr.bf16.gmra.mrb[0].mxu0 %v199
    %v706 = vpop.f32.mrb[0].mxu0
    %v707 = vadd.f32 0.0, %v706
    %v708 = vpop.f32.mrb[0].mxu0
    %v709 = vpop.f32.mrb[0].mxu0
    %v710 = vadd.f32 0.0, %v709
    %v711 = vpop.f32.mrb[0].mxu0
    %712 = vdwg.mxu0
    %v715 = vunpack.c.l.b16 %v178
    %v716 = vunpack.c.l.b16 %v179
    %v717 = vpack.c.b16 %v716, %v715
    %719 = vmatprep.subr.bf16.mxu0 0
    %720 = vmatpush1.bf16.msra.mxu0 %v648
    %721 = vmatprep.subr.bf16.mxu0 0
    %722 = vmatpush1.bf16.msra.mxu0 %v649
    %723 = vmatprep.subr.bf16.mxu0 0
    %724 = vmatpush1.bf16.msra.mxu0 %v650
    %725 = vmatprep.subr.bf16.mxu0 0
    %726 = vmatpush1.bf16.msra.mxu0 %v651
    %727 = vmatprep.subr.bf16.mxu0 0
    %728 = vmatpush1.bf16.msra.mxu0 %v652
    %729 = vmatprep.subr.bf16.mxu0 0
    %730 = vmatpush1.bf16.msra.mxu0 %v653
    %731 = vmatprep.subr.bf16.mxu0 0
    %732 = vmatpush1.bf16.msra.mxu0 %v654
    %733 = vmatprep.subr.bf16.mxu0 0
    %734 = vmatpush1.bf16.msra.mxu0 %v655
    %735 = vmatprep.subr.bf16.mxu0 0
    %736 = vmatpush1.bf16.msra.mxu0 0
    %737 = vmatprep.subr.bf16.mxu0 0
    %738 = vmatpush1.bf16.msra.mxu0 0
    %739 = vmatprep.subr.bf16.mxu0 0
    %740 = vmatpush1.bf16.msra.mxu0 0
    %741 = vmatprep.subr.bf16.mxu0 0
    %742 = vmatpush1.bf16.msra.mxu0 0
    %743 = vmatprep.subr.bf16.mxu0 0
    %744 = vmatpush1.bf16.msra.mxu0 0
    %745 = vmatprep.subr.bf16.mxu0 0
    %746 = vmatpush1.bf16.msra.mxu0 0
    %747 = vmatprep.subr.bf16.mxu0 0
    %748 = vmatpush1.bf16.msra.mxu0 0
    %749 = vmatprep.subr.bf16.mxu0 0
    %750 = vmatpush1.bf16.msra.mxu0 0
    %751 = vmatprep.mubr.bf16.mxu0 0
    %752 = vmatmul.mubr.bf16.gmra.mrb[0].mxu0 %v717
    %v753 = vpop.f32.mrb[0].mxu0
    %v754 = vadd.f32 %v707, %v753
    %v755 = vpop.f32.mrb[0].mxu0
    %v756 = vpop.f32.mrb[0].mxu0
    %v757 = vadd.f32 %v710, %v756
    %v758 = vpop.f32.mrb[0].mxu0
    %759 = vdwg.mxu0
    %v760 = vld [vmem:[%s7] sm:$0x1]
    %v762 = vlaneseq
    %v763 = vshrl.u32 %v762, 7
    %v764 = vsub.s32 0, %v763
    %v765 = vrot.slane %v760, %v764
    %v767 = vadd.f32 %v754, %v765
    %v768 = vadd.f32 %v757, %v765
    %v769 = vpack.c.bf16 %v768, %v767
    %v771 = vsel %vm197, %v769, 0
    %773 = vmatprep.subr.bf16.mxu0 0
    %774 = vmatpush1.bf16.msra.mxu0 %v193
    %775 = vmatprep.subr.bf16.mxu0 0
    %776 = vmatpush1.bf16.msra.mxu0 %v194
    %777 = vmatprep.subr.bf16.mxu0 0
    %778 = vmatpush1.bf16.msra.mxu0 0
    %779 = vmatprep.subr.bf16.mxu0 0
    %780 = vmatpush1.bf16.msra.mxu0 0
    %781 = vmatprep.subr.bf16.mxu0 0
    %782 = vmatpush1.bf16.msra.mxu0 0
    %783 = vmatprep.subr.bf16.mxu0 0
    %784 = vmatpush1.bf16.msra.mxu0 0
    %785 = vmatprep.subr.bf16.mxu0 0
    %786 = vmatpush1.bf16.msra.mxu0 0
    %787 = vmatprep.subr.bf16.mxu0 0
    %788 = vmatpush1.bf16.msra.mxu0 0
    %789 = vmatprep.subr.bf16.mxu0 0
    %790 = vmatpush1.bf16.msra.mxu0 0
    %791 = vmatprep.subr.bf16.mxu0 0
    %792 = vmatpush1.bf16.msra.mxu0 0
    %793 = vmatprep.subr.bf16.mxu0 0
    %794 = vmatpush1.bf16.msra.mxu0 0
    %795 = vmatprep.subr.bf16.mxu0 0
    %796 = vmatpush1.bf16.msra.mxu0 0
    %797 = vmatprep.subr.bf16.mxu0 0
    %798 = vmatpush1.bf16.msra.mxu0 0
    %799 = vmatprep.subr.bf16.mxu0 0
    %800 = vmatpush1.bf16.msra.mxu0 0
    %801 = vmatprep.subr.bf16.mxu0 0
    %802 = vmatpush1.bf16.msra.mxu0 0
    %803 = vmatprep.subr.bf16.mxu0 0
    %804 = vmatpush1.bf16.msra.mxu0 0
    %805 = vmatprep.mubr.bf16.mxu0 0
    %806 = vmatmul.mubr.bf16.gmra.mrb[0].mxu0 %v771
    %v807 = vpop.f32.mrb[0].mxu0
    %v808 = vadd.f32 0.0, %v807
    %v809 = vpop.f32.mrb[0].mxu0
    %v810 = vpop.f32.mrb[0].mxu0
    %v811 = vadd.f32 0.0, %v810
    %v812 = vpop.f32.mrb[0].mxu0
    %813 = vdwg.mxu0
    %814 = vmatprep.subr.bf16.mxu0 0
    %815 = vmatpush1.bf16.msra.mxu0 %v255
    %816 = vmatprep.subr.bf16.mxu0 0
    %817 = vmatpush1.bf16.msra.mxu0 %v256
    %818 = vmatprep.subr.bf16.mxu0 0
    %819 = vmatpush1.bf16.msra.mxu0 0
    %820 = vmatprep.subr.bf16.mxu0 0
    %821 = vmatpush1.bf16.msra.mxu0 0
    %822 = vmatprep.subr.bf16.mxu0 0
    %823 = vmatpush1.bf16.msra.mxu0 0
    %824 = vmatprep.subr.bf16.mxu0 0
    %825 = vmatpush1.bf16.msra.mxu0 0
    %826 = vmatprep.subr.bf16.mxu0 0
    %827 = vmatpush1.bf16.msra.mxu0 0
    %828 = vmatprep.subr.bf16.mxu0 0
    %829 = vmatpush1.bf16.msra.mxu0 0
    %830 = vmatprep.subr.bf16.mxu0 0
    %831 = vmatpush1.bf16.msra.mxu0 0
    %832 = vmatprep.subr.bf16.mxu0 0
    %833 = vmatpush1.bf16.msra.mxu0 0
    %834 = vmatprep.subr.bf16.mxu0 0
    %835 = vmatpush1.bf16.msra.mxu0 0
    %836 = vmatprep.subr.bf16.mxu0 0
    %837 = vmatpush1.bf16.msra.mxu0 0
    %838 = vmatprep.subr.bf16.mxu0 0
    %839 = vmatpush1.bf16.msra.mxu0 0
    %840 = vmatprep.subr.bf16.mxu0 0
    %841 = vmatpush1.bf16.msra.mxu0 0
    %842 = vmatprep.subr.bf16.mxu0 0
    %843 = vmatpush1.bf16.msra.mxu0 0
    %844 = vmatprep.subr.bf16.mxu0 0
    %845 = vmatpush1.bf16.msra.mxu0 0
    %846 = vmatprep.mubr.bf16.mxu0 0
    %847 = vmatmul.mubr.bf16.gmra.mrb[0].mxu0 %v771
    %v848 = vpop.f32.mrb[0].mxu0
    %v849 = vadd.f32 0.0, %v848
    %v850 = vpop.f32.mrb[0].mxu0
    %v851 = vpop.f32.mrb[0].mxu0
    %v852 = vadd.f32 0.0, %v851
    %v853 = vpop.f32.mrb[0].mxu0
    %854 = vdwg.mxu0
    %855 = vmatprep.subr.bf16.mxu0 0
    %856 = vmatpush1.bf16.msra.mxu0 %v313
    %857 = vmatprep.subr.bf16.mxu0 0
    %858 = vmatpush1.bf16.msra.mxu0 %v314
    %859 = vmatprep.subr.bf16.mxu0 0
    %860 = vmatpush1.bf16.msra.mxu0 0
    %861 = vmatprep.subr.bf16.mxu0 0
    %862 = vmatpush1.bf16.msra.mxu0 0
    %863 = vmatprep.subr.bf16.mxu0 0
    %864 = vmatpush1.bf16.msra.mxu0 0
    %865 = vmatprep.subr.bf16.mxu0 0
    %866 = vmatpush1.bf16.msra.mxu0 0
    %867 = vmatprep.subr.bf16.mxu0 0
    %868 = vmatpush1.bf16.msra.mxu0 0
    %869 = vmatprep.subr.bf16.mxu0 0
    %870 = vmatpush1.bf16.msra.mxu0 0
    %871 = vmatprep.subr.bf16.mxu0 0
    %872 = vmatpush1.bf16.msra.mxu0 0
    %873 = vmatprep.subr.bf16.mxu0 0
    %874 = vmatpush1.bf16.msra.mxu0 0
    %875 = vmatprep.subr.bf16.mxu0 0
    %876 = vmatpush1.bf16.msra.mxu0 0
    %877 = vmatprep.subr.bf16.mxu0 0
    %878 = vmatpush1.bf16.msra.mxu0 0
    %879 = vmatprep.subr.bf16.mxu0 0
    %880 = vmatpush1.bf16.msra.mxu0 0
    %881 = vmatprep.subr.bf16.mxu0 0
    %882 = vmatpush1.bf16.msra.mxu0 0
    %883 = vmatprep.subr.bf16.mxu0 0
    %884 = vmatpush1.bf16.msra.mxu0 0
    %885 = vmatprep.subr.bf16.mxu0 0
    %886 = vmatpush1.bf16.msra.mxu0 0
    %887 = vmatprep.mubr.bf16.mxu0 0
    %888 = vmatmul.mubr.bf16.gmra.mrb[0].mxu0 %v771
    %v889 = vpop.f32.mrb[0].mxu0
    %v890 = vadd.f32 0.0, %v889
    %v891 = vpop.f32.mrb[0].mxu0
    %v892 = vpop.f32.mrb[0].mxu0
    %v893 = vadd.f32 0.0, %v892
    %v894 = vpop.f32.mrb[0].mxu0
    %895 = vdwg.mxu0
    %896 = vmatprep.subr.bf16.mxu0 0
    %897 = vmatpush1.bf16.msra.mxu0 %v371
    %898 = vmatprep.subr.bf16.mxu0 0
    %899 = vmatpush1.bf16.msra.mxu0 %v372
    %900 = vmatprep.subr.bf16.mxu0 0
    %901 = vmatpush1.bf16.msra.mxu0 0
    %902 = vmatprep.subr.bf16.mxu0 0
    %903 = vmatpush1.bf16.msra.mxu0 0
    %904 = vmatprep.subr.bf16.mxu0 0
    %905 = vmatpush1.bf16.msra.mxu0 0
    %906 = vmatprep.subr.bf16.mxu0 0
    %907 = vmatpush1.bf16.msra.mxu0 0
    %908 = vmatprep.subr.bf16.mxu0 0
    %909 = vmatpush1.bf16.msra.mxu0 0
    %910 = vmatprep.subr.bf16.mxu0 0
    %911 = vmatpush1.bf16.msra.mxu0 0
    %912 = vmatprep.subr.bf16.mxu0 0
    %913 = vmatpush1.bf16.msra.mxu0 0
    %914 = vmatprep.subr.bf16.mxu0 0
    %915 = vmatpush1.bf16.msra.mxu0 0
    %916 = vmatprep.subr.bf16.mxu0 0
    %917 = vmatpush1.bf16.msra.mxu0 0
    %918 = vmatprep.subr.bf16.mxu0 0
    %919 = vmatpush1.bf16.msra.mxu0 0
    %920 = vmatprep.subr.bf16.mxu0 0
    %921 = vmatpush1.bf16.msra.mxu0 0
    %922 = vmatprep.subr.bf16.mxu0 0
    %923 = vmatpush1.bf16.msra.mxu0 0
    %924 = vmatprep.subr.bf16.mxu0 0
    %925 = vmatpush1.bf16.msra.mxu0 0
    %926 = vmatprep.subr.bf16.mxu0 0
    %927 = vmatpush1.bf16.msra.mxu0 0
    %928 = vmatprep.mubr.bf16.mxu0 0
    %929 = vmatmul.mubr.bf16.gmra.mrb[0].mxu0 %v771
    %v930 = vpop.f32.mrb[0].mxu0
    %v931 = vadd.f32 0.0, %v930
    %v932 = vpop.f32.mrb[0].mxu0
    %v933 = vpop.f32.mrb[0].mxu0
    %v934 = vadd.f32 0.0, %v933
    %v935 = vpop.f32.mrb[0].mxu0
    %936 = vdwg.mxu0
    %937 = vmatprep.subr.bf16.mxu0 0
    %938 = vmatpush1.bf16.msra.mxu0 %v429
    %939 = vmatprep.subr.bf16.mxu0 0
    %940 = vmatpush1.bf16.msra.mxu0 %v430
    %941 = vmatprep.subr.bf16.mxu0 0
    %942 = vmatpush1.bf16.msra.mxu0 0
    %943 = vmatprep.subr.bf16.mxu0 0
    %944 = vmatpush1.bf16.msra.mxu0 0
    %945 = vmatprep.subr.bf16.mxu0 0
    %946 = vmatpush1.bf16.msra.mxu0 0
    %947 = vmatprep.subr.bf16.mxu0 0
    %948 = vmatpush1.bf16.msra.mxu0 0
    %949 = vmatprep.subr.bf16.mxu0 0
    %950 = vmatpush1.bf16.msra.mxu0 0
    %951 = vmatprep.subr.bf16.mxu0 0
    %952 = vmatpush1.bf16.msra.mxu0 0
    %953 = vmatprep.subr.bf16.mxu0 0
    %954 = vmatpush1.bf16.msra.mxu0 0
    %955 = vmatprep.subr.bf16.mxu0 0
    %956 = vmatpush1.bf16.msra.mxu0 0
    %957 = vmatprep.subr.bf16.mxu0 0
    %958 = vmatpush1.bf16.msra.mxu0 0
    %959 = vmatprep.subr.bf16.mxu0 0
    %960 = vmatpush1.bf16.msra.mxu0 0
    %961 = vmatprep.subr.bf16.mxu0 0
    %962 = vmatpush1.bf16.msra.mxu0 0
    %963 = vmatprep.subr.bf16.mxu0 0
    %964 = vmatpush1.bf16.msra.mxu0 0
    %965 = vmatprep.subr.bf16.mxu0 0
    %966 = vmatpush1.bf16.msra.mxu0 0
    %967 = vmatprep.subr.bf16.mxu0 0
    %968 = vmatpush1.bf16.msra.mxu0 0
    %969 = vmatprep.mubr.bf16.mxu0 0
    %970 = vmatmul.mubr.bf16.gmra.mrb[0].mxu0 %v771
    %v971 = vpop.f32.mrb[0].mxu0
    %v972 = vadd.f32 0.0, %v971
    %v973 = vpop.f32.mrb[0].mxu0
    %v974 = vpop.f32.mrb[0].mxu0
    %v975 = vadd.f32 0.0, %v974
    %v976 = vpop.f32.mrb[0].mxu0
    %977 = vdwg.mxu0
    %978 = vmatprep.subr.bf16.mxu0 0
    %979 = vmatpush1.bf16.msra.mxu0 %v487
    %980 = vmatprep.subr.bf16.mxu0 0
    %981 = vmatpush1.bf16.msra.mxu0 %v488
    %982 = vmatprep.subr.bf16.mxu0 0
    %983 = vmatpush1.bf16.msra.mxu0 0
    %984 = vmatprep.subr.bf16.mxu0 0
    %985 = vmatpush1.bf16.msra.mxu0 0
    %986 = vmatprep.subr.bf16.mxu0 0
    %987 = vmatpush1.bf16.msra.mxu0 0
    %988 = vmatprep.subr.bf16.mxu0 0
    %989 = vmatpush1.bf16.msra.mxu0 0
    %990 = vmatprep.subr.bf16.mxu0 0
    %991 = vmatpush1.bf16.msra.mxu0 0
    %992 = vmatprep.subr.bf16.mxu0 0
    %993 = vmatpush1.bf16.msra.mxu0 0
    %994 = vmatprep.subr.bf16.mxu0 0
    %995 = vmatpush1.bf16.msra.mxu0 0
    %996 = vmatprep.subr.bf16.mxu0 0
    %997 = vmatpush1.bf16.msra.mxu0 0
    %998 = vmatprep.subr.bf16.mxu0 0
    %999 = vmatpush1.bf16.msra.mxu0 0
    %1000 = vmatprep.subr.bf16.mxu0 0
    %1001 = vmatpush1.bf16.msra.mxu0 0
    %1002 = vmatprep.subr.bf16.mxu0 0
    %1003 = vmatpush1.bf16.msra.mxu0 0
    %1004 = vmatprep.subr.bf16.mxu0 0
    %1005 = vmatpush1.bf16.msra.mxu0 0
    %1006 = vmatprep.subr.bf16.mxu0 0
    %1007 = vmatpush1.bf16.msra.mxu0 0
    %1008 = vmatprep.subr.bf16.mxu0 0
    %1009 = vmatpush1.bf16.msra.mxu0 0
    %1010 = vmatprep.mubr.bf16.mxu0 0
    %1011 = vmatmul.mubr.bf16.gmra.mrb[0].mxu0 %v771
    %v1012 = vpop.f32.mrb[0].mxu0
    %v1013 = vadd.f32 0.0, %v1012
    %v1014 = vpop.f32.mrb[0].mxu0
    %v1015 = vpop.f32.mrb[0].mxu0
    %v1016 = vadd.f32 0.0, %v1015
    %v1017 = vpop.f32.mrb[0].mxu0
    %1018 = vdwg.mxu0
    %1019 = vmatprep.subr.bf16.mxu0 0
    %1020 = vmatpush1.bf16.msra.mxu0 %v545
    %1021 = vmatprep.subr.bf16.mxu0 0
    %1022 = vmatpush1.bf16.msra.mxu0 %v546
    %1023 = vmatprep.subr.bf16.mxu0 0
    %1024 = vmatpush1.bf16.msra.mxu0 0
    %1025 = vmatprep.subr.bf16.mxu0 0
    %1026 = vmatpush1.bf16.msra.mxu0 0
    %1027 = vmatprep.subr.bf16.mxu0 0
    %1028 = vmatpush1.bf16.msra.mxu0 0
    %1029 = vmatprep.subr.bf16.mxu0 0
    %1030 = vmatpush1.bf16.msra.mxu0 0
    %1031 = vmatprep.subr.bf16.mxu0 0
    %1032 = vmatpush1.bf16.msra.mxu0 0
    %1033 = vmatprep.subr.bf16.mxu0 0
    %1034 = vmatpush1.bf16.msra.mxu0 0
    %1035 = vmatprep.subr.bf16.mxu0 0
    %1036 = vmatpush1.bf16.msra.mxu0 0
    %1037 = vmatprep.subr.bf16.mxu0 0
    %1038 = vmatpush1.bf16.msra.mxu0 0
    %1039 = vmatprep.subr.bf16.mxu0 0
    %1040 = vmatpush1.bf16.msra.mxu0 0
    %1041 = vmatprep.subr.bf16.mxu0 0
    %1042 = vmatpush1.bf16.msra.mxu0 0
    %1043 = vmatprep.subr.bf16.mxu0 0
    %1044 = vmatpush1.bf16.msra.mxu0 0
    %1045 = vmatprep.subr.bf16.mxu0 0
    %1046 = vmatpush1.bf16.msra.mxu0 0
    %1047 = vmatprep.subr.bf16.mxu0 0
    %1048 = vmatpush1.bf16.msra.mxu0 0
    %1049 = vmatprep.subr.bf16.mxu0 0
    %1050 = vmatpush1.bf16.msra.mxu0 0
    %1051 = vmatprep.mubr.bf16.mxu0 0
    %1052 = vmatmul.mubr.bf16.gmra.mrb[0].mxu0 %v771
    %v1053 = vpop.f32.mrb[0].mxu0
    %v1054 = vadd.f32 0.0, %v1053
    %v1055 = vpop.f32.mrb[0].mxu0
    %v1056 = vpop.f32.mrb[0].mxu0
    %v1057 = vadd.f32 0.0, %v1056
    %v1058 = vpop.f32.mrb[0].mxu0
    %1059 = vdwg.mxu0
    %1060 = vmatprep.subr.bf16.mxu0 0
    %1061 = vmatpush1.bf16.msra.mxu0 %v603
    %1062 = vmatprep.subr.bf16.mxu0 0
    %1063 = vmatpush1.bf16.msra.mxu0 %v604
    %1064 = vmatprep.subr.bf16.mxu0 0
    %1065 = vmatpush1.bf16.msra.mxu0 0
    %1066 = vmatprep.subr.bf16.mxu0 0
    %1067 = vmatpush1.bf16.msra.mxu0 0
    %1068 = vmatprep.subr.bf16.mxu0 0
    %1069 = vmatpush1.bf16.msra.mxu0 0
    %1070 = vmatprep.subr.bf16.mxu0 0
    %1071 = vmatpush1.bf16.msra.mxu0 0
    %1072 = vmatprep.subr.bf16.mxu0 0
    %1073 = vmatpush1.bf16.msra.mxu0 0
    %1074 = vmatprep.subr.bf16.mxu0 0
    %1075 = vmatpush1.bf16.msra.mxu0 0
    %1076 = vmatprep.subr.bf16.mxu0 0
    %1077 = vmatpush1.bf16.msra.mxu0 0
    %1078 = vmatprep.subr.bf16.mxu0 0
    %1079 = vmatpush1.bf16.msra.mxu0 0
    %1080 = vmatprep.subr.bf16.mxu0 0
    %1081 = vmatpush1.bf16.msra.mxu0 0
    %1082 = vmatprep.subr.bf16.mxu0 0
    %1083 = vmatpush1.bf16.msra.mxu0 0
    %1084 = vmatprep.subr.bf16.mxu0 0
    %1085 = vmatpush1.bf16.msra.mxu0 0
    %1086 = vmatprep.subr.bf16.mxu0 0
    %1087 = vmatpush1.bf16.msra.mxu0 0
    %1088 = vmatprep.subr.bf16.mxu0 0
    %1089 = vmatpush1.bf16.msra.mxu0 0
    %1090 = vmatprep.subr.bf16.mxu0 0
    %1091 = vmatpush1.bf16.msra.mxu0 0
    %1092 = vmatprep.mubr.bf16.mxu0 0
    %1093 = vmatmul.mubr.bf16.gmra.mrb[0].mxu0 %v771
    %v1094 = vpop.f32.mrb[0].mxu0
    %v1095 = vadd.f32 0.0, %v1094
    %v1096 = vpop.f32.mrb[0].mxu0
    %v1097 = vpop.f32.mrb[0].mxu0
    %v1098 = vadd.f32 0.0, %v1097
    %v1099 = vpop.f32.mrb[0].mxu0
    %1100 = vdwg.mxu0
    %v1101 = vpack.c.bf16 %v811, %v808
    %v1102 = vpack.c.bf16 %v852, %v849
    %v1103 = vpack.c.bf16 %v893, %v890
    %v1104 = vpack.c.bf16 %v934, %v931
    %v1105 = vpack.c.bf16 %v975, %v972
    %v1106 = vpack.c.bf16 %v1016, %v1013
    %v1107 = vpack.c.bf16 %v1057, %v1054
    %v1108 = vpack.c.bf16 %v1098, %v1095
    %s1109 = scalar_lea.vmem %s6, 16
    %v1110 = vld [vmem:[%s1109] sm:$0xf]
    %v1111 = vld [vmem:[%s1109 + $0x4] sm:$0xf]
    %v1112 = vld [vmem:[%s1109 + $0x8] sm:$0xf]
    %v1113 = vld [vmem:[%s1109 + $0xc] sm:$0xf]
    %v1118 = vunpack.c.l.b16 %v1110
    %v1119 = vunpack.c.l.b16 %v1111
    %v1120 = vunpack.c.l.b16 %v1112
    %v1121 = vunpack.c.l.b16 %v1113
    %v1122 = vpack.c.b16 %v1119, %v1118
    %v1123 = vpack.c.b16 %v1121, %v1120
    %1126 = vmatprep.subr.bf16.mxu0 0
    %1127 = vmatpush1.bf16.msra.mxu0 %v1122
    %1128 = vmatprep.subr.bf16.mxu0 0
    %1129 = vmatpush1.bf16.msra.mxu0 %v1123
    %1130 = vmatprep.subr.bf16.mxu0 0
    %1131 = vmatpush1.bf16.msra.mxu0 0
    %1132 = vmatprep.subr.bf16.mxu0 0
    %1133 = vmatpush1.bf16.msra.mxu0 0
    %1134 = vmatprep.subr.bf16.mxu0 0
    %1135 = vmatpush1.bf16.msra.mxu0 0
    %1136 = vmatprep.subr.bf16.mxu0 0
    %1137 = vmatpush1.bf16.msra.mxu0 0
    %1138 = vmatprep.subr.bf16.mxu0 0
    %1139 = vmatpush1.bf16.msra.mxu0 0
    %1140 = vmatprep.subr.bf16.mxu0 0
    %1141 = vmatpush1.bf16.msra.mxu0 0
    %1142 = vmatprep.subr.bf16.mxu0 0
    %1143 = vmatpush1.bf16.msra.mxu0 0
    %1144 = vmatprep.subr.bf16.mxu0 0
    %1145 = vmatpush1.bf16.msra.mxu0 0
    %1146 = vmatprep.subr.bf16.mxu0 0
    %1147 = vmatpush1.bf16.msra.mxu0 0
    %1148 = vmatprep.subr.bf16.mxu0 0
    %1149 = vmatpush1.bf16.msra.mxu0 0
    %1150 = vmatprep.subr.bf16.mxu0 0
    %1151 = vmatpush1.bf16.msra.mxu0 0
    %1152 = vmatprep.subr.bf16.mxu0 0
    %1153 = vmatpush1.bf16.msra.mxu0 0
    %1154 = vmatprep.subr.bf16.mxu0 0
    %1155 = vmatpush1.bf16.msra.mxu0 0
    %1156 = vmatprep.subr.bf16.mxu0 0
    %1157 = vmatpush1.bf16.msra.mxu0 0
    %1158 = vmatprep.mubr.bf16.mxu0 0
    %1159 = vmatmul.mubr.bf16.gmra.mrb[0].mxu0 %v771
    %v1160 = vpop.f32.mrb[0].mxu0
    %v1161 = vadd.f32 0.0, %v1160
    %v1162 = vpop.f32.mrb[0].mxu0
    %v1163 = vpop.f32.mrb[0].mxu0
    %v1164 = vadd.f32 0.0, %v1163
    %v1165 = vpop.f32.mrb[0].mxu0
    %1166 = vdwg.mxu0
    %1167 = vmatprep.subr.bf16.mxu0 0
    %1168 = vmatpush1.bf16.msra.mxu0 %v1101
    %1169 = vmatprep.subr.bf16.mxu0 0
    %1170 = vmatpush1.bf16.msra.mxu0 %v1102
    %1171 = vmatprep.subr.bf16.mxu0 0
    %1172 = vmatpush1.bf16.msra.mxu0 %v1103
    %1173 = vmatprep.subr.bf16.mxu0 0
    %1174 = vmatpush1.bf16.msra.mxu0 %v1104
    %1175 = vmatprep.subr.bf16.mxu0 0
    %1176 = vmatpush1.bf16.msra.mxu0 %v1105
    %1177 = vmatprep.subr.bf16.mxu0 0
    %1178 = vmatpush1.bf16.msra.mxu0 %v1106
    %1179 = vmatprep.subr.bf16.mxu0 0
    %1180 = vmatpush1.bf16.msra.mxu0 %v1107
    %1181 = vmatprep.subr.bf16.mxu0 0
    %1182 = vmatpush1.bf16.msra.mxu0 %v1108
    %1183 = vmatprep.subr.bf16.mxu0 0
    %1184 = vmatpush1.bf16.msra.mxu0 0
    %1185 = vmatprep.subr.bf16.mxu0 0
    %1186 = vmatpush1.bf16.msra.mxu0 0
    %1187 = vmatprep.subr.bf16.mxu0 0
    %1188 = vmatpush1.bf16.msra.mxu0 0
    %1189 = vmatprep.subr.bf16.mxu0 0
    %1190 = vmatpush1.bf16.msra.mxu0 0
    %1191 = vmatprep.subr.bf16.mxu0 0
    %1192 = vmatpush1.bf16.msra.mxu0 0
    %1193 = vmatprep.subr.bf16.mxu0 0
    %1194 = vmatpush1.bf16.msra.mxu0 0
    %1195 = vmatprep.subr.bf16.mxu0 0
    %1196 = vmatpush1.bf16.msra.mxu0 0
    %1197 = vmatprep.subr.bf16.mxu0 0
    %1198 = vmatpush1.bf16.msra.mxu0 0
    %1199 = vmatprep.mubr.bf16.mxu0 0
    %1200 = vmatmul.mubr.bf16.gmra.mrb[0].mxu0 %v717
    %v1201 = vpop.f32.mrb[0].mxu0
    %v1202 = vadd.f32 %v1161, %v1201
    %v1203 = vpop.f32.mrb[0].mxu0
    %v1204 = vpop.f32.mrb[0].mxu0
    %v1205 = vadd.f32 %v1164, %v1204
    %v1206 = vpop.f32.mrb[0].mxu0
    %1207 = vdwg.mxu0
    %s1208 = scalar_lea.vmem %s7, 1
    %v1209 = vld [vmem:[%s1208] sm:$0x1]
    %v1211 = vlaneseq
    %v1212 = vshrl.u32 %v1211, 7
    %v1213 = vsub.s32 0, %v1212
    %v1214 = vrot.slane %v1209, %v1213
    %v1216 = vadd.f32 %v1202, %v1214
    %v1217 = vadd.f32 %v1205, %v1214
    %v1218 = vpack.c.bf16 %v1217, %v1216
    %v1220 = vsel %vm197, %v1218, 0
    %1222 = vmatprep.subr.bf16.mxu0 0
    %1223 = vmatpush1.bf16.msra.mxu0 %v193
    %1224 = vmatprep.subr.bf16.mxu0 0
    %1225 = vmatpush1.bf16.msra.mxu0 %v194
    %1226 = vmatprep.subr.bf16.mxu0 0
    %1227 = vmatpush1.bf16.msra.mxu0 0
    %1228 = vmatprep.subr.bf16.mxu0 0
    %1229 = vmatpush1.bf16.msra.mxu0 0
    %1230 = vmatprep.subr.bf16.mxu0 0
    %1231 = vmatpush1.bf16.msra.mxu0 0
    %1232 = vmatprep.subr.bf16.mxu0 0
    %1233 = vmatpush1.bf16.msra.mxu0 0
    %1234 = vmatprep.subr.bf16.mxu0 0
    %1235 = vmatpush1.bf16.msra.mxu0 0
    %1236 = vmatprep.subr.bf16.mxu0 0
    %1237 = vmatpush1.bf16.msra.mxu0 0
    %1238 = vmatprep.subr.bf16.mxu0 0
    %1239 = vmatpush1.bf16.msra.mxu0 0
    %1240 = vmatprep.subr.bf16.mxu0 0
    %1241 = vmatpush1.bf16.msra.mxu0 0
    %1242 = vmatprep.subr.bf16.mxu0 0
    %1243 = vmatpush1.bf16.msra.mxu0 0
    %1244 = vmatprep.subr.bf16.mxu0 0
    %1245 = vmatpush1.bf16.msra.mxu0 0
    %1246 = vmatprep.subr.bf16.mxu0 0
    %1247 = vmatpush1.bf16.msra.mxu0 0
    %1248 = vmatprep.subr.bf16.mxu0 0
    %1249 = vmatpush1.bf16.msra.mxu0 0
    %1250 = vmatprep.subr.bf16.mxu0 0
    %1251 = vmatpush1.bf16.msra.mxu0 0
    %1252 = vmatprep.subr.bf16.mxu0 0
    %1253 = vmatpush1.bf16.msra.mxu0 0
    %1254 = vmatprep.mubr.bf16.mxu0 0
    %1255 = vmatmul.mubr.bf16.gmra.mrb[0].mxu0 %v1220
    %v1256 = vpop.f32.mrb[0].mxu0
    %v1257 = vadd.f32 0.0, %v1256
    %v1258 = vpop.f32.mrb[0].mxu0
    %v1259 = vpop.f32.mrb[0].mxu0
    %v1260 = vadd.f32 0.0, %v1259
    %v1261 = vpop.f32.mrb[0].mxu0
    %1262 = vdwg.mxu0
    %1263 = vmatprep.subr.bf16.mxu0 0
    %1264 = vmatpush1.bf16.msra.mxu0 %v255
    %1265 = vmatprep.subr.bf16.mxu0 0
    %1266 = vmatpush1.bf16.msra.mxu0 %v256
    %1267 = vmatprep.subr.bf16.mxu0 0
    %1268 = vmatpush1.bf16.msra.mxu0 0
    %1269 = vmatprep.subr.bf16.mxu0 0
    %1270 = vmatpush1.bf16.msra.mxu0 0
    %1271 = vmatprep.subr.bf16.mxu0 0
    %1272 = vmatpush1.bf16.msra.mxu0 0
    %1273 = vmatprep.subr.bf16.mxu0 0
    %1274 = vmatpush1.bf16.msra.mxu0 0
    %1275 = vmatprep.subr.bf16.mxu0 0
    %1276 = vmatpush1.bf16.msra.mxu0 0
    %1277 = vmatprep.subr.bf16.mxu0 0
    %1278 = vmatpush1.bf16.msra.mxu0 0
    %1279 = vmatprep.subr.bf16.mxu0 0
    %1280 = vmatpush1.bf16.msra.mxu0 0
    %1281 = vmatprep.subr.bf16.mxu0 0
    %1282 = vmatpush1.bf16.msra.mxu0 0
    %1283 = vmatprep.subr.bf16.mxu0 0
    %1284 = vmatpush1.bf16.msra.mxu0 0
    %1285 = vmatprep.subr.bf16.mxu0 0
    %1286 = vmatpush1.bf16.msra.mxu0 0
    %1287 = vmatprep.subr.bf16.mxu0 0
    %1288 = vmatpush1.bf16.msra.mxu0 0
    %1289 = vmatprep.subr.bf16.mxu0 0
    %1290 = vmatpush1.bf16.msra.mxu0 0
    %1291 = vmatprep.subr.bf16.mxu0 0
    %1292 = vmatpush1.bf16.msra.mxu0 0
    %1293 = vmatprep.subr.bf16.mxu0 0
    %1294 = vmatpush1.bf16.msra.mxu0 0
    %1295 = vmatprep.mubr.bf16.mxu0 0
    %1296 = vmatmul.mubr.bf16.gmra.mrb[0].mxu0 %v1220
    %v1297 = vpop.f32.mrb[0].mxu0
    %v1298 = vadd.f32 0.0, %v1297
    %v1299 = vpop.f32.mrb[0].mxu0
    %v1300 = vpop.f32.mrb[0].mxu0
    %v1301 = vadd.f32 0.0, %v1300
    %v1302 = vpop.f32.mrb[0].mxu0
    %1303 = vdwg.mxu0
    %1304 = vmatprep.subr.bf16.mxu0 0
    %1305 = vmatpush1.bf16.msra.mxu0 %v313
    %1306 = vmatprep.subr.bf16.mxu0 0
    %1307 = vmatpush1.bf16.msra.mxu0 %v314
    %1308 = vmatprep.subr.bf16.mxu0 0
    %1309 = vmatpush1.bf16.msra.mxu0 0
    %1310 = vmatprep.subr.bf16.mxu0 0
    %1311 = vmatpush1.bf16.msra.mxu0 0
    %1312 = vmatprep.subr.bf16.mxu0 0
    %1313 = vmatpush1.bf16.msra.mxu0 0
    %1314 = vmatprep.subr.bf16.mxu0 0
    %1315 = vmatpush1.bf16.msra.mxu0 0
    %1316 = vmatprep.subr.bf16.mxu0 0
    %1317 = vmatpush1.bf16.msra.mxu0 0
    %1318 = vmatprep.subr.bf16.mxu0 0
    %1319 = vmatpush1.bf16.msra.mxu0 0
    %1320 = vmatprep.subr.bf16.mxu0 0
    %1321 = vmatpush1.bf16.msra.mxu0 0
    %1322 = vmatprep.subr.bf16.mxu0 0
    %1323 = vmatpush1.bf16.msra.mxu0 0
    %1324 = vmatprep.subr.bf16.mxu0 0
    %1325 = vmatpush1.bf16.msra.mxu0 0
    %1326 = vmatprep.subr.bf16.mxu0 0
    %1327 = vmatpush1.bf16.msra.mxu0 0
    %1328 = vmatprep.subr.bf16.mxu0 0
    %1329 = vmatpush1.bf16.msra.mxu0 0
    %1330 = vmatprep.subr.bf16.mxu0 0
    %1331 = vmatpush1.bf16.msra.mxu0 0
    %1332 = vmatprep.subr.bf16.mxu0 0
    %1333 = vmatpush1.bf16.msra.mxu0 0
    %1334 = vmatprep.subr.bf16.mxu0 0
    %1335 = vmatpush1.bf16.msra.mxu0 0
    %1336 = vmatprep.mubr.bf16.mxu0 0
    %1337 = vmatmul.mubr.bf16.gmra.mrb[0].mxu0 %v1220
    %v1338 = vpop.f32.mrb[0].mxu0
    %v1339 = vadd.f32 0.0, %v1338
    %v1340 = vpop.f32.mrb[0].mxu0
    %v1341 = vpop.f32.mrb[0].mxu0
    %v1342 = vadd.f32 0.0, %v1341
    %v1343 = vpop.f32.mrb[0].mxu0
    %1344 = vdwg.mxu0
    %1345 = vmatprep.subr.bf16.mxu0 0
    %1346 = vmatpush1.bf16.msra.mxu0 %v371
    %1347 = vmatprep.subr.bf16.mxu0 0
    %1348 = vmatpush1.bf16.msra.mxu0 %v372
    %1349 = vmatprep.subr.bf16.mxu0 0
    %1350 = vmatpush1.bf16.msra.mxu0 0
    %1351 = vmatprep.subr.bf16.mxu0 0
    %1352 = vmatpush1.bf16.msra.mxu0 0
    %1353 = vmatprep.subr.bf16.mxu0 0
    %1354 = vmatpush1.bf16.msra.mxu0 0
    %1355 = vmatprep.subr.bf16.mxu0 0
    %1356 = vmatpush1.bf16.msra.mxu0 0
    %1357 = vmatprep.subr.bf16.mxu0 0
    %1358 = vmatpush1.bf16.msra.mxu0 0
    %1359 = vmatprep.subr.bf16.mxu0 0
    %1360 = vmatpush1.bf16.msra.mxu0 0
    %1361 = vmatprep.subr.bf16.mxu0 0
    %1362 = vmatpush1.bf16.msra.mxu0 0
    %1363 = vmatprep.subr.bf16.mxu0 0
    %1364 = vmatpush1.bf16.msra.mxu0 0
    %1365 = vmatprep.subr.bf16.mxu0 0
    %1366 = vmatpush1.bf16.msra.mxu0 0
    %1367 = vmatprep.subr.bf16.mxu0 0
    %1368 = vmatpush1.bf16.msra.mxu0 0
    %1369 = vmatprep.subr.bf16.mxu0 0
    %1370 = vmatpush1.bf16.msra.mxu0 0
    %1371 = vmatprep.subr.bf16.mxu0 0
    %1372 = vmatpush1.bf16.msra.mxu0 0
    %1373 = vmatprep.subr.bf16.mxu0 0
    %1374 = vmatpush1.bf16.msra.mxu0 0
    %1375 = vmatprep.subr.bf16.mxu0 0
    %1376 = vmatpush1.bf16.msra.mxu0 0
    %1377 = vmatprep.mubr.bf16.mxu0 0
    %1378 = vmatmul.mubr.bf16.gmra.mrb[0].mxu0 %v1220
    %v1379 = vpop.f32.mrb[0].mxu0
    %v1380 = vadd.f32 0.0, %v1379
    %v1381 = vpop.f32.mrb[0].mxu0
    %v1382 = vpop.f32.mrb[0].mxu0
    %v1383 = vadd.f32 0.0, %v1382
    %v1384 = vpop.f32.mrb[0].mxu0
    %1385 = vdwg.mxu0
    %1386 = vmatprep.subr.bf16.mxu0 0
    %1387 = vmatpush1.bf16.msra.mxu0 %v429
    %1388 = vmatprep.subr.bf16.mxu0 0
    %1389 = vmatpush1.bf16.msra.mxu0 %v430
    %1390 = vmatprep.subr.bf16.mxu0 0
    %1391 = vmatpush1.bf16.msra.mxu0 0
    %1392 = vmatprep.subr.bf16.mxu0 0
    %1393 = vmatpush1.bf16.msra.mxu0 0
    %1394 = vmatprep.subr.bf16.mxu0 0
    %1395 = vmatpush1.bf16.msra.mxu0 0
    %1396 = vmatprep.subr.bf16.mxu0 0
    %1397 = vmatpush1.bf16.msra.mxu0 0
    %1398 = vmatprep.subr.bf16.mxu0 0
    %1399 = vmatpush1.bf16.msra.mxu0 0
    %1400 = vmatprep.subr.bf16.mxu0 0
    %1401 = vmatpush1.bf16.msra.mxu0 0
    %1402 = vmatprep.subr.bf16.mxu0 0
    %1403 = vmatpush1.bf16.msra.mxu0 0
    %1404 = vmatprep.subr.bf16.mxu0 0
    %1405 = vmatpush1.bf16.msra.mxu0 0
    %1406 = vmatprep.subr.bf16.mxu0 0
    %1407 = vmatpush1.bf16.msra.mxu0 0
    %1408 = vmatprep.subr.bf16.mxu0 0
    %1409 = vmatpush1.bf16.msra.mxu0 0
    %1410 = vmatprep.subr.bf16.mxu0 0
    %1411 = vmatpush1.bf16.msra.mxu0 0
    %1412 = vmatprep.subr.bf16.mxu0 0
    %1413 = vmatpush1.bf16.msra.mxu0 0
    %1414 = vmatprep.subr.bf16.mxu0 0
    %1415 = vmatpush1.bf16.msra.mxu0 0
    %1416 = vmatprep.subr.bf16.mxu0 0
    %1417 = vmatpush1.bf16.msra.mxu0 0
    %1418 = vmatprep.mubr.bf16.mxu0 0
    %1419 = vmatmul.mubr.bf16.gmra.mrb[0].mxu0 %v1220
    %v1420 = vpop.f32.mrb[0].mxu0
    %v1421 = vadd.f32 0.0, %v1420
    %v1422 = vpop.f32.mrb[0].mxu0
    %v1423 = vpop.f32.mrb[0].mxu0
    %v1424 = vadd.f32 0.0, %v1423
    %v1425 = vpop.f32.mrb[0].mxu0
    %1426 = vdwg.mxu0
    %1427 = vmatprep.subr.bf16.mxu0 0
    %1428 = vmatpush1.bf16.msra.mxu0 %v487
    %1429 = vmatprep.subr.bf16.mxu0 0
    %1430 = vmatpush1.bf16.msra.mxu0 %v488
    %1431 = vmatprep.subr.bf16.mxu0 0
    %1432 = vmatpush1.bf16.msra.mxu0 0
    %1433 = vmatprep.subr.bf16.mxu0 0
    %1434 = vmatpush1.bf16.msra.mxu0 0
    %1435 = vmatprep.subr.bf16.mxu0 0
    %1436 = vmatpush1.bf16.msra.mxu0 0
    %1437 = vmatprep.subr.bf16.mxu0 0
    %1438 = vmatpush1.bf16.msra.mxu0 0
    %1439 = vmatprep.subr.bf16.mxu0 0
    %1440 = vmatpush1.bf16.msra.mxu0 0
    %1441 = vmatprep.subr.bf16.mxu0 0
    %1442 = vmatpush1.bf16.msra.mxu0 0
    %1443 = vmatprep.subr.bf16.mxu0 0
    %1444 = vmatpush1.bf16.msra.mxu0 0
    %1445 = vmatprep.subr.bf16.mxu0 0
    %1446 = vmatpush1.bf16.msra.mxu0 0
    %1447 = vmatprep.subr.bf16.mxu0 0
    %1448 = vmatpush1.bf16.msra.mxu0 0
    %1449 = vmatprep.subr.bf16.mxu0 0
    %1450 = vmatpush1.bf16.msra.mxu0 0
    %1451 = vmatprep.subr.bf16.mxu0 0
    %1452 = vmatpush1.bf16.msra.mxu0 0
    %1453 = vmatprep.subr.bf16.mxu0 0
    %1454 = vmatpush1.bf16.msra.mxu0 0
    %1455 = vmatprep.subr.bf16.mxu0 0
    %1456 = vmatpush1.bf16.msra.mxu0 0
    %1457 = vmatprep.subr.bf16.mxu0 0
    %1458 = vmatpush1.bf16.msra.mxu0 0
    %1459 = vmatprep.mubr.bf16.mxu0 0
    %1460 = vmatmul.mubr.bf16.gmra.mrb[0].mxu0 %v1220
    %v1461 = vpop.f32.mrb[0].mxu0
    %v1462 = vadd.f32 0.0, %v1461
    %v1463 = vpop.f32.mrb[0].mxu0
    %v1464 = vpop.f32.mrb[0].mxu0
    %v1465 = vadd.f32 0.0, %v1464
    %v1466 = vpop.f32.mrb[0].mxu0
    %1467 = vdwg.mxu0
    %1468 = vmatprep.subr.bf16.mxu0 0
    %1469 = vmatpush1.bf16.msra.mxu0 %v545
    %1470 = vmatprep.subr.bf16.mxu0 0
    %1471 = vmatpush1.bf16.msra.mxu0 %v546
    %1472 = vmatprep.subr.bf16.mxu0 0
    %1473 = vmatpush1.bf16.msra.mxu0 0
    %1474 = vmatprep.subr.bf16.mxu0 0
    %1475 = vmatpush1.bf16.msra.mxu0 0
    %1476 = vmatprep.subr.bf16.mxu0 0
    %1477 = vmatpush1.bf16.msra.mxu0 0
    %1478 = vmatprep.subr.bf16.mxu0 0
    %1479 = vmatpush1.bf16.msra.mxu0 0
    %1480 = vmatprep.subr.bf16.mxu0 0
    %1481 = vmatpush1.bf16.msra.mxu0 0
    %1482 = vmatprep.subr.bf16.mxu0 0
    %1483 = vmatpush1.bf16.msra.mxu0 0
    %1484 = vmatprep.subr.bf16.mxu0 0
    %1485 = vmatpush1.bf16.msra.mxu0 0
    %1486 = vmatprep.subr.bf16.mxu0 0
    %1487 = vmatpush1.bf16.msra.mxu0 0
    %1488 = vmatprep.subr.bf16.mxu0 0
    %1489 = vmatpush1.bf16.msra.mxu0 0
    %1490 = vmatprep.subr.bf16.mxu0 0
    %1491 = vmatpush1.bf16.msra.mxu0 0
    %1492 = vmatprep.subr.bf16.mxu0 0
    %1493 = vmatpush1.bf16.msra.mxu0 0
    %1494 = vmatprep.subr.bf16.mxu0 0
    %1495 = vmatpush1.bf16.msra.mxu0 0
    %1496 = vmatprep.subr.bf16.mxu0 0
    %1497 = vmatpush1.bf16.msra.mxu0 0
    %1498 = vmatprep.subr.bf16.mxu0 0
    %1499 = vmatpush1.bf16.msra.mxu0 0
    %1500 = vmatprep.mubr.bf16.mxu0 0
    %1501 = vmatmul.mubr.bf16.gmra.mrb[0].mxu0 %v1220
    %v1502 = vpop.f32.mrb[0].mxu0
    %v1503 = vadd.f32 0.0, %v1502
    %v1504 = vpop.f32.mrb[0].mxu0
    %v1505 = vpop.f32.mrb[0].mxu0
    %v1506 = vadd.f32 0.0, %v1505
    %v1507 = vpop.f32.mrb[0].mxu0
    %1508 = vdwg.mxu0
    %1509 = vmatprep.subr.bf16.mxu0 0
    %1510 = vmatpush1.bf16.msra.mxu0 %v603
    %1511 = vmatprep.subr.bf16.mxu0 0
    %1512 = vmatpush1.bf16.msra.mxu0 %v604
    %1513 = vmatprep.subr.bf16.mxu0 0
    %1514 = vmatpush1.bf16.msra.mxu0 0
    %1515 = vmatprep.subr.bf16.mxu0 0
    %1516 = vmatpush1.bf16.msra.mxu0 0
    %1517 = vmatprep.subr.bf16.mxu0 0
    %1518 = vmatpush1.bf16.msra.mxu0 0
    %1519 = vmatprep.subr.bf16.mxu0 0
    %1520 = vmatpush1.bf16.msra.mxu0 0
    %1521 = vmatprep.subr.bf16.mxu0 0
    %1522 = vmatpush1.bf16.msra.mxu0 0
    %1523 = vmatprep.subr.bf16.mxu0 0
    %1524 = vmatpush1.bf16.msra.mxu0 0
    %1525 = vmatprep.subr.bf16.mxu0 0
    %1526 = vmatpush1.bf16.msra.mxu0 0
    %1527 = vmatprep.subr.bf16.mxu0 0
    %1528 = vmatpush1.bf16.msra.mxu0 0
    %1529 = vmatprep.subr.bf16.mxu0 0
    %1530 = vmatpush1.bf16.msra.mxu0 0
    %1531 = vmatprep.subr.bf16.mxu0 0
    %1532 = vmatpush1.bf16.msra.mxu0 0
    %1533 = vmatprep.subr.bf16.mxu0 0
    %1534 = vmatpush1.bf16.msra.mxu0 0
    %1535 = vmatprep.subr.bf16.mxu0 0
    %1536 = vmatpush1.bf16.msra.mxu0 0
    %1537 = vmatprep.subr.bf16.mxu0 0
    %1538 = vmatpush1.bf16.msra.mxu0 0
    %1539 = vmatprep.subr.bf16.mxu0 0
    %1540 = vmatpush1.bf16.msra.mxu0 0
    %1541 = vmatprep.mubr.bf16.mxu0 0
    %1542 = vmatmul.mubr.bf16.gmra.mrb[0].mxu0 %v1220
    %v1543 = vpop.f32.mrb[0].mxu0
    %v1544 = vadd.f32 0.0, %v1543
    %v1545 = vpop.f32.mrb[0].mxu0
    %v1546 = vpop.f32.mrb[0].mxu0
    %v1547 = vadd.f32 0.0, %v1546
    %v1548 = vpop.f32.mrb[0].mxu0
    %1549 = vdwg.mxu0
    %v1550 = vpack.c.bf16 %v1260, %v1257
    %v1551 = vpack.c.bf16 %v1301, %v1298
    %v1552 = vpack.c.bf16 %v1342, %v1339
    %v1553 = vpack.c.bf16 %v1383, %v1380
    %v1554 = vpack.c.bf16 %v1424, %v1421
    %v1555 = vpack.c.bf16 %v1465, %v1462
    %v1556 = vpack.c.bf16 %v1506, %v1503
    %v1557 = vpack.c.bf16 %v1547, %v1544
    %s1558 = scalar_lea.vmem %s6, 32
    %v1559 = vld [vmem:[%s1558] sm:$0xf]
    %v1560 = vld [vmem:[%s1558 + $0x4] sm:$0xf]
    %v1561 = vld [vmem:[%s1558 + $0x8] sm:$0xf]
    %v1562 = vld [vmem:[%s1558 + $0xc] sm:$0xf]
    %v1567 = vunpack.c.l.b16 %v1559
    %v1568 = vunpack.c.l.b16 %v1560
    %v1569 = vunpack.c.l.b16 %v1561
    %v1570 = vunpack.c.l.b16 %v1562
    %v1571 = vpack.c.b16 %v1568, %v1567
    %v1572 = vpack.c.b16 %v1570, %v1569
    %1575 = vmatprep.subr.bf16.mxu0 0
    %1576 = vmatpush1.bf16.msra.mxu0 %v1571
    %1577 = vmatprep.subr.bf16.mxu0 0
    %1578 = vmatpush1.bf16.msra.mxu0 %v1572
    %1579 = vmatprep.subr.bf16.mxu0 0
    %1580 = vmatpush1.bf16.msra.mxu0 0
    %1581 = vmatprep.subr.bf16.mxu0 0
    %1582 = vmatpush1.bf16.msra.mxu0 0
    %1583 = vmatprep.subr.bf16.mxu0 0
    %1584 = vmatpush1.bf16.msra.mxu0 0
    %1585 = vmatprep.subr.bf16.mxu0 0
    %1586 = vmatpush1.bf16.msra.mxu0 0
    %1587 = vmatprep.subr.bf16.mxu0 0
    %1588 = vmatpush1.bf16.msra.mxu0 0
    %1589 = vmatprep.subr.bf16.mxu0 0
    %1590 = vmatpush1.bf16.msra.mxu0 0
    %1591 = vmatprep.subr.bf16.mxu0 0
    %1592 = vmatpush1.bf16.msra.mxu0 0
    %1593 = vmatprep.subr.bf16.mxu0 0
    %1594 = vmatpush1.bf16.msra.mxu0 0
    %1595 = vmatprep.subr.bf16.mxu0 0
    %1596 = vmatpush1.bf16.msra.mxu0 0
    %1597 = vmatprep.subr.bf16.mxu0 0
    %1598 = vmatpush1.bf16.msra.mxu0 0
    %1599 = vmatprep.subr.bf16.mxu0 0
    %1600 = vmatpush1.bf16.msra.mxu0 0
    %1601 = vmatprep.subr.bf16.mxu0 0
    %1602 = vmatpush1.bf16.msra.mxu0 0
    %1603 = vmatprep.subr.bf16.mxu0 0
    %1604 = vmatpush1.bf16.msra.mxu0 0
    %1605 = vmatprep.subr.bf16.mxu0 0
    %1606 = vmatpush1.bf16.msra.mxu0 0
    %1607 = vmatprep.mubr.bf16.mxu0 0
    %1608 = vmatmul.mubr.bf16.gmra.mrb[0].mxu0 %v1220
    %v1609 = vpop.f32.mrb[0].mxu0
    %v1610 = vadd.f32 0.0, %v1609
    %v1611 = vpop.f32.mrb[0].mxu0
    %v1612 = vpop.f32.mrb[0].mxu0
    %v1613 = vadd.f32 0.0, %v1612
    %v1614 = vpop.f32.mrb[0].mxu0
    %1615 = vdwg.mxu0
    %1616 = vmatprep.subr.bf16.mxu0 0
    %1617 = vmatpush1.bf16.msra.mxu0 %v1550
    %1618 = vmatprep.subr.bf16.mxu0 0
    %1619 = vmatpush1.bf16.msra.mxu0 %v1551
    %1620 = vmatprep.subr.bf16.mxu0 0
    %1621 = vmatpush1.bf16.msra.mxu0 %v1552
    %1622 = vmatprep.subr.bf16.mxu0 0
    %1623 = vmatpush1.bf16.msra.mxu0 %v1553
    %1624 = vmatprep.subr.bf16.mxu0 0
    %1625 = vmatpush1.bf16.msra.mxu0 %v1554
    %1626 = vmatprep.subr.bf16.mxu0 0
    %1627 = vmatpush1.bf16.msra.mxu0 %v1555
    %1628 = vmatprep.subr.bf16.mxu0 0
    %1629 = vmatpush1.bf16.msra.mxu0 %v1556
    %1630 = vmatprep.subr.bf16.mxu0 0
    %1631 = vmatpush1.bf16.msra.mxu0 %v1557
    %1632 = vmatprep.subr.bf16.mxu0 0
    %1633 = vmatpush1.bf16.msra.mxu0 0
    %1634 = vmatprep.subr.bf16.mxu0 0
    %1635 = vmatpush1.bf16.msra.mxu0 0
    %1636 = vmatprep.subr.bf16.mxu0 0
    %1637 = vmatpush1.bf16.msra.mxu0 0
    %1638 = vmatprep.subr.bf16.mxu0 0
    %1639 = vmatpush1.bf16.msra.mxu0 0
    %1640 = vmatprep.subr.bf16.mxu0 0
    %1641 = vmatpush1.bf16.msra.mxu0 0
    %1642 = vmatprep.subr.bf16.mxu0 0
    %1643 = vmatpush1.bf16.msra.mxu0 0
    %1644 = vmatprep.subr.bf16.mxu0 0
    %1645 = vmatpush1.bf16.msra.mxu0 0
    %1646 = vmatprep.subr.bf16.mxu0 0
    %1647 = vmatpush1.bf16.msra.mxu0 0
    %1648 = vmatprep.mubr.bf16.mxu0 0
    %1649 = vmatmul.mubr.bf16.gmra.mrb[0].mxu0 %v717
    %v1650 = vpop.f32.mrb[0].mxu0
    %v1651 = vadd.f32 %v1610, %v1650
    %v1652 = vpop.f32.mrb[0].mxu0
    %v1653 = vpop.f32.mrb[0].mxu0
    %v1654 = vadd.f32 %v1613, %v1653
    %v1655 = vpop.f32.mrb[0].mxu0
    %1656 = vdwg.mxu0
    %s1657 = scalar_lea.vmem %s7, 2
    %v1658 = vld [vmem:[%s1657] sm:$0x1]
    %v1660 = vlaneseq
    %v1661 = vshrl.u32 %v1660, 7
    %v1662 = vsub.s32 0, %v1661
    %v1663 = vrot.slane %v1658, %v1662
    %v1665 = vadd.f32 %v1651, %v1663
    %v1666 = vadd.f32 %v1654, %v1663
    %v1667 = vld [vmem:[%s2] sm:$0x3]
    %v1668 = vsub.f32 1.0, %v1667
    %v1669 = vmul.f32 %v1668, -1e+30
    %v1670 = vld [vmem:[%s8] sm:$0xff]
    %v1671 = vld [vmem:[%s8 + $0x8] sm:$0xff]
    %v1672 = vld [vmem:[%s8 + $0x10] sm:$0xff]
    %v1673 = vld [vmem:[%s8 + $0x18] sm:$0xff]
    %v1674 = vld [vmem:[%s9] sm:$0xff]
    %v1675 = vld [vmem:[%s9 + $0x8] sm:$0xff]
    %v1676 = vld [vmem:[%s9 + $0x10] sm:$0xff]
    %v1677 = vld [vmem:[%s9 + $0x18] sm:$0xff]
    %v1679 = vsel %vm197, 0.0, 0
    %1681 = vmatprep.subr.mxu0 0.0
    %1682 = vmatpush1.msra.mxu0 %v1674
    %1683 = vmatprep.subr.mxu0 0.0
    %1684 = vmatpush1.msra.mxu0 %v1675
    %1685 = vmatprep.subr.mxu0 0.0
    %1686 = vmatpush1.msra.mxu0 %v1676
    %1687 = vmatprep.subr.mxu0 0.0
    %1688 = vmatpush1.msra.mxu0 %v1677
    %1689 = vmatprep.subr.mxu0 0.0
    %1690 = vmatpush1.msra.mxu0 0.0
    %1691 = vmatprep.subr.mxu0 0.0
    %1692 = vmatpush1.msra.mxu0 0.0
    %1693 = vmatprep.subr.mxu0 0.0
    %1694 = vmatpush1.msra.mxu0 0.0
    %1695 = vmatprep.subr.mxu0 0.0
    %1696 = vmatpush1.msra.mxu0 0.0
    %1697 = vmatprep.subr.mxu0 0.0
    %1698 = vmatpush1.msra.mxu0 0.0
    %1699 = vmatprep.subr.mxu0 0.0
    %1700 = vmatpush1.msra.mxu0 0.0
    %1701 = vmatprep.subr.mxu0 0.0
    %1702 = vmatpush1.msra.mxu0 0.0
    %1703 = vmatprep.subr.mxu0 0.0
    %1704 = vmatpush1.msra.mxu0 0.0
    %1705 = vmatprep.subr.mxu0 0.0
    %1706 = vmatpush1.msra.mxu0 0.0
    %1707 = vmatprep.subr.mxu0 0.0
    %1708 = vmatpush1.msra.mxu0 0.0
    %1709 = vmatprep.subr.mxu0 0.0
    %1710 = vmatpush1.msra.mxu0 0.0
    %1711 = vmatprep.subr.mxu0 0.0
    %1712 = vmatpush1.msra.mxu0 0.0
    %1713 = vmatprep.subr.mxu0 0.0
    %1714 = vmatpush1.msra.mxu0 0.0
    %1715 = vmatprep.subr.mxu0 0.0
    %1716 = vmatpush1.msra.mxu0 0.0
    %1717 = vmatprep.subr.mxu0 0.0
    %1718 = vmatpush1.msra.mxu0 0.0
    %1719 = vmatprep.subr.mxu0 0.0
    %1720 = vmatpush1.msra.mxu0 0.0
    %1721 = vmatprep.subr.mxu0 0.0
    %1722 = vmatpush1.msra.mxu0 0.0
    %1723 = vmatprep.subr.mxu0 0.0
    %1724 = vmatpush1.msra.mxu0 0.0
    %1725 = vmatprep.subr.mxu0 0.0
    %1726 = vmatpush1.msra.mxu0 0.0
    %1727 = vmatprep.subr.mxu0 0.0
    %1728 = vmatpush1.msra.mxu0 0.0
    %1729 = vmatprep.subr.mxu0 0.0
    %1730 = vmatpush1.msra.mxu0 0.0
    %1731 = vmatprep.subr.mxu0 0.0
    %1732 = vmatpush1.msra.mxu0 0.0
    %1733 = vmatprep.subr.mxu0 0.0
    %1734 = vmatpush1.msra.mxu0 0.0
    %1735 = vmatprep.subr.mxu0 0.0
    %1736 = vmatpush1.msra.mxu0 0.0
    %1737 = vmatprep.subr.mxu0 0.0
    %1738 = vmatpush1.msra.mxu0 0.0
    %1739 = vmatprep.subr.mxu0 0.0
    %1740 = vmatpush1.msra.mxu0 0.0
    %1741 = vmatprep.subr.mxu0 0.0
    %1742 = vmatpush1.msra.mxu0 0.0
    %1743 = vmatprep.subr.mxu0 0.0
    %1744 = vmatpush1.msra.mxu0 0.0
    %1745 = vmatprep.mubr.f32.mxu0 0.0
    %1746 = vmatmul.mubr.f32.gmra.mrb[0].mxu0 %v1679
    %v1747 = vpop.f32.mrb[0].mxu0
    %v1748 = vadd.f32 0.0, %v1747
    %v1749 = vpop.f32.mrb[0].mxu0
    %1750 = vdwg.mxu0
    %1751 = vmatprep.subr.mxu0 0.0
    %1752 = vmatpush1.msra.mxu0 %v1670
    %1753 = vmatprep.subr.mxu0 0.0
    %1754 = vmatpush1.msra.mxu0 %v1671
    %1755 = vmatprep.subr.mxu0 0.0
    %1756 = vmatpush1.msra.mxu0 %v1672
    %1757 = vmatprep.subr.mxu0 0.0
    %1758 = vmatpush1.msra.mxu0 %v1673
    %1759 = vmatprep.subr.mxu0 0.0
    %1760 = vmatpush1.msra.mxu0 0.0
    %1761 = vmatprep.subr.mxu0 0.0
    %1762 = vmatpush1.msra.mxu0 0.0
    %1763 = vmatprep.subr.mxu0 0.0
    %1764 = vmatpush1.msra.mxu0 0.0
    %1765 = vmatprep.subr.mxu0 0.0
    %1766 = vmatpush1.msra.mxu0 0.0
    %1767 = vmatprep.subr.mxu0 0.0
    %1768 = vmatpush1.msra.mxu0 0.0
    %1769 = vmatprep.subr.mxu0 0.0
    %1770 = vmatpush1.msra.mxu0 0.0
    %1771 = vmatprep.subr.mxu0 0.0
    %1772 = vmatpush1.msra.mxu0 0.0
    %1773 = vmatprep.subr.mxu0 0.0
    %1774 = vmatpush1.msra.mxu0 0.0
    %1775 = vmatprep.subr.mxu0 0.0
    %1776 = vmatpush1.msra.mxu0 0.0
    %1777 = vmatprep.subr.mxu0 0.0
    %1778 = vmatpush1.msra.mxu0 0.0
    %1779 = vmatprep.subr.mxu0 0.0
    %1780 = vmatpush1.msra.mxu0 0.0
    %1781 = vmatprep.subr.mxu0 0.0
    %1782 = vmatpush1.msra.mxu0 0.0
    %1783 = vmatprep.subr.mxu0 0.0
    %1784 = vmatpush1.msra.mxu0 0.0
    %1785 = vmatprep.subr.mxu0 0.0
    %1786 = vmatpush1.msra.mxu0 0.0
    %1787 = vmatprep.subr.mxu0 0.0
    %1788 = vmatpush1.msra.mxu0 0.0
    %1789 = vmatprep.subr.mxu0 0.0
    %1790 = vmatpush1.msra.mxu0 0.0
    %1791 = vmatprep.subr.mxu0 0.0
    %1792 = vmatpush1.msra.mxu0 0.0
    %1793 = vmatprep.subr.mxu0 0.0
    %1794 = vmatpush1.msra.mxu0 0.0
    %1795 = vmatprep.subr.mxu0 0.0
    %1796 = vmatpush1.msra.mxu0 0.0
    %1797 = vmatprep.subr.mxu0 0.0
    %1798 = vmatpush1.msra.mxu0 0.0
    %1799 = vmatprep.subr.mxu0 0.0
    %1800 = vmatpush1.msra.mxu0 0.0
    %1801 = vmatprep.subr.mxu0 0.0
    %1802 = vmatpush1.msra.mxu0 0.0
    %1803 = vmatprep.subr.mxu0 0.0
    %1804 = vmatpush1.msra.mxu0 0.0
    %1805 = vmatprep.subr.mxu0 0.0
    %1806 = vmatpush1.msra.mxu0 0.0
    %1807 = vmatprep.subr.mxu0 0.0
    %1808 = vmatpush1.msra.mxu0 0.0
    %1809 = vmatprep.subr.mxu0 0.0
    %1810 = vmatpush1.msra.mxu0 0.0
    %1811 = vmatprep.subr.mxu0 0.0
    %1812 = vmatpush1.msra.mxu0 0.0
    %1813 = vmatprep.subr.mxu0 0.0
    %1814 = vmatpush1.msra.mxu0 0.0
    %1815 = vmatprep.mubr.f32.mxu0 0.0
    %1816 = vmatmul.mubr.f32.gmra.mrb[0].mxu0 %v1679
    %v1817 = vpop.f32.mrb[0].mxu0
    %v1818 = vadd.f32 %v1748, %v1817
    %v1819 = vpop.f32.mrb[0].mxu0
    %1820 = vdwg.mxu0
    %v1821 = vld [vmem:[%s10] sm:$0xff]
    %v1822 = vld [vmem:[%s10 + $0x8] sm:$0xff]
    %v1823 = vld [vmem:[%s10 + $0x10] sm:$0xff]
    %v1824 = vld [vmem:[%s10 + $0x18] sm:$0xff]
    %1825 = vmatprep.subr.mxu0 0.0
    %1826 = vmatpush1.msra.mxu0 %v1821
    %1827 = vmatprep.subr.mxu0 0.0
    %1828 = vmatpush1.msra.mxu0 %v1822
    %1829 = vmatprep.subr.mxu0 0.0
    %1830 = vmatpush1.msra.mxu0 %v1823
    %1831 = vmatprep.subr.mxu0 0.0
    %1832 = vmatpush1.msra.mxu0 %v1824
    %1833 = vmatprep.subr.mxu0 0.0
    %1834 = vmatpush1.msra.mxu0 0.0
    %1835 = vmatprep.subr.mxu0 0.0
    %1836 = vmatpush1.msra.mxu0 0.0
    %1837 = vmatprep.subr.mxu0 0.0
    %1838 = vmatpush1.msra.mxu0 0.0
    %1839 = vmatprep.subr.mxu0 0.0
    %1840 = vmatpush1.msra.mxu0 0.0
    %1841 = vmatprep.subr.mxu0 0.0
    %1842 = vmatpush1.msra.mxu0 0.0
    %1843 = vmatprep.subr.mxu0 0.0
    %1844 = vmatpush1.msra.mxu0 0.0
    %1845 = vmatprep.subr.mxu0 0.0
    %1846 = vmatpush1.msra.mxu0 0.0
    %1847 = vmatprep.subr.mxu0 0.0
    %1848 = vmatpush1.msra.mxu0 0.0
    %1849 = vmatprep.subr.mxu0 0.0
    %1850 = vmatpush1.msra.mxu0 0.0
    %1851 = vmatprep.subr.mxu0 0.0
    %1852 = vmatpush1.msra.mxu0 0.0
    %1853 = vmatprep.subr.mxu0 0.0
    %1854 = vmatpush1.msra.mxu0 0.0
    %1855 = vmatprep.subr.mxu0 0.0
    %1856 = vmatpush1.msra.mxu0 0.0
    %1857 = vmatprep.subr.mxu0 0.0
    %1858 = vmatpush1.msra.mxu0 0.0
    %1859 = vmatprep.subr.mxu0 0.0
    %1860 = vmatpush1.msra.mxu0 0.0
    %1861 = vmatprep.subr.mxu0 0.0
    %1862 = vmatpush1.msra.mxu0 0.0
    %1863 = vmatprep.subr.mxu0 0.0
    %1864 = vmatpush1.msra.mxu0 0.0
    %1865 = vmatprep.subr.mxu0 0.0
    %1866 = vmatpush1.msra.mxu0 0.0
    %1867 = vmatprep.subr.mxu0 0.0
    %1868 = vmatpush1.msra.mxu0 0.0
    %1869 = vmatprep.subr.mxu0 0.0
    %1870 = vmatpush1.msra.mxu0 0.0
    %1871 = vmatprep.subr.mxu0 0.0
    %1872 = vmatpush1.msra.mxu0 0.0
    %1873 = vmatprep.subr.mxu0 0.0
    %1874 = vmatpush1.msra.mxu0 0.0
    %1875 = vmatprep.subr.mxu0 0.0
    %1876 = vmatpush1.msra.mxu0 0.0
    %1877 = vmatprep.subr.mxu0 0.0
    %1878 = vmatpush1.msra.mxu0 0.0
    %1879 = vmatprep.subr.mxu0 0.0
    %1880 = vmatpush1.msra.mxu0 0.0
    %1881 = vmatprep.subr.mxu0 0.0
    %1882 = vmatpush1.msra.mxu0 0.0
    %1883 = vmatprep.subr.mxu0 0.0
    %1884 = vmatpush1.msra.mxu0 0.0
    %1885 = vmatprep.subr.mxu0 0.0
    %1886 = vmatpush1.msra.mxu0 0.0
    %1887 = vmatprep.subr.mxu0 0.0
    %1888 = vmatpush1.msra.mxu0 0.0
    %1889 = vmatprep.mubr.f32.mxu0 0.0
    %1890 = vmatmul.mubr.f32.gmra.mrb[0].mxu0 %v1679
    %v1891 = vpop.f32.mrb[0].mxu0
    %v1892 = vadd.f32 0.0, %v1891
    %v1893 = vpop.f32.mrb[0].mxu0
    %1894 = vdwg.mxu0
    %v1895 = vadd.f32 %v1818, %v1892
    %v1896 = vld [vmem:[%s11] sm:$0x1]
    %v1898 = vlaneseq
    %v1899 = vshrl.u32 %v1898, 7
    %v1900 = vsub.s32 0, %v1899
    %v1901 = vrot.slane %v1896, %v1900
    %v1903 = vadd.f32 %v1895, %v1901
    %v1904 = vxor.u32 %v1903, 2147483648
    %v1905 = vmul.f32 %v1904, 1.442695
    %v1906 = vpow.pop %v1905
    %v1907 = vadd.f32 %v1906, 1.0
    %v1908 = vrcp.pop %v1907
    %v1909 = vmul.f32 1.0, %v1908
    %v1910 = vtanh.pop %v1903
    %v1911 = vmul.f32 %v1909, 0.0
    %1913 = vrot.lane.b32.xlu0 %v1910, 64
    %v1914 = vpop.permute.xlu0 %1913
    %v1916 = vmul.f32 %v1909, %v1914
    %1918 = vrot.lane.b32.xlu0 %v1916, 32
    %v1919 = vpop.permute.xlu0 %1918
    %v1921 = vadd.f32 %v1911, %v1919
    %v1922 = vtanh.pop %v1921
    %1924 = vrot.lane.b32.xlu0 %v1922, 64
    %v1925 = vpop.permute.xlu0 %1924
    %v1927 = vmul.f32 %v1909, %v1925
    %1929 = vrot.lane.b32.xlu0 %v1927, 32
    %v1930 = vpop.permute.xlu0 %1929
    %v1931 = vsel %vm197, %v1930, 0
    %v1934 = vsel %vm197, %v1665, 0
    %v1937 = vsel %vm197, %v1666, 0
    %1939 = vmatprep.subr.mxu0 0.0
    %1940 = vmatpush1.xpose.msra.mxu0 %v1934
    %1941 = vmatprep.subr.mxu0 0.0
    %1942 = vmatpush1.xpose.msra.mxu0 %v1937
    %1943 = vmatprep.subr.mxu0 0.0
    %1944 = vmatpush1.xpose.msra.mxu0 0.0
    %1945 = vmatprep.subr.mxu0 0.0
    %1946 = vmatpush1.xpose.msra.mxu0 0.0
    %1947 = vmatprep.subr.mxu0 0.0
    %1948 = vmatpush1.xpose.msra.mxu0 0.0
    %1949 = vmatprep.subr.mxu0 0.0
    %1950 = vmatpush1.xpose.msra.mxu0 0.0
    %1951 = vmatprep.subr.mxu0 0.0
    %1952 = vmatpush1.xpose.msra.mxu0 0.0
    %1953 = vmatprep.subr.mxu0 0.0
    %1954 = vmatpush1.xpose.msra.mxu0 0.0
    %1955 = vmatprep.subr.mxu0 0.0
    %1956 = vmatpush1.xpose.msra.mxu0 0.0
    %1957 = vmatprep.subr.mxu0 0.0
    %1958 = vmatpush1.xpose.msra.mxu0 0.0
    %1959 = vmatprep.subr.mxu0 0.0
    %1960 = vmatpush1.xpose.msra.mxu0 0.0
    %1961 = vmatprep.subr.mxu0 0.0
    %1962 = vmatpush1.xpose.msra.mxu0 0.0
    %1963 = vmatprep.subr.mxu0 0.0
    %1964 = vmatpush1.xpose.msra.mxu0 0.0
    %1965 = vmatprep.subr.mxu0 0.0
    %1966 = vmatpush1.xpose.msra.mxu0 0.0
    %1967 = vmatprep.subr.mxu0 0.0
    %1968 = vmatpush1.xpose.msra.mxu0 0.0
    %1969 = vmatprep.subr.mxu0 0.0
    %1970 = vmatpush1.xpose.msra.mxu0 0.0
    %1971 = vmatprep.subr.mxu0 0.0
    %1972 = vmatpush1.xpose.msra.mxu0 0.0
    %1973 = vmatprep.subr.mxu0 0.0
    %1974 = vmatpush1.xpose.msra.mxu0 0.0
    %1975 = vmatprep.subr.mxu0 0.0
    %1976 = vmatpush1.xpose.msra.mxu0 0.0
    %1977 = vmatprep.subr.mxu0 0.0
    %1978 = vmatpush1.xpose.msra.mxu0 0.0
    %1979 = vmatprep.subr.mxu0 0.0
    %1980 = vmatpush1.xpose.msra.mxu0 0.0
    %1981 = vmatprep.subr.mxu0 0.0
    %1982 = vmatpush1.xpose.msra.mxu0 0.0
    %1983 = vmatprep.subr.mxu0 0.0
    %1984 = vmatpush1.xpose.msra.mxu0 0.0
    %1985 = vmatprep.subr.mxu0 0.0
    %1986 = vmatpush1.xpose.msra.mxu0 0.0
    %1987 = vmatprep.subr.mxu0 0.0
    %1988 = vmatpush1.xpose.msra.mxu0 0.0
    %1989 = vmatprep.subr.mxu0 0.0
    %1990 = vmatpush1.xpose.msra.mxu0 0.0
    %1991 = vmatprep.subr.mxu0 0.0
    %1992 = vmatpush1.xpose.msra.mxu0 0.0
    %1993 = vmatprep.subr.mxu0 0.0
    %1994 = vmatpush1.xpose.msra.mxu0 0.0
    %1995 = vmatprep.subr.mxu0 0.0
    %1996 = vmatpush1.xpose.msra.mxu0 0.0
    %1997 = vmatprep.subr.mxu0 0.0
    %1998 = vmatpush1.xpose.msra.mxu0 0.0
    %1999 = vmatprep.subr.mxu0 0.0
    %2000 = vmatpush1.xpose.msra.mxu0 0.0
    %2001 = vmatprep.subr.mxu0 0.0
    %2002 = vmatpush1.xpose.msra.mxu0 0.0
    %2003 = vmatprep.mubr.f32.mxu0 0.0
    %2004 = vmatmul.mubr.f32.gmra.mrb[0].mxu0 %v1931
    %v2005 = vpop.f32.mrb[0].mxu0
    %v2006 = vadd.f32 %v1669, %v2005
    %v2007 = vpop.f32.mrb[0].mxu0
    %2008 = vdwg.mxu0
    %vm2009 = vcmask 123904
    %v2010 = vsel %vm2009, %v2006, -inf
    %2011 = vmax.xlane.f32.xlu0 %v2010
    %v2012 = vpop.xlane.xlu0 %2011
    %v2013 = vsub.f32 %v2006, %v2012
    %v2014 = vmul.f32 %v2013, 1.442695
    %v2015 = vpow.pop %v2014
    %v2016 = vmul.f32 %v2015, %v1667
    %v2017 = vsel %vm2009, %v2016, 0.0
    %2018 = vadd.xlane.f32.xlu0 %v2017
    %v2019 = vpop.xlane.xlu0 %2018
    %v2020 = vmax.f32 %v2019, 1e-30
    %v2021 = vrcp.pop %v2020
    %v2022 = vmul.f32 %v2016, %v2021
    %vm2023 = vcmask 130048
    %v2025 = vsel %vm2023, %v2022, 0
    %2027 = vmatprep.subr.mxu0 0.0
    %2028 = vmatpush1.msra.mxu0 %v1665
    %2029 = vmatprep.subr.mxu0 0.0
    %2030 = vmatpush1.msra.mxu0 %v1666
    %2031 = vmatprep.subr.mxu0 0.0
    %2032 = vmatpush1.msra.mxu0 0.0
    %2033 = vmatprep.subr.mxu0 0.0
    %2034 = vmatpush1.msra.mxu0 0.0
    %2035 = vmatprep.subr.mxu0 0.0
    %2036 = vmatpush1.msra.mxu0 0.0
    %2037 = vmatprep.subr.mxu0 0.0
    %2038 = vmatpush1.msra.mxu0 0.0
    %2039 = vmatprep.subr.mxu0 0.0
    %2040 = vmatpush1.msra.mxu0 0.0
    %2041 = vmatprep.subr.mxu0 0.0
    %2042 = vmatpush1.msra.mxu0 0.0
    %2043 = vmatprep.subr.mxu0 0.0
    %2044 = vmatpush1.msra.mxu0 0.0
    %2045 = vmatprep.subr.mxu0 0.0
    %2046 = vmatpush1.msra.mxu0 0.0
    %2047 = vmatprep.subr.mxu0 0.0
    %2048 = vmatpush1.msra.mxu0 0.0
    %2049 = vmatprep.subr.mxu0 0.0
    %2050 = vmatpush1.msra.mxu0 0.0
    %2051 = vmatprep.subr.mxu0 0.0
    %2052 = vmatpush1.msra.mxu0 0.0
    %2053 = vmatprep.subr.mxu0 0.0
    %2054 = vmatpush1.msra.mxu0 0.0
    %2055 = vmatprep.subr.mxu0 0.0
    %2056 = vmatpush1.msra.mxu0 0.0
    %2057 = vmatprep.subr.mxu0 0.0
    %2058 = vmatpush1.msra.mxu0 0.0
    %2059 = vmatprep.subr.mxu0 0.0
    %2060 = vmatpush1.msra.mxu0 0.0
    %2061 = vmatprep.subr.mxu0 0.0
    %2062 = vmatpush1.msra.mxu0 0.0
    %2063 = vmatprep.subr.mxu0 0.0
    %2064 = vmatpush1.msra.mxu0 0.0
    %2065 = vmatprep.subr.mxu0 0.0
    %2066 = vmatpush1.msra.mxu0 0.0
    %2067 = vmatprep.subr.mxu0 0.0
    %2068 = vmatpush1.msra.mxu0 0.0
    %2069 = vmatprep.subr.mxu0 0.0
    %2070 = vmatpush1.msra.mxu0 0.0
    %2071 = vmatprep.subr.mxu0 0.0
    %2072 = vmatpush1.msra.mxu0 0.0
    %2073 = vmatprep.subr.mxu0 0.0
    %2074 = vmatpush1.msra.mxu0 0.0
    %2075 = vmatprep.subr.mxu0 0.0
    %2076 = vmatpush1.msra.mxu0 0.0
    %2077 = vmatprep.subr.mxu0 0.0
    %2078 = vmatpush1.msra.mxu0 0.0
    %2079 = vmatprep.subr.mxu0 0.0
    %2080 = vmatpush1.msra.mxu0 0.0
    %2081 = vmatprep.subr.mxu0 0.0
    %2082 = vmatpush1.msra.mxu0 0.0
    %2083 = vmatprep.subr.mxu0 0.0
    %2084 = vmatpush1.msra.mxu0 0.0
    %2085 = vmatprep.subr.mxu0 0.0
    %2086 = vmatpush1.msra.mxu0 0.0
    %2087 = vmatprep.subr.mxu0 0.0
    %2088 = vmatpush1.msra.mxu0 0.0
    %2089 = vmatprep.subr.mxu0 0.0
    %2090 = vmatpush1.msra.mxu0 0.0
    %2091 = vmatprep.mubr.f32.mxu0 0.0
    %2092 = vmatmul.mubr.f32.gmra.mrb[0].mxu0 %v2025
    %v2093 = vpop.f32.mrb[0].mxu0
    %v2094 = vadd.f32 0.0, %v2093
    %v2095 = vpop.f32.mrb[0].mxu0
    %2096 = vdwg.mxu0
    %v2098 = vsel %vm197, %v2094, 0
    %2100 = vmatprep.subr.mxu0 0.0
    %2101 = vmatpush1.msra.mxu0 %v1674
    %2102 = vmatprep.subr.mxu0 0.0
    %2103 = vmatpush1.msra.mxu0 %v1675
    %2104 = vmatprep.subr.mxu0 0.0
    %2105 = vmatpush1.msra.mxu0 %v1676
    %2106 = vmatprep.subr.mxu0 0.0
    %2107 = vmatpush1.msra.mxu0 %v1677
    %2108 = vmatprep.subr.mxu0 0.0
    %2109 = vmatpush1.msra.mxu0 0.0
    %2110 = vmatprep.subr.mxu0 0.0
    %2111 = vmatpush1.msra.mxu0 0.0
    %2112 = vmatprep.subr.mxu0 0.0
    %2113 = vmatpush1.msra.mxu0 0.0
    %2114 = vmatprep.subr.mxu0 0.0
    %2115 = vmatpush1.msra.mxu0 0.0
    %2116 = vmatprep.subr.mxu0 0.0
    %2117 = vmatpush1.msra.mxu0 0.0
    %2118 = vmatprep.subr.mxu0 0.0
    %2119 = vmatpush1.msra.mxu0 0.0
    %2120 = vmatprep.subr.mxu0 0.0
    %2121 = vmatpush1.msra.mxu0 0.0
    %2122 = vmatprep.subr.mxu0 0.0
    %2123 = vmatpush1.msra.mxu0 0.0
    %2124 = vmatprep.subr.mxu0 0.0
    %2125 = vmatpush1.msra.mxu0 0.0
    %2126 = vmatprep.subr.mxu0 0.0
    %2127 = vmatpush1.msra.mxu0 0.0
    %2128 = vmatprep.subr.mxu0 0.0
    %2129 = vmatpush1.msra.mxu0 0.0
    %2130 = vmatprep.subr.mxu0 0.0
    %2131 = vmatpush1.msra.mxu0 0.0
    %2132 = vmatprep.subr.mxu0 0.0
    %2133 = vmatpush1.msra.mxu0 0.0
    %2134 = vmatprep.subr.mxu0 0.0
    %2135 = vmatpush1.msra.mxu0 0.0
    %2136 = vmatprep.subr.mxu0 0.0
    %2137 = vmatpush1.msra.mxu0 0.0
    %2138 = vmatprep.subr.mxu0 0.0
    %2139 = vmatpush1.msra.mxu0 0.0
    %2140 = vmatprep.subr.mxu0 0.0
    %2141 = vmatpush1.msra.mxu0 0.0
    %2142 = vmatprep.subr.mxu0 0.0
    %2143 = vmatpush1.msra.mxu0 0.0
    %2144 = vmatprep.subr.mxu0 0.0
    %2145 = vmatpush1.msra.mxu0 0.0
    %2146 = vmatprep.subr.mxu0 0.0
    %2147 = vmatpush1.msra.mxu0 0.0
    %2148 = vmatprep.subr.mxu0 0.0
    %2149 = vmatpush1.msra.mxu0 0.0
    %2150 = vmatprep.subr.mxu0 0.0
    %2151 = vmatpush1.msra.mxu0 0.0
    %2152 = vmatprep.subr.mxu0 0.0
    %2153 = vmatpush1.msra.mxu0 0.0
    %2154 = vmatprep.subr.mxu0 0.0
    %2155 = vmatpush1.msra.mxu0 0.0
    %2156 = vmatprep.subr.mxu0 0.0
    %2157 = vmatpush1.msra.mxu0 0.0
    %2158 = vmatprep.subr.mxu0 0.0
    %2159 = vmatpush1.msra.mxu0 0.0
    %2160 = vmatprep.subr.mxu0 0.0
    %2161 = vmatpush1.msra.mxu0 0.0
    %2162 = vmatprep.subr.mxu0 0.0
    %2163 = vmatpush1.msra.mxu0 0.0
    %2164 = vmatprep.mubr.f32.mxu0 0.0
    %2165 = vmatmul.mubr.f32.gmra.mrb[0].mxu0 %v2098
    %v2166 = vpop.f32.mrb[0].mxu0
    %v2167 = vadd.f32 0.0, %v2166
    %v2168 = vpop.f32.mrb[0].mxu0
    %2169 = vdwg.mxu0
    %2170 = vmatprep.subr.mxu0 0.0
    %2171 = vmatpush1.msra.mxu0 %v1670
    %2172 = vmatprep.subr.mxu0 0.0
    %2173 = vmatpush1.msra.mxu0 %v1671
    %2174 = vmatprep.subr.mxu0 0.0
    %2175 = vmatpush1.msra.mxu0 %v1672
    %2176 = vmatprep.subr.mxu0 0.0
    %2177 = vmatpush1.msra.mxu0 %v1673
    %2178 = vmatprep.subr.mxu0 0.0
    %2179 = vmatpush1.msra.mxu0 0.0
    %2180 = vmatprep.subr.mxu0 0.0
    %2181 = vmatpush1.msra.mxu0 0.0
    %2182 = vmatprep.subr.mxu0 0.0
    %2183 = vmatpush1.msra.mxu0 0.0
    %2184 = vmatprep.subr.mxu0 0.0
    %2185 = vmatpush1.msra.mxu0 0.0
    %2186 = vmatprep.subr.mxu0 0.0
    %2187 = vmatpush1.msra.mxu0 0.0
    %2188 = vmatprep.subr.mxu0 0.0
    %2189 = vmatpush1.msra.mxu0 0.0
    %2190 = vmatprep.subr.mxu0 0.0
    %2191 = vmatpush1.msra.mxu0 0.0
    %2192 = vmatprep.subr.mxu0 0.0
    %2193 = vmatpush1.msra.mxu0 0.0
    %2194 = vmatprep.subr.mxu0 0.0
    %2195 = vmatpush1.msra.mxu0 0.0
    %2196 = vmatprep.subr.mxu0 0.0
    %2197 = vmatpush1.msra.mxu0 0.0
    %2198 = vmatprep.subr.mxu0 0.0
    %2199 = vmatpush1.msra.mxu0 0.0
    %2200 = vmatprep.subr.mxu0 0.0
    %2201 = vmatpush1.msra.mxu0 0.0
    %2202 = vmatprep.subr.mxu0 0.0
    %2203 = vmatpush1.msra.mxu0 0.0
    %2204 = vmatprep.subr.mxu0 0.0
    %2205 = vmatpush1.msra.mxu0 0.0
    %2206 = vmatprep.subr.mxu0 0.0
    %2207 = vmatpush1.msra.mxu0 0.0
    %2208 = vmatprep.subr.mxu0 0.0
    %2209 = vmatpush1.msra.mxu0 0.0
    %2210 = vmatprep.subr.mxu0 0.0
    %2211 = vmatpush1.msra.mxu0 0.0
    %2212 = vmatprep.subr.mxu0 0.0
    %2213 = vmatpush1.msra.mxu0 0.0
    %2214 = vmatprep.subr.mxu0 0.0
    %2215 = vmatpush1.msra.mxu0 0.0
    %2216 = vmatprep.subr.mxu0 0.0
    %2217 = vmatpush1.msra.mxu0 0.0
    %2218 = vmatprep.subr.mxu0 0.0
    %2219 = vmatpush1.msra.mxu0 0.0
    %2220 = vmatprep.subr.mxu0 0.0
    %2221 = vmatpush1.msra.mxu0 0.0
    %2222 = vmatprep.subr.mxu0 0.0
    %2223 = vmatpush1.msra.mxu0 0.0
    %2224 = vmatprep.subr.mxu0 0.0
    %2225 = vmatpush1.msra.mxu0 0.0
    %2226 = vmatprep.subr.mxu0 0.0
    %2227 = vmatpush1.msra.mxu0 0.0
    %2228 = vmatprep.subr.mxu0 0.0
    %2229 = vmatpush1.msra.mxu0 0.0
    %2230 = vmatprep.subr.mxu0 0.0
    %2231 = vmatpush1.msra.mxu0 0.0
    %2232 = vmatprep.subr.mxu0 0.0
    %2233 = vmatpush1.msra.mxu0 0.0
    %2234 = vmatprep.mubr.f32.mxu0 0.0
    %2235 = vmatmul.mubr.f32.gmra.mrb[0].mxu0 %v1931
    %v2236 = vpop.f32.mrb[0].mxu0
    %v2237 = vadd.f32 %v2167, %v2236
    %v2238 = vpop.f32.mrb[0].mxu0
    %2239 = vdwg.mxu0
    %2240 = vmatprep.subr.mxu0 0.0
    %2241 = vmatpush1.msra.mxu0 %v1821
    %2242 = vmatprep.subr.mxu0 0.0
    %2243 = vmatpush1.msra.mxu0 %v1822
    %2244 = vmatprep.subr.mxu0 0.0
    %2245 = vmatpush1.msra.mxu0 %v1823
    %2246 = vmatprep.subr.mxu0 0.0
    %2247 = vmatpush1.msra.mxu0 %v1824
    %2248 = vmatprep.subr.mxu0 0.0
    %2249 = vmatpush1.msra.mxu0 0.0
    %2250 = vmatprep.subr.mxu0 0.0
    %2251 = vmatpush1.msra.mxu0 0.0
    %2252 = vmatprep.subr.mxu0 0.0
    %2253 = vmatpush1.msra.mxu0 0.0
    %2254 = vmatprep.subr.mxu0 0.0
    %2255 = vmatpush1.msra.mxu0 0.0
    %2256 = vmatprep.subr.mxu0 0.0
    %2257 = vmatpush1.msra.mxu0 0.0
    %2258 = vmatprep.subr.mxu0 0.0
    %2259 = vmatpush1.msra.mxu0 0.0
    %2260 = vmatprep.subr.mxu0 0.0
    %2261 = vmatpush1.msra.mxu0 0.0
    %2262 = vmatprep.subr.mxu0 0.0
    %2263 = vmatpush1.msra.mxu0 0.0
    %2264 = vmatprep.subr.mxu0 0.0
    %2265 = vmatpush1.msra.mxu0 0.0
    %2266 = vmatprep.subr.mxu0 0.0
    %2267 = vmatpush1.msra.mxu0 0.0
    %2268 = vmatprep.subr.mxu0 0.0
    %2269 = vmatpush1.msra.mxu0 0.0
    %2270 = vmatprep.subr.mxu0 0.0
    %2271 = vmatpush1.msra.mxu0 0.0
    %2272 = vmatprep.subr.mxu0 0.0
    %2273 = vmatpush1.msra.mxu0 0.0
    %2274 = vmatprep.subr.mxu0 0.0
    %2275 = vmatpush1.msra.mxu0 0.0
    %2276 = vmatprep.subr.mxu0 0.0
    %2277 = vmatpush1.msra.mxu0 0.0
    %2278 = vmatprep.subr.mxu0 0.0
    %2279 = vmatpush1.msra.mxu0 0.0
    %2280 = vmatprep.subr.mxu0 0.0
    %2281 = vmatpush1.msra.mxu0 0.0
    %2282 = vmatprep.subr.mxu0 0.0
    %2283 = vmatpush1.msra.mxu0 0.0
    %2284 = vmatprep.subr.mxu0 0.0
    %2285 = vmatpush1.msra.mxu0 0.0
    %2286 = vmatprep.subr.mxu0 0.0
    %2287 = vmatpush1.msra.mxu0 0.0
    %2288 = vmatprep.subr.mxu0 0.0
    %2289 = vmatpush1.msra.mxu0 0.0
    %2290 = vmatprep.subr.mxu0 0.0
    %2291 = vmatpush1.msra.mxu0 0.0
    %2292 = vmatprep.subr.mxu0 0.0
    %2293 = vmatpush1.msra.mxu0 0.0
    %2294 = vmatprep.subr.mxu0 0.0
    %2295 = vmatpush1.msra.mxu0 0.0
    %2296 = vmatprep.subr.mxu0 0.0
    %2297 = vmatpush1.msra.mxu0 0.0
    %2298 = vmatprep.subr.mxu0 0.0
    %2299 = vmatpush1.msra.mxu0 0.0
    %2300 = vmatprep.subr.mxu0 0.0
    %2301 = vmatpush1.msra.mxu0 0.0
    %2302 = vmatprep.subr.mxu0 0.0
    %2303 = vmatpush1.msra.mxu0 0.0
    %2304 = vmatprep.mubr.f32.mxu0 0.0
    %2305 = vmatmul.mubr.f32.gmra.mrb[0].mxu0 %v1931
    %v2306 = vpop.f32.mrb[0].mxu0
    %v2307 = vadd.f32 0.0, %v2306
    %v2308 = vpop.f32.mrb[0].mxu0
    %2309 = vdwg.mxu0
    %v2310 = vadd.f32 %v2237, %v2307
    %v2311 = vadd.f32 %v2310, %v1901
    %v2312 = vxor.u32 %v2311, 2147483648
    %v2313 = vmul.f32 %v2312, 1.442695
    %v2314 = vpow.pop %v2313
    %v2315 = vadd.f32 %v2314, 1.0
    %v2316 = vrcp.pop %v2315
    %v2317 = vmul.f32 1.0, %v2316
    %v2318 = vtanh.pop %v2311
    %v2319 = vmul.f32 %v2317, %v1921
    %2321 = vrot.lane.b32.xlu0 %v2318, 64
    %v2322 = vpop.permute.xlu0 %2321
    %v2324 = vmul.f32 %v2317, %v2322
    %2326 = vrot.lane.b32.xlu0 %v2324, 32
    %v2327 = vpop.permute.xlu0 %2326
    %v2329 = vadd.f32 %v2319, %v2327
    %v2330 = vtanh.pop %v2329
    %2332 = vrot.lane.b32.xlu0 %v2330, 64
    %v2333 = vpop.permute.xlu0 %2332
    %v2335 = vmul.f32 %v2317, %v2333
    %2337 = vrot.lane.b32.xlu0 %v2335, 32
    %v2338 = vpop.permute.xlu0 %2337
    %v2339 = vsel %vm197, %v2338, 0
    %2341 = vmatprep.subr.mxu0 0.0
    %2342 = vmatpush1.xpose.msra.mxu0 %v1934
    %2343 = vmatprep.subr.mxu0 0.0
    %2344 = vmatpush1.xpose.msra.mxu0 %v1937
    %2345 = vmatprep.subr.mxu0 0.0
    %2346 = vmatpush1.xpose.msra.mxu0 0.0
    %2347 = vmatprep.subr.mxu0 0.0
    %2348 = vmatpush1.xpose.msra.mxu0 0.0
    %2349 = vmatprep.subr.mxu0 0.0
    %2350 = vmatpush1.xpose.msra.mxu0 0.0
    %2351 = vmatprep.subr.mxu0 0.0
    %2352 = vmatpush1.xpose.msra.mxu0 0.0
    %2353 = vmatprep.subr.mxu0 0.0
    %2354 = vmatpush1.xpose.msra.mxu0 0.0
    %2355 = vmatprep.subr.mxu0 0.0
    %2356 = vmatpush1.xpose.msra.mxu0 0.0
    %2357 = vmatprep.subr.mxu0 0.0
    %2358 = vmatpush1.xpose.msra.mxu0 0.0
    %2359 = vmatprep.subr.mxu0 0.0
    %2360 = vmatpush1.xpose.msra.mxu0 0.0
    %2361 = vmatprep.subr.mxu0 0.0
    %2362 = vmatpush1.xpose.msra.mxu0 0.0
    %2363 = vmatprep.subr.mxu0 0.0
    %2364 = vmatpush1.xpose.msra.mxu0 0.0
    %2365 = vmatprep.subr.mxu0 0.0
    %2366 = vmatpush1.xpose.msra.mxu0 0.0
    %2367 = vmatprep.subr.mxu0 0.0
    %2368 = vmatpush1.xpose.msra.mxu0 0.0
    %2369 = vmatprep.subr.mxu0 0.0
    %2370 = vmatpush1.xpose.msra.mxu0 0.0
    %2371 = vmatprep.subr.mxu0 0.0
    %2372 = vmatpush1.xpose.msra.mxu0 0.0
    %2373 = vmatprep.subr.mxu0 0.0
    %2374 = vmatpush1.xpose.msra.mxu0 0.0
    %2375 = vmatprep.subr.mxu0 0.0
    %2376 = vmatpush1.xpose.msra.mxu0 0.0
    %2377 = vmatprep.subr.mxu0 0.0
    %2378 = vmatpush1.xpose.msra.mxu0 0.0
    %2379 = vmatprep.subr.mxu0 0.0
    %2380 = vmatpush1.xpose.msra.mxu0 0.0
    %2381 = vmatprep.subr.mxu0 0.0
    %2382 = vmatpush1.xpose.msra.mxu0 0.0
    %2383 = vmatprep.subr.mxu0 0.0
    %2384 = vmatpush1.xpose.msra.mxu0 0.0
    %2385 = vmatprep.subr.mxu0 0.0
    %2386 = vmatpush1.xpose.msra.mxu0 0.0
    %2387 = vmatprep.subr.mxu0 0.0
    %2388 = vmatpush1.xpose.msra.mxu0 0.0
    %2389 = vmatprep.subr.mxu0 0.0
    %2390 = vmatpush1.xpose.msra.mxu0 0.0
    %2391 = vmatprep.subr.mxu0 0.0
    %2392 = vmatpush1.xpose.msra.mxu0 0.0
    %2393 = vmatprep.subr.mxu0 0.0
    %2394 = vmatpush1.xpose.msra.mxu0 0.0
    %2395 = vmatprep.subr.mxu0 0.0
    %2396 = vmatpush1.xpose.msra.mxu0 0.0
    %2397 = vmatprep.subr.mxu0 0.0
    %2398 = vmatpush1.xpose.msra.mxu0 0.0
    %2399 = vmatprep.subr.mxu0 0.0
    %2400 = vmatpush1.xpose.msra.mxu0 0.0
    %2401 = vmatprep.subr.mxu0 0.0
    %2402 = vmatpush1.xpose.msra.mxu0 0.0
    %2403 = vmatprep.subr.mxu0 0.0
    %2404 = vmatpush1.xpose.msra.mxu0 0.0
    %2405 = vmatprep.mubr.f32.mxu0 0.0
    %2406 = vmatmul.mubr.f32.gmra.mrb[0].mxu0 %v2339
    %v2407 = vpop.f32.mrb[0].mxu0
    %v2408 = vadd.f32 %v1669, %v2407
    %v2409 = vpop.f32.mrb[0].mxu0
    %2410 = vdwg.mxu0
    %v2411 = vsel %vm2009, %v2408, -inf
    %2412 = vmax.xlane.f32.xlu0 %v2411
    %v2413 = vpop.xlane.xlu0 %2412
    %v2414 = vsub.f32 %v2408, %v2413
    %v2415 = vmul.f32 %v2414, 1.442695
    %v2416 = vpow.pop %v2415
    %v2417 = vmul.f32 %v2416, %v1667
    %v2418 = vsel %vm2009, %v2417, 0.0
    %2419 = vadd.xlane.f32.xlu0 %v2418
    %v2420 = vpop.xlane.xlu0 %2419
    %v2421 = vmax.f32 %v2420, 1e-30
    %v2422 = vrcp.pop %v2421
    %v2423 = vmul.f32 %v2417, %v2422
    %v2425 = vsel %vm2023, %v2423, 0
    %2427 = vmatprep.subr.mxu0 0.0
    %2428 = vmatpush1.msra.mxu0 %v1665
    %2429 = vmatprep.subr.mxu0 0.0
    %2430 = vmatpush1.msra.mxu0 %v1666
    %2431 = vmatprep.subr.mxu0 0.0
    %2432 = vmatpush1.msra.mxu0 0.0
    %2433 = vmatprep.subr.mxu0 0.0
    %2434 = vmatpush1.msra.mxu0 0.0
    %2435 = vmatprep.subr.mxu0 0.0
    %2436 = vmatpush1.msra.mxu0 0.0
    %2437 = vmatprep.subr.mxu0 0.0
    %2438 = vmatpush1.msra.mxu0 0.0
    %2439 = vmatprep.subr.mxu0 0.0
    %2440 = vmatpush1.msra.mxu0 0.0
    %2441 = vmatprep.subr.mxu0 0.0
    %2442 = vmatpush1.msra.mxu0 0.0
    %2443 = vmatprep.subr.mxu0 0.0
    %2444 = vmatpush1.msra.mxu0 0.0
    %2445 = vmatprep.subr.mxu0 0.0
    %2446 = vmatpush1.msra.mxu0 0.0
    %2447 = vmatprep.subr.mxu0 0.0
    %2448 = vmatpush1.msra.mxu0 0.0
    %2449 = vmatprep.subr.mxu0 0.0
    %2450 = vmatpush1.msra.mxu0 0.0
    %2451 = vmatprep.subr.mxu0 0.0
    %2452 = vmatpush1.msra.mxu0 0.0
    %2453 = vmatprep.subr.mxu0 0.0
    %2454 = vmatpush1.msra.mxu0 0.0
    %2455 = vmatprep.subr.mxu0 0.0
    %2456 = vmatpush1.msra.mxu0 0.0
    %2457 = vmatprep.subr.mxu0 0.0
    %2458 = vmatpush1.msra.mxu0 0.0
    %2459 = vmatprep.subr.mxu0 0.0
    %2460 = vmatpush1.msra.mxu0 0.0
    %2461 = vmatprep.subr.mxu0 0.0
    %2462 = vmatpush1.msra.mxu0 0.0
    %2463 = vmatprep.subr.mxu0 0.0
    %2464 = vmatpush1.msra.mxu0 0.0
    %2465 = vmatprep.subr.mxu0 0.0
    %2466 = vmatpush1.msra.mxu0 0.0
    %2467 = vmatprep.subr.mxu0 0.0
    %2468 = vmatpush1.msra.mxu0 0.0
    %2469 = vmatprep.subr.mxu0 0.0
    %2470 = vmatpush1.msra.mxu0 0.0
    %2471 = vmatprep.subr.mxu0 0.0
    %2472 = vmatpush1.msra.mxu0 0.0
    %2473 = vmatprep.subr.mxu0 0.0
    %2474 = vmatpush1.msra.mxu0 0.0
    %2475 = vmatprep.subr.mxu0 0.0
    %2476 = vmatpush1.msra.mxu0 0.0
    %2477 = vmatprep.subr.mxu0 0.0
    %2478 = vmatpush1.msra.mxu0 0.0
    %2479 = vmatprep.subr.mxu0 0.0
    %2480 = vmatpush1.msra.mxu0 0.0
    %2481 = vmatprep.subr.mxu0 0.0
    %2482 = vmatpush1.msra.mxu0 0.0
    %2483 = vmatprep.subr.mxu0 0.0
    %2484 = vmatpush1.msra.mxu0 0.0
    %2485 = vmatprep.subr.mxu0 0.0
    %2486 = vmatpush1.msra.mxu0 0.0
    %2487 = vmatprep.subr.mxu0 0.0
    %2488 = vmatpush1.msra.mxu0 0.0
    %2489 = vmatprep.subr.mxu0 0.0
    %2490 = vmatpush1.msra.mxu0 0.0
    %2491 = vmatprep.mubr.f32.mxu0 0.0
    %2492 = vmatmul.mubr.f32.gmra.mrb[0].mxu0 %v2425
    %v2493 = vpop.f32.mrb[0].mxu0
    %v2494 = vadd.f32 0.0, %v2493
    %v2495 = vpop.f32.mrb[0].mxu0
    %2496 = vdwg.mxu0
    %v2498 = vsel %vm197, %v2494, 0
    %2500 = vmatprep.subr.mxu0 0.0
    %2501 = vmatpush1.msra.mxu0 %v1674
    %2502 = vmatprep.subr.mxu0 0.0
    %2503 = vmatpush1.msra.mxu0 %v1675
    %2504 = vmatprep.subr.mxu0 0.0
    %2505 = vmatpush1.msra.mxu0 %v1676
    %2506 = vmatprep.subr.mxu0 0.0
    %2507 = vmatpush1.msra.mxu0 %v1677
    %2508 = vmatprep.subr.mxu0 0.0
    %2509 = vmatpush1.msra.mxu0 0.0
    %2510 = vmatprep.subr.mxu0 0.0
    %2511 = vmatpush1.msra.mxu0 0.0
    %2512 = vmatprep.subr.mxu0 0.0
    %2513 = vmatpush1.msra.mxu0 0.0
    %2514 = vmatprep.subr.mxu0 0.0
    %2515 = vmatpush1.msra.mxu0 0.0
    %2516 = vmatprep.subr.mxu0 0.0
    %2517 = vmatpush1.msra.mxu0 0.0
    %2518 = vmatprep.subr.mxu0 0.0
    %2519 = vmatpush1.msra.mxu0 0.0
    %2520 = vmatprep.subr.mxu0 0.0
    %2521 = vmatpush1.msra.mxu0 0.0
    %2522 = vmatprep.subr.mxu0 0.0
    %2523 = vmatpush1.msra.mxu0 0.0
    %2524 = vmatprep.subr.mxu0 0.0
    %2525 = vmatpush1.msra.mxu0 0.0
    %2526 = vmatprep.subr.mxu0 0.0
    %2527 = vmatpush1.msra.mxu0 0.0
    %2528 = vmatprep.subr.mxu0 0.0
    %2529 = vmatpush1.msra.mxu0 0.0
    %2530 = vmatprep.subr.mxu0 0.0
    %2531 = vmatpush1.msra.mxu0 0.0
    %2532 = vmatprep.subr.mxu0 0.0
    %2533 = vmatpush1.msra.mxu0 0.0
    %2534 = vmatprep.subr.mxu0 0.0
    %2535 = vmatpush1.msra.mxu0 0.0
    %2536 = vmatprep.subr.mxu0 0.0
    %2537 = vmatpush1.msra.mxu0 0.0
    %2538 = vmatprep.subr.mxu0 0.0
    %2539 = vmatpush1.msra.mxu0 0.0
    %2540 = vmatprep.subr.mxu0 0.0
    %2541 = vmatpush1.msra.mxu0 0.0
    %2542 = vmatprep.subr.mxu0 0.0
    %2543 = vmatpush1.msra.mxu0 0.0
    %2544 = vmatprep.subr.mxu0 0.0
    %2545 = vmatpush1.msra.mxu0 0.0
    %2546 = vmatprep.subr.mxu0 0.0
    %2547 = vmatpush1.msra.mxu0 0.0
    %2548 = vmatprep.subr.mxu0 0.0
    %2549 = vmatpush1.msra.mxu0 0.0
    %2550 = vmatprep.subr.mxu0 0.0
    %2551 = vmatpush1.msra.mxu0 0.0
    %2552 = vmatprep.subr.mxu0 0.0
    %2553 = vmatpush1.msra.mxu0 0.0
    %2554 = vmatprep.subr.mxu0 0.0
    %2555 = vmatpush1.msra.mxu0 0.0
    %2556 = vmatprep.subr.mxu0 0.0
    %2557 = vmatpush1.msra.mxu0 0.0
    %2558 = vmatprep.subr.mxu0 0.0
    %2559 = vmatpush1.msra.mxu0 0.0
    %2560 = vmatprep.subr.mxu0 0.0
    %2561 = vmatpush1.msra.mxu0 0.0
    %2562 = vmatprep.subr.mxu0 0.0
    %2563 = vmatpush1.msra.mxu0 0.0
    %2564 = vmatprep.mubr.f32.mxu0 0.0
    %2565 = vmatmul.mubr.f32.gmra.mrb[0].mxu0 %v2498
    %v2566 = vpop.f32.mrb[0].mxu0
    %v2567 = vadd.f32 0.0, %v2566
    %v2568 = vpop.f32.mrb[0].mxu0
    %2569 = vdwg.mxu0
    %2570 = vmatprep.subr.mxu0 0.0
    %2571 = vmatpush1.msra.mxu0 %v1670
    %2572 = vmatprep.subr.mxu0 0.0
    %2573 = vmatpush1.msra.mxu0 %v1671
    %2574 = vmatprep.subr.mxu0 0.0
    %2575 = vmatpush1.msra.mxu0 %v1672
    %2576 = vmatprep.subr.mxu0 0.0
    %2577 = vmatpush1.msra.mxu0 %v1673
    %2578 = vmatprep.subr.mxu0 0.0
    %2579 = vmatpush1.msra.mxu0 0.0
    %2580 = vmatprep.subr.mxu0 0.0
    %2581 = vmatpush1.msra.mxu0 0.0
    %2582 = vmatprep.subr.mxu0 0.0
    %2583 = vmatpush1.msra.mxu0 0.0
    %2584 = vmatprep.subr.mxu0 0.0
    %2585 = vmatpush1.msra.mxu0 0.0
    %2586 = vmatprep.subr.mxu0 0.0
    %2587 = vmatpush1.msra.mxu0 0.0
    %2588 = vmatprep.subr.mxu0 0.0
    %2589 = vmatpush1.msra.mxu0 0.0
    %2590 = vmatprep.subr.mxu0 0.0
    %2591 = vmatpush1.msra.mxu0 0.0
    %2592 = vmatprep.subr.mxu0 0.0
    %2593 = vmatpush1.msra.mxu0 0.0
    %2594 = vmatprep.subr.mxu0 0.0
    %2595 = vmatpush1.msra.mxu0 0.0
    %2596 = vmatprep.subr.mxu0 0.0
    %2597 = vmatpush1.msra.mxu0 0.0
    %2598 = vmatprep.subr.mxu0 0.0
    %2599 = vmatpush1.msra.mxu0 0.0
    %2600 = vmatprep.subr.mxu0 0.0
    %2601 = vmatpush1.msra.mxu0 0.0
    %2602 = vmatprep.subr.mxu0 0.0
    %2603 = vmatpush1.msra.mxu0 0.0
    %2604 = vmatprep.subr.mxu0 0.0
    %2605 = vmatpush1.msra.mxu0 0.0
    %2606 = vmatprep.subr.mxu0 0.0
    %2607 = vmatpush1.msra.mxu0 0.0
    %2608 = vmatprep.subr.mxu0 0.0
    %2609 = vmatpush1.msra.mxu0 0.0
    %2610 = vmatprep.subr.mxu0 0.0
    %2611 = vmatpush1.msra.mxu0 0.0
    %2612 = vmatprep.subr.mxu0 0.0
    %2613 = vmatpush1.msra.mxu0 0.0
    %2614 = vmatprep.subr.mxu0 0.0
    %2615 = vmatpush1.msra.mxu0 0.0
    %2616 = vmatprep.subr.mxu0 0.0
    %2617 = vmatpush1.msra.mxu0 0.0
    %2618 = vmatprep.subr.mxu0 0.0
    %2619 = vmatpush1.msra.mxu0 0.0
    %2620 = vmatprep.subr.mxu0 0.0
    %2621 = vmatpush1.msra.mxu0 0.0
    %2622 = vmatprep.subr.mxu0 0.0
    %2623 = vmatpush1.msra.mxu0 0.0
    %2624 = vmatprep.subr.mxu0 0.0
    %2625 = vmatpush1.msra.mxu0 0.0
    %2626 = vmatprep.subr.mxu0 0.0
    %2627 = vmatpush1.msra.mxu0 0.0
    %2628 = vmatprep.subr.mxu0 0.0
    %2629 = vmatpush1.msra.mxu0 0.0
    %2630 = vmatprep.subr.mxu0 0.0
    %2631 = vmatpush1.msra.mxu0 0.0
    %2632 = vmatprep.subr.mxu0 0.0
    %2633 = vmatpush1.msra.mxu0 0.0
    %2634 = vmatprep.mubr.f32.mxu0 0.0
    %2635 = vmatmul.mubr.f32.gmra.mrb[0].mxu0 %v2339
    %v2636 = vpop.f32.mrb[0].mxu0
    %v2637 = vadd.f32 %v2567, %v2636
    %v2638 = vpop.f32.mrb[0].mxu0
    %2639 = vdwg.mxu0
    %2640 = vmatprep.subr.mxu0 0.0
    %2641 = vmatpush1.msra.mxu0 %v1821
    %2642 = vmatprep.subr.mxu0 0.0
    %2643 = vmatpush1.msra.mxu0 %v1822
    %2644 = vmatprep.subr.mxu0 0.0
    %2645 = vmatpush1.msra.mxu0 %v1823
    %2646 = vmatprep.subr.mxu0 0.0
    %2647 = vmatpush1.msra.mxu0 %v1824
    %2648 = vmatprep.subr.mxu0 0.0
    %2649 = vmatpush1.msra.mxu0 0.0
    %2650 = vmatprep.subr.mxu0 0.0
    %2651 = vmatpush1.msra.mxu0 0.0
    %2652 = vmatprep.subr.mxu0 0.0
    %2653 = vmatpush1.msra.mxu0 0.0
    %2654 = vmatprep.subr.mxu0 0.0
    %2655 = vmatpush1.msra.mxu0 0.0
    %2656 = vmatprep.subr.mxu0 0.0
    %2657 = vmatpush1.msra.mxu0 0.0
    %2658 = vmatprep.subr.mxu0 0.0
    %2659 = vmatpush1.msra.mxu0 0.0
    %2660 = vmatprep.subr.mxu0 0.0
    %2661 = vmatpush1.msra.mxu0 0.0
    %2662 = vmatprep.subr.mxu0 0.0
    %2663 = vmatpush1.msra.mxu0 0.0
    %2664 = vmatprep.subr.mxu0 0.0
    %2665 = vmatpush1.msra.mxu0 0.0
    %2666 = vmatprep.subr.mxu0 0.0
    %2667 = vmatpush1.msra.mxu0 0.0
    %2668 = vmatprep.subr.mxu0 0.0
    %2669 = vmatpush1.msra.mxu0 0.0
    %2670 = vmatprep.subr.mxu0 0.0
    %2671 = vmatpush1.msra.mxu0 0.0
    %2672 = vmatprep.subr.mxu0 0.0
    %2673 = vmatpush1.msra.mxu0 0.0
    %2674 = vmatprep.subr.mxu0 0.0
    %2675 = vmatpush1.msra.mxu0 0.0
    %2676 = vmatprep.subr.mxu0 0.0
    %2677 = vmatpush1.msra.mxu0 0.0
    %2678 = vmatprep.subr.mxu0 0.0
    %2679 = vmatpush1.msra.mxu0 0.0
    %2680 = vmatprep.subr.mxu0 0.0
    %2681 = vmatpush1.msra.mxu0 0.0
    %2682 = vmatprep.subr.mxu0 0.0
    %2683 = vmatpush1.msra.mxu0 0.0
    %2684 = vmatprep.subr.mxu0 0.0
    %2685 = vmatpush1.msra.mxu0 0.0
    %2686 = vmatprep.subr.mxu0 0.0
    %2687 = vmatpush1.msra.mxu0 0.0
    %2688 = vmatprep.subr.mxu0 0.0
    %2689 = vmatpush1.msra.mxu0 0.0
    %2690 = vmatprep.subr.mxu0 0.0
    %2691 = vmatpush1.msra.mxu0 0.0
    %2692 = vmatprep.subr.mxu0 0.0
    %2693 = vmatpush1.msra.mxu0 0.0
    %2694 = vmatprep.subr.mxu0 0.0
    %2695 = vmatpush1.msra.mxu0 0.0
    %2696 = vmatprep.subr.mxu0 0.0
    %2697 = vmatpush1.msra.mxu0 0.0
    %2698 = vmatprep.subr.mxu0 0.0
    %2699 = vmatpush1.msra.mxu0 0.0
    %2700 = vmatprep.subr.mxu0 0.0
    %2701 = vmatpush1.msra.mxu0 0.0
    %2702 = vmatprep.subr.mxu0 0.0
    %2703 = vmatpush1.msra.mxu0 0.0
    %2704 = vmatprep.mubr.f32.mxu0 0.0
    %2705 = vmatmul.mubr.f32.gmra.mrb[0].mxu0 %v2339
    %v2706 = vpop.f32.mrb[0].mxu0
    %v2707 = vadd.f32 0.0, %v2706
    %v2708 = vpop.f32.mrb[0].mxu0
    %2709 = vdwg.mxu0
    %v2710 = vadd.f32 %v2637, %v2707
    %v2711 = vadd.f32 %v2710, %v1901
    %v2712 = vxor.u32 %v2711, 2147483648
    %v2713 = vmul.f32 %v2712, 1.442695
    %v2714 = vpow.pop %v2713
    %v2715 = vadd.f32 %v2714, 1.0
    %v2716 = vrcp.pop %v2715
    %v2717 = vmul.f32 1.0, %v2716
    %v2718 = vtanh.pop %v2711
    %v2719 = vmul.f32 %v2717, %v2329
    %2721 = vrot.lane.b32.xlu0 %v2718, 64
    %v2722 = vpop.permute.xlu0 %2721
    %v2724 = vmul.f32 %v2717, %v2722
    %2726 = vrot.lane.b32.xlu0 %v2724, 32
    %v2727 = vpop.permute.xlu0 %2726
    %v2729 = vadd.f32 %v2719, %v2727
    %v2730 = vtanh.pop %v2729
    %2732 = vrot.lane.b32.xlu0 %v2730, 64
    %v2733 = vpop.permute.xlu0 %2732
    %v2735 = vmul.f32 %v2717, %v2733
    %2737 = vrot.lane.b32.xlu0 %v2735, 32
    %v2738 = vpop.permute.xlu0 %2737
    %v2739 = vsel %vm197, %v2738, 0
    %2741 = vmatprep.subr.mxu0 0.0
    %2742 = vmatpush1.xpose.msra.mxu0 %v1934
    %2743 = vmatprep.subr.mxu0 0.0
    %2744 = vmatpush1.xpose.msra.mxu0 %v1937
    %2745 = vmatprep.subr.mxu0 0.0
    %2746 = vmatpush1.xpose.msra.mxu0 0.0
    %2747 = vmatprep.subr.mxu0 0.0
    %2748 = vmatpush1.xpose.msra.mxu0 0.0
    %2749 = vmatprep.subr.mxu0 0.0
    %2750 = vmatpush1.xpose.msra.mxu0 0.0
    %2751 = vmatprep.subr.mxu0 0.0
    %2752 = vmatpush1.xpose.msra.mxu0 0.0
    %2753 = vmatprep.subr.mxu0 0.0
    %2754 = vmatpush1.xpose.msra.mxu0 0.0
    %2755 = vmatprep.subr.mxu0 0.0
    %2756 = vmatpush1.xpose.msra.mxu0 0.0
    %2757 = vmatprep.subr.mxu0 0.0
    %2758 = vmatpush1.xpose.msra.mxu0 0.0
    %2759 = vmatprep.subr.mxu0 0.0
    %2760 = vmatpush1.xpose.msra.mxu0 0.0
    %2761 = vmatprep.subr.mxu0 0.0
    %2762 = vmatpush1.xpose.msra.mxu0 0.0
    %2763 = vmatprep.subr.mxu0 0.0
    %2764 = vmatpush1.xpose.msra.mxu0 0.0
    %2765 = vmatprep.subr.mxu0 0.0
    %2766 = vmatpush1.xpose.msra.mxu0 0.0
    %2767 = vmatprep.subr.mxu0 0.0
    %2768 = vmatpush1.xpose.msra.mxu0 0.0
    %2769 = vmatprep.subr.mxu0 0.0
    %2770 = vmatpush1.xpose.msra.mxu0 0.0
    %2771 = vmatprep.subr.mxu0 0.0
    %2772 = vmatpush1.xpose.msra.mxu0 0.0
    %2773 = vmatprep.subr.mxu0 0.0
    %2774 = vmatpush1.xpose.msra.mxu0 0.0
    %2775 = vmatprep.subr.mxu0 0.0
    %2776 = vmatpush1.xpose.msra.mxu0 0.0
    %2777 = vmatprep.subr.mxu0 0.0
    %2778 = vmatpush1.xpose.msra.mxu0 0.0
    %2779 = vmatprep.subr.mxu0 0.0
    %2780 = vmatpush1.xpose.msra.mxu0 0.0
    %2781 = vmatprep.subr.mxu0 0.0
    %2782 = vmatpush1.xpose.msra.mxu0 0.0
    %2783 = vmatprep.subr.mxu0 0.0
    %2784 = vmatpush1.xpose.msra.mxu0 0.0
    %2785 = vmatprep.subr.mxu0 0.0
    %2786 = vmatpush1.xpose.msra.mxu0 0.0
    %2787 = vmatprep.subr.mxu0 0.0
    %2788 = vmatpush1.xpose.msra.mxu0 0.0
    %2789 = vmatprep.subr.mxu0 0.0
    %2790 = vmatpush1.xpose.msra.mxu0 0.0
    %2791 = vmatprep.subr.mxu0 0.0
    %2792 = vmatpush1.xpose.msra.mxu0 0.0
    %2793 = vmatprep.subr.mxu0 0.0
    %2794 = vmatpush1.xpose.msra.mxu0 0.0
    %2795 = vmatprep.subr.mxu0 0.0
    %2796 = vmatpush1.xpose.msra.mxu0 0.0
    %2797 = vmatprep.subr.mxu0 0.0
    %2798 = vmatpush1.xpose.msra.mxu0 0.0
    %2799 = vmatprep.subr.mxu0 0.0
    %2800 = vmatpush1.xpose.msra.mxu0 0.0
    %2801 = vmatprep.subr.mxu0 0.0
    %2802 = vmatpush1.xpose.msra.mxu0 0.0
    %2803 = vmatprep.subr.mxu0 0.0
    %2804 = vmatpush1.xpose.msra.mxu0 0.0
    %2805 = vmatprep.mubr.f32.mxu0 0.0
    %2806 = vmatmul.mubr.f32.gmra.mrb[0].mxu0 %v2739
    %v2807 = vpop.f32.mrb[0].mxu0
    %v2808 = vadd.f32 %v1669, %v2807
    %v2809 = vpop.f32.mrb[0].mxu0
    %2810 = vdwg.mxu0
    %v2811 = vsel %vm2009, %v2808, -inf
    %2812 = vmax.xlane.f32.xlu0 %v2811
    %v2813 = vpop.xlane.xlu0 %2812
    %v2814 = vsub.f32 %v2808, %v2813
    %v2815 = vmul.f32 %v2814, 1.442695
    %v2816 = vpow.pop %v2815
    %v2817 = vmul.f32 %v2816, %v1667
    %v2818 = vsel %vm2009, %v2817, 0.0
    %2819 = vadd.xlane.f32.xlu0 %v2818
    %v2820 = vpop.xlane.xlu0 %2819
    %v2821 = vmax.f32 %v2820, 1e-30
    %v2822 = vrcp.pop %v2821
    %v2823 = vmul.f32 %v2817, %v2822
    %v2825 = vsel %vm2023, %v2823, 0
    %2827 = vmatprep.subr.mxu0 0.0
    %2828 = vmatpush1.msra.mxu0 %v1665
    %2829 = vmatprep.subr.mxu0 0.0
    %2830 = vmatpush1.msra.mxu0 %v1666
    %2831 = vmatprep.subr.mxu0 0.0
    %2832 = vmatpush1.msra.mxu0 0.0
    %2833 = vmatprep.subr.mxu0 0.0
    %2834 = vmatpush1.msra.mxu0 0.0
    %2835 = vmatprep.subr.mxu0 0.0
    %2836 = vmatpush1.msra.mxu0 0.0
    %2837 = vmatprep.subr.mxu0 0.0
    %2838 = vmatpush1.msra.mxu0 0.0
    %2839 = vmatprep.subr.mxu0 0.0
    %2840 = vmatpush1.msra.mxu0 0.0
    %2841 = vmatprep.subr.mxu0 0.0
    %2842 = vmatpush1.msra.mxu0 0.0
    %2843 = vmatprep.subr.mxu0 0.0
    %2844 = vmatpush1.msra.mxu0 0.0
    %2845 = vmatprep.subr.mxu0 0.0
    %2846 = vmatpush1.msra.mxu0 0.0
    %2847 = vmatprep.subr.mxu0 0.0
    %2848 = vmatpush1.msra.mxu0 0.0
    %2849 = vmatprep.subr.mxu0 0.0
    %2850 = vmatpush1.msra.mxu0 0.0
    %2851 = vmatprep.subr.mxu0 0.0
    %2852 = vmatpush1.msra.mxu0 0.0
    %2853 = vmatprep.subr.mxu0 0.0
    %2854 = vmatpush1.msra.mxu0 0.0
    %2855 = vmatprep.subr.mxu0 0.0
    %2856 = vmatpush1.msra.mxu0 0.0
    %2857 = vmatprep.subr.mxu0 0.0
    %2858 = vmatpush1.msra.mxu0 0.0
    %2859 = vmatprep.subr.mxu0 0.0
    %2860 = vmatpush1.msra.mxu0 0.0
    %2861 = vmatprep.subr.mxu0 0.0
    %2862 = vmatpush1.msra.mxu0 0.0
    %2863 = vmatprep.subr.mxu0 0.0
    %2864 = vmatpush1.msra.mxu0 0.0
    %2865 = vmatprep.subr.mxu0 0.0
    %2866 = vmatpush1.msra.mxu0 0.0
    %2867 = vmatprep.subr.mxu0 0.0
    %2868 = vmatpush1.msra.mxu0 0.0
    %2869 = vmatprep.subr.mxu0 0.0
    %2870 = vmatpush1.msra.mxu0 0.0
    %2871 = vmatprep.subr.mxu0 0.0
    %2872 = vmatpush1.msra.mxu0 0.0
    %2873 = vmatprep.subr.mxu0 0.0
    %2874 = vmatpush1.msra.mxu0 0.0
    %2875 = vmatprep.subr.mxu0 0.0
    %2876 = vmatpush1.msra.mxu0 0.0
    %2877 = vmatprep.subr.mxu0 0.0
    %2878 = vmatpush1.msra.mxu0 0.0
    %2879 = vmatprep.subr.mxu0 0.0
    %2880 = vmatpush1.msra.mxu0 0.0
    %2881 = vmatprep.subr.mxu0 0.0
    %2882 = vmatpush1.msra.mxu0 0.0
    %2883 = vmatprep.subr.mxu0 0.0
    %2884 = vmatpush1.msra.mxu0 0.0
    %2885 = vmatprep.subr.mxu0 0.0
    %2886 = vmatpush1.msra.mxu0 0.0
    %2887 = vmatprep.subr.mxu0 0.0
    %2888 = vmatpush1.msra.mxu0 0.0
    %2889 = vmatprep.subr.mxu0 0.0
    %2890 = vmatpush1.msra.mxu0 0.0
    %2891 = vmatprep.mubr.f32.mxu0 0.0
    %2892 = vmatmul.mubr.f32.gmra.mrb[0].mxu0 %v2825
    %v2893 = vpop.f32.mrb[0].mxu0
    %v2894 = vadd.f32 0.0, %v2893
    %v2895 = vpop.f32.mrb[0].mxu0
    %2896 = vdwg.mxu0
    %v2898 = vsel %vm197, %v2894, 0
    %2900 = vmatprep.subr.mxu0 0.0
    %2901 = vmatpush1.msra.mxu0 %v1674
    %2902 = vmatprep.subr.mxu0 0.0
    %2903 = vmatpush1.msra.mxu0 %v1675
    %2904 = vmatprep.subr.mxu0 0.0
    %2905 = vmatpush1.msra.mxu0 %v1676
    %2906 = vmatprep.subr.mxu0 0.0
    %2907 = vmatpush1.msra.mxu0 %v1677
    %2908 = vmatprep.subr.mxu0 0.0
    %2909 = vmatpush1.msra.mxu0 0.0
    %2910 = vmatprep.subr.mxu0 0.0
    %2911 = vmatpush1.msra.mxu0 0.0
    %2912 = vmatprep.subr.mxu0 0.0
    %2913 = vmatpush1.msra.mxu0 0.0
    %2914 = vmatprep.subr.mxu0 0.0
    %2915 = vmatpush1.msra.mxu0 0.0
    %2916 = vmatprep.subr.mxu0 0.0
    %2917 = vmatpush1.msra.mxu0 0.0
    %2918 = vmatprep.subr.mxu0 0.0
    %2919 = vmatpush1.msra.mxu0 0.0
    %2920 = vmatprep.subr.mxu0 0.0
    %2921 = vmatpush1.msra.mxu0 0.0
    %2922 = vmatprep.subr.mxu0 0.0
    %2923 = vmatpush1.msra.mxu0 0.0
    %2924 = vmatprep.subr.mxu0 0.0
    %2925 = vmatpush1.msra.mxu0 0.0
    %2926 = vmatprep.subr.mxu0 0.0
    %2927 = vmatpush1.msra.mxu0 0.0
    %2928 = vmatprep.subr.mxu0 0.0
    %2929 = vmatpush1.msra.mxu0 0.0
    %2930 = vmatprep.subr.mxu0 0.0
    %2931 = vmatpush1.msra.mxu0 0.0
    %2932 = vmatprep.subr.mxu0 0.0
    %2933 = vmatpush1.msra.mxu0 0.0
    %2934 = vmatprep.subr.mxu0 0.0
    %2935 = vmatpush1.msra.mxu0 0.0
    %2936 = vmatprep.subr.mxu0 0.0
    %2937 = vmatpush1.msra.mxu0 0.0
    %2938 = vmatprep.subr.mxu0 0.0
    %2939 = vmatpush1.msra.mxu0 0.0
    %2940 = vmatprep.subr.mxu0 0.0
    %2941 = vmatpush1.msra.mxu0 0.0
    %2942 = vmatprep.subr.mxu0 0.0
    %2943 = vmatpush1.msra.mxu0 0.0
    %2944 = vmatprep.subr.mxu0 0.0
    %2945 = vmatpush1.msra.mxu0 0.0
    %2946 = vmatprep.subr.mxu0 0.0
    %2947 = vmatpush1.msra.mxu0 0.0
    %2948 = vmatprep.subr.mxu0 0.0
    %2949 = vmatpush1.msra.mxu0 0.0
    %2950 = vmatprep.subr.mxu0 0.0
    %2951 = vmatpush1.msra.mxu0 0.0
    %2952 = vmatprep.subr.mxu0 0.0
    %2953 = vmatpush1.msra.mxu0 0.0
    %2954 = vmatprep.subr.mxu0 0.0
    %2955 = vmatpush1.msra.mxu0 0.0
    %2956 = vmatprep.subr.mxu0 0.0
    %2957 = vmatpush1.msra.mxu0 0.0
    %2958 = vmatprep.subr.mxu0 0.0
    %2959 = vmatpush1.msra.mxu0 0.0
    %2960 = vmatprep.subr.mxu0 0.0
    %2961 = vmatpush1.msra.mxu0 0.0
    %2962 = vmatprep.subr.mxu0 0.0
    %2963 = vmatpush1.msra.mxu0 0.0
    %2964 = vmatprep.mubr.f32.mxu0 0.0
    %2965 = vmatmul.mubr.f32.gmra.mrb[0].mxu0 %v2898
    %v2966 = vpop.f32.mrb[0].mxu0
    %v2967 = vadd.f32 0.0, %v2966
    %v2968 = vpop.f32.mrb[0].mxu0
    %2969 = vdwg.mxu0
    %2970 = vmatprep.subr.mxu0 0.0
    %2971 = vmatpush1.msra.mxu0 %v1670
    %2972 = vmatprep.subr.mxu0 0.0
    %2973 = vmatpush1.msra.mxu0 %v1671
    %2974 = vmatprep.subr.mxu0 0.0
    %2975 = vmatpush1.msra.mxu0 %v1672
    %2976 = vmatprep.subr.mxu0 0.0
    %2977 = vmatpush1.msra.mxu0 %v1673
    %2978 = vmatprep.subr.mxu0 0.0
    %2979 = vmatpush1.msra.mxu0 0.0
    %2980 = vmatprep.subr.mxu0 0.0
    %2981 = vmatpush1.msra.mxu0 0.0
    %2982 = vmatprep.subr.mxu0 0.0
    %2983 = vmatpush1.msra.mxu0 0.0
    %2984 = vmatprep.subr.mxu0 0.0
    %2985 = vmatpush1.msra.mxu0 0.0
    %2986 = vmatprep.subr.mxu0 0.0
    %2987 = vmatpush1.msra.mxu0 0.0
    %2988 = vmatprep.subr.mxu0 0.0
    %2989 = vmatpush1.msra.mxu0 0.0
    %2990 = vmatprep.subr.mxu0 0.0
    %2991 = vmatpush1.msra.mxu0 0.0
    %2992 = vmatprep.subr.mxu0 0.0
    %2993 = vmatpush1.msra.mxu0 0.0
    %2994 = vmatprep.subr.mxu0 0.0
    %2995 = vmatpush1.msra.mxu0 0.0
    %2996 = vmatprep.subr.mxu0 0.0
    %2997 = vmatpush1.msra.mxu0 0.0
    %2998 = vmatprep.subr.mxu0 0.0
    %2999 = vmatpush1.msra.mxu0 0.0
    %3000 = vmatprep.subr.mxu0 0.0
    %3001 = vmatpush1.msra.mxu0 0.0
    %3002 = vmatprep.subr.mxu0 0.0
    %3003 = vmatpush1.msra.mxu0 0.0
    %3004 = vmatprep.subr.mxu0 0.0
    %3005 = vmatpush1.msra.mxu0 0.0
    %3006 = vmatprep.subr.mxu0 0.0
    %3007 = vmatpush1.msra.mxu0 0.0
    %3008 = vmatprep.subr.mxu0 0.0
    %3009 = vmatpush1.msra.mxu0 0.0
    %3010 = vmatprep.subr.mxu0 0.0
    %3011 = vmatpush1.msra.mxu0 0.0
    %3012 = vmatprep.subr.mxu0 0.0
    %3013 = vmatpush1.msra.mxu0 0.0
    %3014 = vmatprep.subr.mxu0 0.0
    %3015 = vmatpush1.msra.mxu0 0.0
    %3016 = vmatprep.subr.mxu0 0.0
    %3017 = vmatpush1.msra.mxu0 0.0
    %3018 = vmatprep.subr.mxu0 0.0
    %3019 = vmatpush1.msra.mxu0 0.0
    %3020 = vmatprep.subr.mxu0 0.0
    %3021 = vmatpush1.msra.mxu0 0.0
    %3022 = vmatprep.subr.mxu0 0.0
    %3023 = vmatpush1.msra.mxu0 0.0
    %3024 = vmatprep.subr.mxu0 0.0
    %3025 = vmatpush1.msra.mxu0 0.0
    %3026 = vmatprep.subr.mxu0 0.0
    %3027 = vmatpush1.msra.mxu0 0.0
    %3028 = vmatprep.subr.mxu0 0.0
    %3029 = vmatpush1.msra.mxu0 0.0
    %3030 = vmatprep.subr.mxu0 0.0
    %3031 = vmatpush1.msra.mxu0 0.0
    %3032 = vmatprep.subr.mxu0 0.0
    %3033 = vmatpush1.msra.mxu0 0.0
    %3034 = vmatprep.mubr.f32.mxu0 0.0
    %3035 = vmatmul.mubr.f32.gmra.mrb[0].mxu0 %v2739
    %v3036 = vpop.f32.mrb[0].mxu0
    %v3037 = vadd.f32 %v2967, %v3036
    %v3038 = vpop.f32.mrb[0].mxu0
    %3039 = vdwg.mxu0
    %3040 = vmatprep.subr.mxu0 0.0
    %3041 = vmatpush1.msra.mxu0 %v1821
    %3042 = vmatprep.subr.mxu0 0.0
    %3043 = vmatpush1.msra.mxu0 %v1822
    %3044 = vmatprep.subr.mxu0 0.0
    %3045 = vmatpush1.msra.mxu0 %v1823
    %3046 = vmatprep.subr.mxu0 0.0
    %3047 = vmatpush1.msra.mxu0 %v1824
    %3048 = vmatprep.subr.mxu0 0.0
    %3049 = vmatpush1.msra.mxu0 0.0
    %3050 = vmatprep.subr.mxu0 0.0
    %3051 = vmatpush1.msra.mxu0 0.0
    %3052 = vmatprep.subr.mxu0 0.0
    %3053 = vmatpush1.msra.mxu0 0.0
    %3054 = vmatprep.subr.mxu0 0.0
    %3055 = vmatpush1.msra.mxu0 0.0
    %3056 = vmatprep.subr.mxu0 0.0
    %3057 = vmatpush1.msra.mxu0 0.0
    %3058 = vmatprep.subr.mxu0 0.0
    %3059 = vmatpush1.msra.mxu0 0.0
    %3060 = vmatprep.subr.mxu0 0.0
    %3061 = vmatpush1.msra.mxu0 0.0
    %3062 = vmatprep.subr.mxu0 0.0
    %3063 = vmatpush1.msra.mxu0 0.0
    %3064 = vmatprep.subr.mxu0 0.0
    %3065 = vmatpush1.msra.mxu0 0.0
    %3066 = vmatprep.subr.mxu0 0.0
    %3067 = vmatpush1.msra.mxu0 0.0
    %3068 = vmatprep.subr.mxu0 0.0
    %3069 = vmatpush1.msra.mxu0 0.0
    %3070 = vmatprep.subr.mxu0 0.0
    %3071 = vmatpush1.msra.mxu0 0.0
    %3072 = vmatprep.subr.mxu0 0.0
    %3073 = vmatpush1.msra.mxu0 0.0
    %3074 = vmatprep.subr.mxu0 0.0
    %3075 = vmatpush1.msra.mxu0 0.0
    %3076 = vmatprep.subr.mxu0 0.0
    %3077 = vmatpush1.msra.mxu0 0.0
    %3078 = vmatprep.subr.mxu0 0.0
    %3079 = vmatpush1.msra.mxu0 0.0
    %3080 = vmatprep.subr.mxu0 0.0
    %3081 = vmatpush1.msra.mxu0 0.0
    %3082 = vmatprep.subr.mxu0 0.0
    %3083 = vmatpush1.msra.mxu0 0.0
    %3084 = vmatprep.subr.mxu0 0.0
    %3085 = vmatpush1.msra.mxu0 0.0
    %3086 = vmatprep.subr.mxu0 0.0
    %3087 = vmatpush1.msra.mxu0 0.0
    %3088 = vmatprep.subr.mxu0 0.0
    %3089 = vmatpush1.msra.mxu0 0.0
    %3090 = vmatprep.subr.mxu0 0.0
    %3091 = vmatpush1.msra.mxu0 0.0
    %3092 = vmatprep.subr.mxu0 0.0
    %3093 = vmatpush1.msra.mxu0 0.0
    %3094 = vmatprep.subr.mxu0 0.0
    %3095 = vmatpush1.msra.mxu0 0.0
    %3096 = vmatprep.subr.mxu0 0.0
    %3097 = vmatpush1.msra.mxu0 0.0
    %3098 = vmatprep.subr.mxu0 0.0
    %3099 = vmatpush1.msra.mxu0 0.0
    %3100 = vmatprep.subr.mxu0 0.0
    %3101 = vmatpush1.msra.mxu0 0.0
    %3102 = vmatprep.subr.mxu0 0.0
    %3103 = vmatpush1.msra.mxu0 0.0
    %3104 = vmatprep.mubr.f32.mxu0 0.0
    %3105 = vmatmul.mubr.f32.gmra.mrb[0].mxu0 %v2739
    %v3106 = vpop.f32.mrb[0].mxu0
    %v3107 = vadd.f32 0.0, %v3106
    %v3108 = vpop.f32.mrb[0].mxu0
    %3109 = vdwg.mxu0
    %v3110 = vadd.f32 %v3037, %v3107
    %v3111 = vadd.f32 %v3110, %v1901
    %v3112 = vxor.u32 %v3111, 2147483648
    %v3113 = vmul.f32 %v3112, 1.442695
    %v3114 = vpow.pop %v3113
    %v3115 = vadd.f32 %v3114, 1.0
    %v3116 = vrcp.pop %v3115
    %v3117 = vmul.f32 1.0, %v3116
    %v3118 = vtanh.pop %v3111
    %v3119 = vmul.f32 %v3117, %v2729
    %3121 = vrot.lane.b32.xlu0 %v3118, 64
    %v3122 = vpop.permute.xlu0 %3121
    %v3124 = vmul.f32 %v3117, %v3122
    %3126 = vrot.lane.b32.xlu0 %v3124, 32
    %v3127 = vpop.permute.xlu0 %3126
    %v3129 = vadd.f32 %v3119, %v3127
    %v3130 = vtanh.pop %v3129
    %3132 = vrot.lane.b32.xlu0 %v3130, 64
    %v3133 = vpop.permute.xlu0 %3132
    %v3135 = vmul.f32 %v3117, %v3133
    %3137 = vrot.lane.b32.xlu0 %v3135, 32
    %v3138 = vpop.permute.xlu0 %3137
    %v3139 = vsel %vm197, %v3138, 0
    %3141 = vmatprep.subr.mxu0 0.0
    %3142 = vmatpush1.xpose.msra.mxu0 %v1934
    %3143 = vmatprep.subr.mxu0 0.0
    %3144 = vmatpush1.xpose.msra.mxu0 %v1937
    %3145 = vmatprep.subr.mxu0 0.0
    %3146 = vmatpush1.xpose.msra.mxu0 0.0
    %3147 = vmatprep.subr.mxu0 0.0
    %3148 = vmatpush1.xpose.msra.mxu0 0.0
    %3149 = vmatprep.subr.mxu0 0.0
    %3150 = vmatpush1.xpose.msra.mxu0 0.0
    %3151 = vmatprep.subr.mxu0 0.0
    %3152 = vmatpush1.xpose.msra.mxu0 0.0
    %3153 = vmatprep.subr.mxu0 0.0
    %3154 = vmatpush1.xpose.msra.mxu0 0.0
    %3155 = vmatprep.subr.mxu0 0.0
    %3156 = vmatpush1.xpose.msra.mxu0 0.0
    %3157 = vmatprep.subr.mxu0 0.0
    %3158 = vmatpush1.xpose.msra.mxu0 0.0
    %3159 = vmatprep.subr.mxu0 0.0
    %3160 = vmatpush1.xpose.msra.mxu0 0.0
    %3161 = vmatprep.subr.mxu0 0.0
    %3162 = vmatpush1.xpose.msra.mxu0 0.0
    %3163 = vmatprep.subr.mxu0 0.0
    %3164 = vmatpush1.xpose.msra.mxu0 0.0
    %3165 = vmatprep.subr.mxu0 0.0
    %3166 = vmatpush1.xpose.msra.mxu0 0.0
    %3167 = vmatprep.subr.mxu0 0.0
    %3168 = vmatpush1.xpose.msra.mxu0 0.0
    %3169 = vmatprep.subr.mxu0 0.0
    %3170 = vmatpush1.xpose.msra.mxu0 0.0
    %3171 = vmatprep.subr.mxu0 0.0
    %3172 = vmatpush1.xpose.msra.mxu0 0.0
    %3173 = vmatprep.subr.mxu0 0.0
    %3174 = vmatpush1.xpose.msra.mxu0 0.0
    %3175 = vmatprep.subr.mxu0 0.0
    %3176 = vmatpush1.xpose.msra.mxu0 0.0
    %3177 = vmatprep.subr.mxu0 0.0
    %3178 = vmatpush1.xpose.msra.mxu0 0.0
    %3179 = vmatprep.subr.mxu0 0.0
    %3180 = vmatpush1.xpose.msra.mxu0 0.0
    %3181 = vmatprep.subr.mxu0 0.0
    %3182 = vmatpush1.xpose.msra.mxu0 0.0
    %3183 = vmatprep.subr.mxu0 0.0
    %3184 = vmatpush1.xpose.msra.mxu0 0.0
    %3185 = vmatprep.subr.mxu0 0.0
    %3186 = vmatpush1.xpose.msra.mxu0 0.0
    %3187 = vmatprep.subr.mxu0 0.0
    %3188 = vmatpush1.xpose.msra.mxu0 0.0
    %3189 = vmatprep.subr.mxu0 0.0
    %3190 = vmatpush1.xpose.msra.mxu0 0.0
    %3191 = vmatprep.subr.mxu0 0.0
    %3192 = vmatpush1.xpose.msra.mxu0 0.0
    %3193 = vmatprep.subr.mxu0 0.0
    %3194 = vmatpush1.xpose.msra.mxu0 0.0
    %3195 = vmatprep.subr.mxu0 0.0
    %3196 = vmatpush1.xpose.msra.mxu0 0.0
    %3197 = vmatprep.subr.mxu0 0.0
    %3198 = vmatpush1.xpose.msra.mxu0 0.0
    %3199 = vmatprep.subr.mxu0 0.0
    %3200 = vmatpush1.xpose.msra.mxu0 0.0
    %3201 = vmatprep.subr.mxu0 0.0
    %3202 = vmatpush1.xpose.msra.mxu0 0.0
    %3203 = vmatprep.subr.mxu0 0.0
    %3204 = vmatpush1.xpose.msra.mxu0 0.0
    %3205 = vmatprep.mubr.f32.mxu0 0.0
    %3206 = vmatmul.mubr.f32.gmra.mrb[0].mxu0 %v3139
    %v3207 = vpop.f32.mrb[0].mxu0
    %v3208 = vadd.f32 %v1669, %v3207
    %v3209 = vpop.f32.mrb[0].mxu0
    %3210 = vdwg.mxu0
    %v3211 = vsel %vm2009, %v3208, -inf
    %3212 = vmax.xlane.f32.xlu0 %v3211
    %v3213 = vpop.xlane.xlu0 %3212
    %v3214 = vsub.f32 %v3208, %v3213
    %v3215 = vmul.f32 %v3214, 1.442695
    %v3216 = vpow.pop %v3215
    %v3217 = vmul.f32 %v3216, %v1667
    %v3218 = vsel %vm2009, %v3217, 0.0
    %3219 = vadd.xlane.f32.xlu0 %v3218
    %v3220 = vpop.xlane.xlu0 %3219
    %v3221 = vmax.f32 %v3220, 1e-30
    %v3222 = vrcp.pop %v3221
    %v3223 = vmul.f32 %v3217, %v3222
    %v3225 = vsel %vm2023, %v3223, 0
    %3227 = vmatprep.subr.mxu0 0.0
    %3228 = vmatpush1.msra.mxu0 %v1665
    %3229 = vmatprep.subr.mxu0 0.0
    %3230 = vmatpush1.msra.mxu0 %v1666
    %3231 = vmatprep.subr.mxu0 0.0
    %3232 = vmatpush1.msra.mxu0 0.0
    %3233 = vmatprep.subr.mxu0 0.0
    %3234 = vmatpush1.msra.mxu0 0.0
    %3235 = vmatprep.subr.mxu0 0.0
    %3236 = vmatpush1.msra.mxu0 0.0
    %3237 = vmatprep.subr.mxu0 0.0
    %3238 = vmatpush1.msra.mxu0 0.0
    %3239 = vmatprep.subr.mxu0 0.0
    %3240 = vmatpush1.msra.mxu0 0.0
    %3241 = vmatprep.subr.mxu0 0.0
    %3242 = vmatpush1.msra.mxu0 0.0
    %3243 = vmatprep.subr.mxu0 0.0
    %3244 = vmatpush1.msra.mxu0 0.0
    %3245 = vmatprep.subr.mxu0 0.0
    %3246 = vmatpush1.msra.mxu0 0.0
    %3247 = vmatprep.subr.mxu0 0.0
    %3248 = vmatpush1.msra.mxu0 0.0
    %3249 = vmatprep.subr.mxu0 0.0
    %3250 = vmatpush1.msra.mxu0 0.0
    %3251 = vmatprep.subr.mxu0 0.0
    %3252 = vmatpush1.msra.mxu0 0.0
    %3253 = vmatprep.subr.mxu0 0.0
    %3254 = vmatpush1.msra.mxu0 0.0
    %3255 = vmatprep.subr.mxu0 0.0
    %3256 = vmatpush1.msra.mxu0 0.0
    %3257 = vmatprep.subr.mxu0 0.0
    %3258 = vmatpush1.msra.mxu0 0.0
    %3259 = vmatprep.subr.mxu0 0.0
    %3260 = vmatpush1.msra.mxu0 0.0
    %3261 = vmatprep.subr.mxu0 0.0
    %3262 = vmatpush1.msra.mxu0 0.0
    %3263 = vmatprep.subr.mxu0 0.0
    %3264 = vmatpush1.msra.mxu0 0.0
    %3265 = vmatprep.subr.mxu0 0.0
    %3266 = vmatpush1.msra.mxu0 0.0
    %3267 = vmatprep.subr.mxu0 0.0
    %3268 = vmatpush1.msra.mxu0 0.0
    %3269 = vmatprep.subr.mxu0 0.0
    %3270 = vmatpush1.msra.mxu0 0.0
    %3271 = vmatprep.subr.mxu0 0.0
    %3272 = vmatpush1.msra.mxu0 0.0
    %3273 = vmatprep.subr.mxu0 0.0
    %3274 = vmatpush1.msra.mxu0 0.0
    %3275 = vmatprep.subr.mxu0 0.0
    %3276 = vmatpush1.msra.mxu0 0.0
    %3277 = vmatprep.subr.mxu0 0.0
    %3278 = vmatpush1.msra.mxu0 0.0
    %3279 = vmatprep.subr.mxu0 0.0
    %3280 = vmatpush1.msra.mxu0 0.0
    %3281 = vmatprep.subr.mxu0 0.0
    %3282 = vmatpush1.msra.mxu0 0.0
    %3283 = vmatprep.subr.mxu0 0.0
    %3284 = vmatpush1.msra.mxu0 0.0
    %3285 = vmatprep.subr.mxu0 0.0
    %3286 = vmatpush1.msra.mxu0 0.0
    %3287 = vmatprep.subr.mxu0 0.0
    %3288 = vmatpush1.msra.mxu0 0.0
    %3289 = vmatprep.subr.mxu0 0.0
    %3290 = vmatpush1.msra.mxu0 0.0
    %3291 = vmatprep.mubr.f32.mxu0 0.0
    %3292 = vmatmul.mubr.f32.gmra.mrb[0].mxu0 %v3225
    %v3293 = vpop.f32.mrb[0].mxu0
    %v3294 = vadd.f32 0.0, %v3293
    %v3295 = vpop.f32.mrb[0].mxu0
    %3296 = vdwg.mxu0
    %v3297 = vld [vmem:[%s12] sm:$0xff]
    %v3298 = vld [vmem:[%s12 + $0x8] sm:$0xff]
    %v3299 = vld [vmem:[%s12 + $0x10] sm:$0xff]
    %v3300 = vld [vmem:[%s12 + $0x18] sm:$0xff]
    %v3301 = vld [vmem:[%s13] sm:$0xff]
    %v3302 = vld [vmem:[%s13 + $0x8] sm:$0xff]
    %v3303 = vld [vmem:[%s13 + $0x10] sm:$0xff]
    %v3304 = vld [vmem:[%s13 + $0x18] sm:$0xff]
    %v3306 = vsel %vm197, %v3294, 0
    %3308 = vmatprep.subr.mxu0 0.0
    %3309 = vmatpush1.msra.mxu0 %v3301
    %3310 = vmatprep.subr.mxu0 0.0
    %3311 = vmatpush1.msra.mxu0 %v3302
    %3312 = vmatprep.subr.mxu0 0.0
    %3313 = vmatpush1.msra.mxu0 %v3303
    %3314 = vmatprep.subr.mxu0 0.0
    %3315 = vmatpush1.msra.mxu0 %v3304
    %3316 = vmatprep.subr.mxu0 0.0
    %3317 = vmatpush1.msra.mxu0 0.0
    %3318 = vmatprep.subr.mxu0 0.0
    %3319 = vmatpush1.msra.mxu0 0.0
    %3320 = vmatprep.subr.mxu0 0.0
    %3321 = vmatpush1.msra.mxu0 0.0
    %3322 = vmatprep.subr.mxu0 0.0
    %3323 = vmatpush1.msra.mxu0 0.0
    %3324 = vmatprep.subr.mxu0 0.0
    %3325 = vmatpush1.msra.mxu0 0.0
    %3326 = vmatprep.subr.mxu0 0.0
    %3327 = vmatpush1.msra.mxu0 0.0
    %3328 = vmatprep.subr.mxu0 0.0
    %3329 = vmatpush1.msra.mxu0 0.0
    %3330 = vmatprep.subr.mxu0 0.0
    %3331 = vmatpush1.msra.mxu0 0.0
    %3332 = vmatprep.subr.mxu0 0.0
    %3333 = vmatpush1.msra.mxu0 0.0
    %3334 = vmatprep.subr.mxu0 0.0
    %3335 = vmatpush1.msra.mxu0 0.0
    %3336 = vmatprep.subr.mxu0 0.0
    %3337 = vmatpush1.msra.mxu0 0.0
    %3338 = vmatprep.subr.mxu0 0.0
    %3339 = vmatpush1.msra.mxu0 0.0
    %3340 = vmatprep.subr.mxu0 0.0
    %3341 = vmatpush1.msra.mxu0 0.0
    %3342 = vmatprep.subr.mxu0 0.0
    %3343 = vmatpush1.msra.mxu0 0.0
    %3344 = vmatprep.subr.mxu0 0.0
    %3345 = vmatpush1.msra.mxu0 0.0
    %3346 = vmatprep.subr.mxu0 0.0
    %3347 = vmatpush1.msra.mxu0 0.0
    %3348 = vmatprep.subr.mxu0 0.0
    %3349 = vmatpush1.msra.mxu0 0.0
    %3350 = vmatprep.subr.mxu0 0.0
    %3351 = vmatpush1.msra.mxu0 0.0
    %3352 = vmatprep.subr.mxu0 0.0
    %3353 = vmatpush1.msra.mxu0 0.0
    %3354 = vmatprep.subr.mxu0 0.0
    %3355 = vmatpush1.msra.mxu0 0.0
    %3356 = vmatprep.subr.mxu0 0.0
    %3357 = vmatpush1.msra.mxu0 0.0
    %3358 = vmatprep.subr.mxu0 0.0
    %3359 = vmatpush1.msra.mxu0 0.0
    %3360 = vmatprep.subr.mxu0 0.0
    %3361 = vmatpush1.msra.mxu0 0.0
    %3362 = vmatprep.subr.mxu0 0.0
    %3363 = vmatpush1.msra.mxu0 0.0
    %3364 = vmatprep.subr.mxu0 0.0
    %3365 = vmatpush1.msra.mxu0 0.0
    %3366 = vmatprep.subr.mxu0 0.0
    %3367 = vmatpush1.msra.mxu0 0.0
    %3368 = vmatprep.subr.mxu0 0.0
    %3369 = vmatpush1.msra.mxu0 0.0
    %3370 = vmatprep.subr.mxu0 0.0
    %3371 = vmatpush1.msra.mxu0 0.0
    %3372 = vmatprep.mubr.f32.mxu0 0.0
    %3373 = vmatmul.mubr.f32.gmra.mrb[0].mxu0 %v3306
    %v3374 = vpop.f32.mrb[0].mxu0
    %v3375 = vadd.f32 0.0, %v3374
    %v3376 = vpop.f32.mrb[0].mxu0
    %3377 = vdwg.mxu0
    %3378 = vmatprep.subr.mxu0 0.0
    %3379 = vmatpush1.msra.mxu0 %v3297
    %3380 = vmatprep.subr.mxu0 0.0
    %3381 = vmatpush1.msra.mxu0 %v3298
    %3382 = vmatprep.subr.mxu0 0.0
    %3383 = vmatpush1.msra.mxu0 %v3299
    %3384 = vmatprep.subr.mxu0 0.0
    %3385 = vmatpush1.msra.mxu0 %v3300
    %3386 = vmatprep.subr.mxu0 0.0
    %3387 = vmatpush1.msra.mxu0 0.0
    %3388 = vmatprep.subr.mxu0 0.0
    %3389 = vmatpush1.msra.mxu0 0.0
    %3390 = vmatprep.subr.mxu0 0.0
    %3391 = vmatpush1.msra.mxu0 0.0
    %3392 = vmatprep.subr.mxu0 0.0
    %3393 = vmatpush1.msra.mxu0 0.0
    %3394 = vmatprep.subr.mxu0 0.0
    %3395 = vmatpush1.msra.mxu0 0.0
    %3396 = vmatprep.subr.mxu0 0.0
    %3397 = vmatpush1.msra.mxu0 0.0
    %3398 = vmatprep.subr.mxu0 0.0
    %3399 = vmatpush1.msra.mxu0 0.0
    %3400 = vmatprep.subr.mxu0 0.0
    %3401 = vmatpush1.msra.mxu0 0.0
    %3402 = vmatprep.subr.mxu0 0.0
    %3403 = vmatpush1.msra.mxu0 0.0
    %3404 = vmatprep.subr.mxu0 0.0
    %3405 = vmatpush1.msra.mxu0 0.0
    %3406 = vmatprep.subr.mxu0 0.0
    %3407 = vmatpush1.msra.mxu0 0.0
    %3408 = vmatprep.subr.mxu0 0.0
    %3409 = vmatpush1.msra.mxu0 0.0
    %3410 = vmatprep.subr.mxu0 0.0
    %3411 = vmatpush1.msra.mxu0 0.0
    %3412 = vmatprep.subr.mxu0 0.0
    %3413 = vmatpush1.msra.mxu0 0.0
    %3414 = vmatprep.subr.mxu0 0.0
    %3415 = vmatpush1.msra.mxu0 0.0
    %3416 = vmatprep.subr.mxu0 0.0
    %3417 = vmatpush1.msra.mxu0 0.0
    %3418 = vmatprep.subr.mxu0 0.0
    %3419 = vmatpush1.msra.mxu0 0.0
    %3420 = vmatprep.subr.mxu0 0.0
    %3421 = vmatpush1.msra.mxu0 0.0
    %3422 = vmatprep.subr.mxu0 0.0
    %3423 = vmatpush1.msra.mxu0 0.0
    %3424 = vmatprep.subr.mxu0 0.0
    %3425 = vmatpush1.msra.mxu0 0.0
    %3426 = vmatprep.subr.mxu0 0.0
    %3427 = vmatpush1.msra.mxu0 0.0
    %3428 = vmatprep.subr.mxu0 0.0
    %3429 = vmatpush1.msra.mxu0 0.0
    %3430 = vmatprep.subr.mxu0 0.0
    %3431 = vmatpush1.msra.mxu0 0.0
    %3432 = vmatprep.subr.mxu0 0.0
    %3433 = vmatpush1.msra.mxu0 0.0
    %3434 = vmatprep.subr.mxu0 0.0
    %3435 = vmatpush1.msra.mxu0 0.0
    %3436 = vmatprep.subr.mxu0 0.0
    %3437 = vmatpush1.msra.mxu0 0.0
    %3438 = vmatprep.subr.mxu0 0.0
    %3439 = vmatpush1.msra.mxu0 0.0
    %3440 = vmatprep.subr.mxu0 0.0
    %3441 = vmatpush1.msra.mxu0 0.0
    %3442 = vmatprep.mubr.f32.mxu0 0.0
    %3443 = vmatmul.mubr.f32.gmra.mrb[0].mxu0 %v3139
    %v3444 = vpop.f32.mrb[0].mxu0
    %v3445 = vadd.f32 %v3375, %v3444
    %v3446 = vpop.f32.mrb[0].mxu0
    %3447 = vdwg.mxu0
    %v3448 = vld [vmem:[%s14] sm:$0x1]
    %v3450 = vlaneseq
    %v3451 = vshrl.u32 %v3450, 7
    %v3452 = vsub.s32 0, %v3451
    %v3453 = vrot.slane %v3448, %v3452
    %v3455 = vadd.f32 %v3445, %v3453
    %v3456 = vmax.f32 %v3455, 0.0
    %v3457 = vld [vmem:[%s15] sm:$0xff]
    %v3458 = vld [vmem:[%s15 + $0x8] sm:$0xff]
    %v3459 = vld [vmem:[%s15 + $0x10] sm:$0xff]
    %v3460 = vld [vmem:[%s15 + $0x18] sm:$0xff]
    %v3461 = vld [vmem:[%s16] sm:$0x1]
    %v3463 = vlaneseq
    %v3464 = vshrl.u32 %v3463, 7
    %v3465 = vsub.s32 0, %v3464
    %v3466 = vrot.slane %v3461, %v3465
    %v3469 = vsel %vm197, %v3456, 0
    %3471 = vmatprep.subr.mxu0 0.0
    %3472 = vmatpush1.msra.mxu0 %v3457
    %3473 = vmatprep.subr.mxu0 0.0
    %3474 = vmatpush1.msra.mxu0 %v3458
    %3475 = vmatprep.subr.mxu0 0.0
    %3476 = vmatpush1.msra.mxu0 %v3459
    %3477 = vmatprep.subr.mxu0 0.0
    %3478 = vmatpush1.msra.mxu0 %v3460
    %3479 = vmatprep.subr.mxu0 0.0
    %3480 = vmatpush1.msra.mxu0 0.0
    %3481 = vmatprep.subr.mxu0 0.0
    %3482 = vmatpush1.msra.mxu0 0.0
    %3483 = vmatprep.subr.mxu0 0.0
    %3484 = vmatpush1.msra.mxu0 0.0
    %3485 = vmatprep.subr.mxu0 0.0
    %3486 = vmatpush1.msra.mxu0 0.0
    %3487 = vmatprep.subr.mxu0 0.0
    %3488 = vmatpush1.msra.mxu0 0.0
    %3489 = vmatprep.subr.mxu0 0.0
    %3490 = vmatpush1.msra.mxu0 0.0
    %3491 = vmatprep.subr.mxu0 0.0
    %3492 = vmatpush1.msra.mxu0 0.0
    %3493 = vmatprep.subr.mxu0 0.0
    %3494 = vmatpush1.msra.mxu0 0.0
    %3495 = vmatprep.subr.mxu0 0.0
    %3496 = vmatpush1.msra.mxu0 0.0
    %3497 = vmatprep.subr.mxu0 0.0
    %3498 = vmatpush1.msra.mxu0 0.0
    %3499 = vmatprep.subr.mxu0 0.0
    %3500 = vmatpush1.msra.mxu0 0.0
    %3501 = vmatprep.subr.mxu0 0.0
    %3502 = vmatpush1.msra.mxu0 0.0
    %3503 = vmatprep.subr.mxu0 0.0
    %3504 = vmatpush1.msra.mxu0 0.0
    %3505 = vmatprep.subr.mxu0 0.0
    %3506 = vmatpush1.msra.mxu0 0.0
    %3507 = vmatprep.subr.mxu0 0.0
    %3508 = vmatpush1.msra.mxu0 0.0
    %3509 = vmatprep.subr.mxu0 0.0
    %3510 = vmatpush1.msra.mxu0 0.0
    %3511 = vmatprep.subr.mxu0 0.0
    %3512 = vmatpush1.msra.mxu0 0.0
    %3513 = vmatprep.subr.mxu0 0.0
    %3514 = vmatpush1.msra.mxu0 0.0
    %3515 = vmatprep.subr.mxu0 0.0
    %3516 = vmatpush1.msra.mxu0 0.0
    %3517 = vmatprep.subr.mxu0 0.0
    %3518 = vmatpush1.msra.mxu0 0.0
    %3519 = vmatprep.subr.mxu0 0.0
    %3520 = vmatpush1.msra.mxu0 0.0
    %3521 = vmatprep.subr.mxu0 0.0
    %3522 = vmatpush1.msra.mxu0 0.0
    %3523 = vmatprep.subr.mxu0 0.0
    %3524 = vmatpush1.msra.mxu0 0.0
    %3525 = vmatprep.subr.mxu0 0.0
    %3526 = vmatpush1.msra.mxu0 0.0
    %3527 = vmatprep.subr.mxu0 0.0
    %3528 = vmatpush1.msra.mxu0 0.0
    %3529 = vmatprep.subr.mxu0 0.0
    %3530 = vmatpush1.msra.mxu0 0.0
    %3531 = vmatprep.subr.mxu0 0.0
    %3532 = vmatpush1.msra.mxu0 0.0
    %3533 = vmatprep.subr.mxu0 0.0
    %3534 = vmatpush1.msra.mxu0 0.0
    %3535 = vmatprep.mubr.f32.mxu0 0.0
    %3536 = vmatmul.mubr.f32.gmra.mrb[0].mxu0 %v3469
    %v3537 = vpop.f32.mrb[0].mxu0
    %v3538 = vadd.f32 %v3466, %v3537
    %v3539 = vpop.f32.mrb[0].mxu0
    %3540 = vdwg.mxu0
    %vm3541 = vcmask 58368
    %3542 = vst.msk [vmem:[#allocation2] sm:$0x3] %vm3541, %v3538
    // Predicated region
    $region70: #{mpnn_prop_pred_pallas.1} parent=1 // pred_check
      _
    $region71: #{mpnn_prop_pred_pallas.1} parent=1 // pred_check_branch
      %3544 = sbr.rel (0) target = $region73
    $region72: #{mpnn_prop_pred_pallas.1} parent=1 // pred_region
      %s3546 = ssub.s32 32, 32
      %3547 = vsyncadd [#allocation3], %s3546
      %s3549 = sshll.u32 [#allocation2], 4
      %s3550 = int_to_ptr.vmem [resolvable:$true] %s3549
      %3552 = dma.vmem_to_hbm [thread:$0]  %s3550, 32, %s17, [#allocation3]
    $region73: #{mpnn_prop_pred_pallas.1} parent=1 // pred_fallthru
      _
    // Predicated region
    $region74: #{mpnn_prop_pred_pallas.1} parent=1 // pred_check
      _
    $region75: #{mpnn_prop_pred_pallas.1} parent=1 // pred_check_branch
      %3554 = sbr.rel (0) target = $region77
    $region76: #{mpnn_prop_pred_pallas.1} parent=1 // pred_region
      %3555 = dma.done [#allocation3], 32
    $region77: #{mpnn_prop_pred_pallas.1} parent=1 // pred_fallthru
      _
    %3556 = vsyncpa [#allocation3], 1

</llo_original>
